<compile_context>
chip_gen: v7x
topology: tpu7x:2x2x1
jax: 0.10.0
libtpu: 0.0.40
codegen_flags: <defaults>
</compile_context>

<pallas_src>
import functools

import jax
import jax.numpy as jnp
from jax.experimental import pallas as pl
from jax.experimental.pallas import tpu as pltpu

EPS = 1e-5
GROWTH = 8
BN_SIZE = 2
INIT_FEATURES = 16
BLOCK_CONFIG = (2, 2)
NUM_CLASSES = 10

# Whole-array VMEM block (block == full array, so no (8,128) divisibility issue).
_VMEM = pl.BlockSpec(memory_space=pltpu.MemorySpace.VMEM)


# ---------------------------- Pallas kernels ----------------------------

def _mm_kernel(a_ref, w_ref, o_ref):
    # plain matmul (dense-layer conv2, transition conv)
    o_ref[...] = jnp.dot(a_ref[...], w_ref[...],
                         preferred_element_type=jnp.float32).astype(o_ref.dtype)


def _mm_bn_relu_kernel(a_ref, w_ref, s_ref, t_ref, o_ref):
    # matmul with fused BN(+folded Normalize bias)+ReLU epilogue (conv0 -> norm0 -> relu)
    acc = jnp.dot(a_ref[...], w_ref[...], preferred_element_type=jnp.float32)
    o_ref[...] = jnp.maximum(acc * s_ref[...] + t_ref[...], 0.0).astype(o_ref.dtype)


def _bn_relu_mm_bn_relu_kernel(a_ref, si_ref, ti_ref, w_ref, so_ref, to_ref, o_ref):
    # dense layer bottleneck: relu(bn1(x)) @ W1 -> relu(bn2(.)) in one kernel
    a = jnp.maximum(a_ref[...] * si_ref[...] + ti_ref[...], 0.0)        # f32 on VPU
    acc = jnp.dot(a.astype(jnp.bfloat16), w_ref[...],
                  preferred_element_type=jnp.float32)
    o_ref[...] = jnp.maximum(acc * so_ref[...] + to_ref[...], 0.0).astype(o_ref.dtype)


def _maxpool9_kernel(ee_ref, eo_ref, oe_ref, oo_ref, o_ref, *, ho, wo):
    # 3x3/stride-2/pad-1 max pool from 4 parity planes; pairwise max tree in VMEM.
    ee = ee_ref[...]
    eo = eo_ref[...]
    oe = oe_ref[...]
    oo = oo_ref[...]
    m = jnp.maximum
    out = ee[:, :ho, :wo, :]
    out = m(out, ee[:, :ho, 1:wo + 1, :])
    out = m(out, ee[:, 1:ho + 1, :wo, :])
    out = m(out, ee[:, 1:ho + 1, 1:wo + 1, :])
    out = m(out, eo[:, :ho, :wo, :])
    out = m(out, eo[:, 1:ho + 1, :wo, :])
    out = m(out, oe[:, :ho, :wo, :])
    out = m(out, oe[:, :ho, 1:wo + 1, :])
    out = m(out, oo[:, :ho, :wo, :])
    o_ref[...] = out


def _bn_relu_avgpool_kernel(a_ref, b_ref, c_ref, d_ref, s_ref, t_ref, o_ref):
    # transition norm+ReLU fused with the 2x2 avg pool (pool commutes with the
    # bias-free 1x1 conv that follows, so the conv runs on the pooled tensor).
    s = s_ref[...]
    t = t_ref[...]

    def bnr(v):
        return jnp.maximum(v * s + t, 0.0)

    o_ref[...] = (0.25 * (bnr(a_ref[...]) + bnr(b_ref[...]) +
                          bnr(c_ref[...]) + bnr(d_ref[...]))).astype(o_ref.dtype)


def _bn_relu_gap_fc_kernel(x_ref, s_ref, t_ref, w_ref, b_ref, o_ref):
    # norm5 -> relu -> adaptive_avg_pool2d((1,1)) -> flatten -> Linear, fused
    x = jnp.maximum(x_ref[...] * s_ref[...] + t_ref[...], 0.0)   # [B, H*W, C]
    pooled = jnp.mean(x, axis=1)                                 # [B, C]
    o_ref[...] = (jnp.dot(pooled, w_ref[...], preferred_element_type=jnp.float32)
                  + b_ref[...])


# ---------------------------- matmul wrappers (M-tiled grid) ----------------------------

def _choose_tm(m):
    if m <= 1024:
        return m
    for cand in (1024, 512, 256, 128, 64, 32, 16, 8):
        if m % cand == 0:
            return cand
    return m


def _call_mm(kernel, operands, tiled, m, k, n, out_dtype):
    """pallas_call helper: tiles dim0 (= B*Ho*Wo) of the row-shaped operands."""
    tm = _choose_tm(m)
    grid = (m // tm,)
    in_specs = []
    for arr, is_tiled in zip(operands, tiled):
        if is_tiled:
            in_specs.append(pl.BlockSpec((tm, arr.shape[1]), lambda i: (i, 0)))
        else:
            in_specs.append(pl.BlockSpec(arr.shape, lambda i: (0, 0)))
    out_specs = pl.BlockSpec((tm, n), lambda i: (i, 0))
    bytes_accessed = sum(int(a.size) * int(a.dtype.itemsize) for a in operands)
    bytes_accessed += m * n * int(jnp.dtype(out_dtype).itemsize)
    return pl.pallas_call(
        kernel,
        out_shape=jax.ShapeDtypeStruct((m, n), out_dtype),
        grid=grid,
        in_specs=in_specs,
        out_specs=out_specs,
        compiler_params=pltpu.CompilerParams(dimension_semantics=("parallel",)),
        cost_estimate=pl.CostEstimate(flops=2 * m * k * n, transcendentals=0,
                                      bytes_accessed=int(bytes_accessed)),
    )(*operands)


def pallas_mm(a, w, out_dtype=jnp.float32):
    m, k = a.shape
    n = w.shape[1]
    return _call_mm(_mm_kernel, [a, w], [True, False], m, k, n, out_dtype)


def pallas_mm_bn_relu(a, w, scale, shift, out_dtype=jnp.float32):
    m, k = a.shape
    n = w.shape[1]
    return _call_mm(_mm_bn_relu_kernel, [a, w, scale, shift],
                    [True, False, False, False], m, k, n, out_dtype)


def pallas_bn_relu_mm_bn_relu(a, si, ti, w, so, to, out_dtype=jnp.bfloat16):
    m, k = a.shape
    n = w.shape[1]
    return _call_mm(_bn_relu_mm_bn_relu_kernel, [a, si, ti, w, so, to],
                    [True, False, False, False, False, False], m, k, n, out_dtype)


# ---------------------------- layers (glue + Pallas) ----------------------------

def _bn_fold(p):
    scale = p["gamma"] * jax.lax.rsqrt(p["var"] + EPS)
    shift = p["beta"] - p["mean"] * scale
    return scale, shift


def _im2col(x, kh, kw, stride, pad):
    # x: NHWC (any dtype). Pure indexing/reshape glue; the matmul does the work.
    B, H, W, C = x.shape
    xp = jnp.pad(x, ((0, 0), (pad, pad), (pad, pad), (0, 0)))
    Ho = (H + 2 * pad - kh) // stride + 1
    Wo = (W + 2 * pad - kw) // stride + 1
    cols = [xp[:, i:i + (Ho - 1) * stride + 1:stride,
               j:j + (Wo - 1) * stride + 1:stride, :]
            for i in range(kh) for j in range(kw)]
    patches = jnp.concatenate(cols, axis=-1)  # [B, Ho, Wo, kh*kw*C]
    return patches.reshape(B * Ho * Wo, kh * kw * C), (B, Ho, Wo)


def _w_oihw_to_2d(w_oihw):
    Cout, Cin, kh, kw = w_oihw.shape
    return jnp.transpose(w_oihw, (2, 3, 1, 0)).reshape(kh * kw * Cin, Cout)


def conv0_norm0_relu(x, w_oihw, scale, shift, stride, pad):
    # conv (Normalize already folded into weights / shift) + BN + ReLU epilogue.
    Cout = w_oihw.shape[0]
    kh, kw = w_oihw.shape[2], w_oihw.shape[3]
    patches, (B, Ho, Wo) = _im2col(x.astype(jnp.bfloat16), kh, kw, stride, pad)
    w2 = _w_oihw_to_2d(w_oihw).astype(jnp.bfloat16)
    out = pallas_mm_bn_relu(patches, w2, scale.reshape(1, Cout), shift.reshape(1, Cout))
    return out.reshape(B, Ho, Wo, Cout)


def max_pool_3x3_s2(x):
    # MaxPool2d(kernel=3, stride=2, padding=1). Input is post-ReLU (>= 0), so
    # zero padding is equivalent to PyTorch's implicit -inf padding.
    B, H, W, C = x.shape
    Ho = (H + 2 - 3) // 2 + 1
    Wo = (W + 2 - 3) // 2 + 1
    xp = jnp.pad(x, ((0, 0), (1, 1), (1, 1), (0, 0)))
    # parity planes: turns stride-2 windows into unit-stride in-kernel slices
    ee = xp[:, 0::2, 0::2, :]
    eo = xp[:, 0::2, 1::2, :]
    oe = xp[:, 1::2, 0::2, :]
    oo = xp[:, 1::2, 1::2, :]
    kern = functools.partial(_maxpool9_kernel, ho=Ho, wo=Wo)
    return pl.pallas_call(
        kern,
        out_shape=jax.ShapeDtypeStruct((B, Ho, Wo, C), jnp.float32),
        in_specs=[_VMEM, _VMEM, _VMEM, _VMEM],
        out_specs=_VMEM,
    )(ee, eo, oe, oo)


def dense_layer(x, p):
    B, H, W, Cin = x.shape
    s1, t1 = _bn_fold(p["norm1"])
    s2, t2 = _bn_fold(p["norm2"])
    cmid = p["conv1"].shape[0]
    w1 = _w_oihw_to_2d(p["conv1"]).astype(jnp.bfloat16)            # [Cin, cmid]
    # fused: relu(bn1(x)) @ W1 -> relu(bn2(.))  (bf16 bottleneck output)
    y = pallas_bn_relu_mm_bn_relu(
        x.reshape(B * H * W, Cin),
        s1.reshape(1, Cin), t1.reshape(1, Cin),
        w1, s2.reshape(1, cmid), t2.reshape(1, cmid))
    y = y.reshape(B, H, W, cmid)
    # 3x3 conv2 (no BN/ReLU after: the next layer's norm1 handles the concat tensor)
    patches, _ = _im2col(y, 3, 3, 1, 1)                            # bf16 patches
    w2 = _w_oihw_to_2d(p["conv2"]).astype(jnp.bfloat16)            # [9*cmid, GROWTH]
    out = pallas_mm(patches, w2).reshape(B, H, W, GROWTH)
    # TODO(synk): write the GROWTH-channel slice in place (out_specs index_map +
    # input_output_aliases) instead of re-copying the growing prefix every layer.
    return jnp.concatenate([x, out], axis=-1)


def transition(x, p):
    B, H, W, C = x.shape
    s, t = _bn_fold(p["norm"])
    # BN+ReLU fused with the 2x2 avg pool; the bias-free 1x1 conv commutes with
    # average pooling, so the (4x smaller) matmul runs on the pooled tensor.
    x00 = x[:, 0::2, 0::2, :]
    x01 = x[:, 0::2, 1::2, :]
    x10 = x[:, 1::2, 0::2, :]
    x11 = x[:, 1::2, 1::2, :]
    Ho, Wo = H // 2, W // 2
    pooled = pl.pallas_call(
        _bn_relu_avgpool_kernel,
        out_shape=jax.ShapeDtypeStruct((B, Ho, Wo, C), jnp.bfloat16),
        in_specs=[_VMEM] * 6,
        out_specs=_VMEM,
    )(x00, x01, x10, x11, s.reshape(1, 1, 1, C), t.reshape(1, 1, 1, C))
    Cout = p["conv"].shape[0]
    w = _w_oihw_to_2d(p["conv"]).astype(jnp.bfloat16)              # [C, Cout]
    y = pallas_mm(pooled.reshape(B * Ho * Wo, C), w)
    return y.reshape(B, Ho, Wo, Cout)


def bn_relu_gap_fc(x, scale, shift, fc_w, fc_b):
    B, H, W, C = x.shape
    N = fc_w.shape[1]
    return pl.pallas_call(
        _bn_relu_gap_fc_kernel,
        out_shape=jax.ShapeDtypeStruct((B, N), jnp.float32),
        in_specs=[_VMEM] * 5,
        out_specs=_VMEM,
    )(x.reshape(B, H * W, C), scale.reshape(1, 1, C), shift.reshape(1, 1, C),
      fc_w, fc_b.reshape(1, N))


# ---------------------------- full forward ----------------------------

@jax.jit
def densenet_forward(params, x_nchw):
    x = jnp.transpose(x_nchw, (0, 2, 3, 1)).astype(jnp.float32)    # NCHW -> NHWC

    # Normalize(mean,std) folded into conv0: scale weights per input channel by
    # 1/std and add a bias of -sum_k W[o,c,k]*mean[c]/std[c]; the bias is then
    # folded into the norm0 shift, so no preprocessing kernel runs at all.
    mean = jnp.array([0.485, 0.456, 0.406], jnp.float32)
    std = jnp.array([0.229, 0.224, 0.225], jnp.float32)
    w0 = params["conv0"]                                           # [Cout, 3, 7, 7]
    w0_scaled = w0 / std[None, :, None, None]
    b_norm = -jnp.sum(w0 * (mean / std)[None, :, None, None], axis=(1, 2, 3))
    scale0, shift0 = _bn_fold(params["norm0"])
    shift0 = shift0 + scale0 * b_norm

    x = conv0_norm0_relu(x, w0_scaled, scale0, shift0, stride=2, pad=3)
    x = max_pool_3x3_s2(x)

    for bi, block in enumerate(params["blocks"]):
        for layer in block:
            x = dense_layer(x, layer)
        if bi < len(params["blocks"]) - 1:
            x = transition(x, params["transitions"][bi])

    # norm5 + F.relu + adaptive_avg_pool2d((1,1)) + flatten + classifier (one kernel)
    scale5, shift5 = _bn_fold(params["norm5"])
    return bn_relu_gap_fc(x, scale5, shift5, params["fc_w"], params["fc_b"])


# ---------------------------- deterministic params ----------------------------

def init_params(key):
    keys = iter(jax.random.split(key, 128))

    def conv(cout, cin, kh, kw):
        fan_in = cin * kh * kw
        return (jax.random.normal(next(keys), (cout, cin, kh, kw), jnp.float32)
                * (2.0 / fan_in) ** 0.5)

    def bn(c):
        return {
            "gamma": jnp.ones((c,), jnp.float32),
            "beta": jnp.zeros((c,), jnp.float32),
            "mean": 0.1 * jax.random.normal(next(keys), (c,), jnp.float32),
            "var": 1.0 + 0.1 * jax.random.uniform(next(keys), (c,), jnp.float32),
        }

    params = {}
    params["conv0"] = conv(INIT_FEATURES, 3, 7, 7)
    params["norm0"] = bn(INIT_FEATURES)

    nf = INIT_FEATURES
    blocks, transitions = [], []
    for bi, num_layers in enumerate(BLOCK_CONFIG):
        block = []
        for _ in range(num_layers):
            block.append({
                "norm1": bn(nf),
                "conv1": conv(BN_SIZE * GROWTH, nf, 1, 1),
                "norm2": bn(BN_SIZE * GROWTH),
                "conv2": conv(GROWTH, BN_SIZE * GROWTH, 3, 3),
            })
            nf += GROWTH
        blocks.append(block)
        if bi != len(BLOCK_CONFIG) - 1:
            transitions.append({"norm": bn(nf), "conv": conv(nf // 2, nf, 1, 1)})
            nf = nf // 2
    params["blocks"] = blocks
    params["transitions"] = transitions
    params["norm5"] = bn(nf)
    params["fc_w"] = (jax.random.normal(next(keys), (nf, NUM_CLASSES), jnp.float32)
                      * (1.0 / nf) ** 0.5)
    params["fc_b"] = jnp.zeros((NUM_CLASSES,), jnp.float32)
    return params


if __name__ == "__main__":
    key = jax.random.PRNGKey(0)
    pkey, xkey = jax.random.split(key)
    params = init_params(pkey)
    # NCHW input like the PyTorch module expects (image-like values in [0, 1]).
    x = jax.random.uniform(xkey, (2, 3, 32, 32), jnp.float32)
    out = densenet_forward(params, x)
    out = jax.block_until_ready(out)
    assert out.shape == (2, NUM_CLASSES) and out.dtype == jnp.float32
    assert bool(jnp.all(jnp.isfinite(out)))
    print("KERNEL_OK")
</pallas_src>

<mosaic_0001>
module attributes {stable_mosaic.version = 11 : i64} {
  func.func @_mm_bn_relu_kernel(%arg0: i32, %arg1: memref<512x147xbf16, #tpu.memory_space<vmem>>, %arg2: memref<147x16xbf16, #tpu.memory_space<vmem>>, %arg3: memref<1x16xf32, #tpu.memory_space<vmem>>, %arg4: memref<1x16xf32, #tpu.memory_space<vmem>>, %arg5: memref<512x16xf32, #tpu.memory_space<vmem>>) attributes {dimension_semantics = [#tpu.dimension_semantics<parallel>], iteration_bounds = array<i64: 1>, scalar_prefetch = 0 : i64, scratch_operands = 0 : i64, tpu.core_type = #tpu.core_type<tc>, window_params = [{transform_indices = @transform_0, window_bounds = array<i64: 512, 147>}, {pipeline_mode = #tpu.pipeline_mode<synchronous>, transform_indices = @transform_1, window_bounds = array<i64: 147, 16>}, {pipeline_mode = #tpu.pipeline_mode<synchronous>, transform_indices = @transform_2, window_bounds = array<i64: 1, 16>}, {pipeline_mode = #tpu.pipeline_mode<synchronous>, transform_indices = @transform_3, window_bounds = array<i64: 1, 16>}, {transform_indices = @transform_4, window_bounds = array<i64: 512, 16>}]} {
    %c0 = arith.constant 0 : index
    %c0_0 = arith.constant 0 : index
    %0 = vector.load %arg1[%c0, %c0_0] : memref<512x147xbf16, #tpu.memory_space<vmem>>, vector<512x147xbf16>
    %c0_1 = arith.constant 0 : index
    %c0_2 = arith.constant 0 : index
    %1 = vector.load %arg2[%c0_1, %c0_2] : memref<147x16xbf16, #tpu.memory_space<vmem>>, vector<147x16xbf16>
    %cst = arith.constant dense<0.000000e+00> : vector<512x16xf32>
    %2 = tpu.matmul %0, %1, %cst {dimension_numbers = #tpu.dot_dimension_numbers<[1], [0], [0], [1], [0, 0, 1, 1], [], []>} : vector<512x147xbf16>, vector<147x16xbf16>, vector<512x16xf32> -> vector<512x16xf32>
    %c0_3 = arith.constant 0 : index
    %c0_4 = arith.constant 0 : index
    %3 = vector.load %arg3[%c0_3, %c0_4] : memref<1x16xf32, #tpu.memory_space<vmem>>, vector<1x16xf32>
    %4 = vector.broadcast %3 : vector<1x16xf32> to vector<512x16xf32>
    %5 = arith.mulf %2, %4 : vector<512x16xf32>
    %c0_5 = arith.constant 0 : index
    %c0_6 = arith.constant 0 : index
    %6 = vector.load %arg4[%c0_5, %c0_6] : memref<1x16xf32, #tpu.memory_space<vmem>>, vector<1x16xf32>
    %7 = vector.broadcast %6 : vector<1x16xf32> to vector<512x16xf32>
    %8 = arith.addf %5, %7 : vector<512x16xf32>
    %cst_7 = arith.constant 0.000000e+00 : f32
    %9 = vector.broadcast %cst_7 : f32 to vector<512x16xf32>
    %10 = arith.maximumf %8, %9 : vector<512x16xf32>
    %c0_8 = arith.constant 0 : index
    %c0_9 = arith.constant 0 : index
    %11 = vector.load %arg5[%c0_8, %c0_9] : memref<512x16xf32, #tpu.memory_space<vmem>>, vector<512x16xf32>
    tpu.vector_store %arg5[%c0_8, %c0_9], %10 {strides = array<i32>} : memref<512x16xf32, #tpu.memory_space<vmem>>, vector<512x16xf32>,
    return
  }
  func.func @transform_0(%arg0: i32) -> (i32, i32) {
    %c0_i32 = arith.constant 0 : i32
    %c0_i32_0 = arith.constant 0 : i32
    return %arg0, %c0_i32 : i32, i32
  }
  func.func @transform_1(%arg0: i32) -> (i32, i32) {
    %c0_i32 = arith.constant 0 : i32
    %c0_i32_0 = arith.constant 0 : i32
    %c0_i32_1 = arith.constant 0 : i32
    return %c0_i32, %c0_i32_0 : i32, i32
  }
  func.func @transform_2(%arg0: i32) -> (i32, i32) {
    %c0_i32 = arith.constant 0 : i32
    %c0_i32_0 = arith.constant 0 : i32
    %c0_i32_1 = arith.constant 0 : i32
    return %c0_i32, %c0_i32_0 : i32, i32
  }
  func.func @transform_3(%arg0: i32) -> (i32, i32) {
    %c0_i32 = arith.constant 0 : i32
    %c0_i32_0 = arith.constant 0 : i32
    %c0_i32_1 = arith.constant 0 : i32
    return %c0_i32, %c0_i32_0 : i32, i32
  }
  func.func @transform_4(%arg0: i32) -> (i32, i32) {
    %c0_i32 = arith.constant 0 : i32
    %c0_i32_0 = arith.constant 0 : i32
    return %arg0, %c0_i32 : i32, i32
  }
}

module attributes {stable_mosaic.version = 11 : i64} {
  func.func @_bn_relu_mm_bn_relu_kernel(%arg0: i32, %arg1: memref<128x16xf32, #tpu.memory_space<vmem>>, %arg2: memref<1x16xf32, #tpu.memory_space<vmem>>, %arg3: memref<1x16xf32, #tpu.memory_space<vmem>>, %arg4: memref<16x16xbf16, #tpu.memory_space<vmem>>, %arg5: memref<1x16xf32, #tpu.memory_space<vmem>>, %arg6: memref<1x16xf32, #tpu.memory_space<vmem>>, %arg7: memref<128x16xbf16, #tpu.memory_space<vmem>>) attributes {dimension_semantics = [#tpu.dimension_semantics<parallel>], iteration_bounds = array<i64: 1>, scalar_prefetch = 0 : i64, scratch_operands = 0 : i64, tpu.core_type = #tpu.core_type<tc>, window_params = [{transform_indices = @transform_0, window_bounds = array<i64: 128, 16>}, {pipeline_mode = #tpu.pipeline_mode<synchronous>, transform_indices = @transform_1, window_bounds = array<i64: 1, 16>}, {pipeline_mode = #tpu.pipeline_mode<synchronous>, transform_indices = @transform_2, window_bounds = array<i64: 1, 16>}, {pipeline_mode = #tpu.pipeline_mode<synchronous>, transform_indices = @transform_3, window_bounds = array<i64: 16, 16>}, {pipeline_mode = #tpu.pipeline_mode<synchronous>, transform_indices = @transform_4, window_bounds = array<i64: 1, 16>}, {pipeline_mode = #tpu.pipeline_mode<synchronous>, transform_indices = @transform_5, window_bounds = array<i64: 1, 16>}, {transform_indices = @transform_6, window_bounds = array<i64: 128, 16>}]} {
    %c0 = arith.constant 0 : index
    %c0_0 = arith.constant 0 : index
    %0 = vector.load %arg1[%c0, %c0_0] : memref<128x16xf32, #tpu.memory_space<vmem>>, vector<128x16xf32>
    %c0_1 = arith.constant 0 : index
    %c0_2 = arith.constant 0 : index
    %1 = vector.load %arg2[%c0_1, %c0_2] : memref<1x16xf32, #tpu.memory_space<vmem>>, vector<1x16xf32>
    %2 = vector.broadcast %1 : vector<1x16xf32> to vector<128x16xf32>
    %3 = arith.mulf %0, %2 : vector<128x16xf32>
    %c0_3 = arith.constant 0 : index
    %c0_4 = arith.constant 0 : index
    %4 = vector.load %arg3[%c0_3, %c0_4] : memref<1x16xf32, #tpu.memory_space<vmem>>, vector<1x16xf32>
    %5 = vector.broadcast %4 : vector<1x16xf32> to vector<128x16xf32>
    %6 = arith.addf %3, %5 : vector<128x16xf32>
    %cst = arith.constant 0.000000e+00 : f32
    %7 = vector.broadcast %cst : f32 to vector<128x16xf32>
    %8 = arith.maximumf %6, %7 : vector<128x16xf32>
    %9 = arith.truncf %8 : vector<128x16xf32> to vector<128x16xbf16>
    %c0_5 = arith.constant 0 : index
    %c0_6 = arith.constant 0 : index
    %10 = vector.load %arg4[%c0_5, %c0_6] : memref<16x16xbf16, #tpu.memory_space<vmem>>, vector<16x16xbf16>
    %cst_7 = arith.constant dense<0.000000e+00> : vector<128x16xf32>
    %11 = tpu.matmul %9, %10, %cst_7 {dimension_numbers = #tpu.dot_dimension_numbers<[1], [0], [0], [1], [0, 0, 1, 1], [], []>} : vector<128x16xbf16>, vector<16x16xbf16>, vector<128x16xf32> -> vector<128x16xf32>
    %c0_8 = arith.constant 0 : index
    %c0_9 = arith.constant 0 : index
    %12 = vector.load %arg5[%c0_8, %c0_9] : memref<1x16xf32, #tpu.memory_space<vmem>>, vector<1x16xf32>
    %13 = vector.broadcast %12 : vector<1x16xf32> to vector<128x16xf32>
    %14 = arith.mulf %11, %13 : vector<128x16xf32>
    %c0_10 = arith.constant 0 : index
    %c0_11 = arith.constant 0 : index
    %15 = vector.load %arg6[%c0_10, %c0_11] : memref<1x16xf32, #tpu.memory_space<vmem>>, vector<1x16xf32>
    %16 = vector.broadcast %15 : vector<1x16xf32> to vector<128x16xf32>
    %17 = arith.addf %14, %16 : vector<128x16xf32>
    %cst_12 = arith.constant 0.000000e+00 : f32
    %18 = vector.broadcast %cst_12 : f32 to vector<128x16xf32>
    %19 = arith.maximumf %17, %18 : vector<128x16xf32>
    %20 = arith.truncf %19 : vector<128x16xf32> to vector<128x16xbf16>
    %c0_13 = arith.constant 0 : index
    %c0_14 = arith.constant 0 : index
    %21 = vector.load %arg7[%c0_13, %c0_14] : memref<128x16xbf16, #tpu.memory_space<vmem>>, vector<128x16xbf16>
    tpu.vector_store %arg7[%c0_13, %c0_14], %20 {strides = array<i32>} : memref<128x16xbf16, #tpu.memory_space<vmem>>, vector<128x16xbf16>,
    return
  }
  func.func @transform_0(%arg0: i32) -> (i32, i32) {
    %c0_i32 = arith.constant 0 : i32
    %c0_i32_0 = arith.constant 0 : i32
    return %arg0, %c0_i32 : i32, i32
  }
  func.func @transform_1(%arg0: i32) -> (i32, i32) {
    %c0_i32 = arith.constant 0 : i32
    %c0_i32_0 = arith.constant 0 : i32
    %c0_i32_1 = arith.constant 0 : i32
    return %c0_i32, %c0_i32_0 : i32, i32
  }
  func.func @transform_2(%arg0: i32) -> (i32, i32) {
    %c0_i32 = arith.constant 0 : i32
    %c0_i32_0 = arith.constant 0 : i32
    %c0_i32_1 = arith.constant 0 : i32
    return %c0_i32, %c0_i32_0 : i32, i32
  }
  func.func @transform_3(%arg0: i32) -> (i32, i32) {
    %c0_i32 = arith.constant 0 : i32
    %c0_i32_0 = arith.constant 0 : i32
    %c0_i32_1 = arith.constant 0 : i32
    return %c0_i32, %c0_i32_0 : i32, i32
  }
  func.func @transform_4(%arg0: i32) -> (i32, i32) {
    %c0_i32 = arith.constant 0 : i32
    %c0_i32_0 = arith.constant 0 : i32
    %c0_i32_1 = arith.constant 0 : i32
    return %c0_i32, %c0_i32_0 : i32, i32
  }
  func.func @transform_5(%arg0: i32) -> (i32, i32) {
    %c0_i32 = arith.constant 0 : i32
    %c0_i32_0 = arith.constant 0 : i32
    %c0_i32_1 = arith.constant 0 : i32
    return %c0_i32, %c0_i32_0 : i32, i32
  }
  func.func @transform_6(%arg0: i32) -> (i32, i32) {
    %c0_i32 = arith.constant 0 : i32
    %c0_i32_0 = arith.constant 0 : i32
    return %arg0, %c0_i32 : i32, i32
  }
}

module attributes {stable_mosaic.version = 11 : i64} {
  func.func @_maxpool9_kernel(%arg0: memref<2x9x9x16xf32, #tpu.memory_space<vmem>>, %arg1: memref<2x9x9x16xf32, #tpu.memory_space<vmem>>, %arg2: memref<2x9x9x16xf32, #tpu.memory_space<vmem>>, %arg3: memref<2x9x9x16xf32, #tpu.memory_space<vmem>>, %arg4: memref<2x8x8x16xf32, #tpu.memory_space<vmem>>) attributes {dimension_semantics = [], scalar_prefetch = 0 : i64, scratch_operands = 0 : i64, tpu.core_type = #tpu.core_type<tc>} {
    %c0 = arith.constant 0 : index
    %c0_0 = arith.constant 0 : index
    %c0_1 = arith.constant 0 : index
    %c0_2 = arith.constant 0 : index
    %0 = vector.load %arg0[%c0, %c0_0, %c0_1, %c0_2] : memref<2x9x9x16xf32, #tpu.memory_space<vmem>>, vector<2x9x9x16xf32>
    %c0_3 = arith.constant 0 : index
    %c0_4 = arith.constant 0 : index
    %c0_5 = arith.constant 0 : index
    %c0_6 = arith.constant 0 : index
    %1 = vector.load %arg1[%c0_3, %c0_4, %c0_5, %c0_6] : memref<2x9x9x16xf32, #tpu.memory_space<vmem>>, vector<2x9x9x16xf32>
    %c0_7 = arith.constant 0 : index
    %c0_8 = arith.constant 0 : index
    %c0_9 = arith.constant 0 : index
    %c0_10 = arith.constant 0 : index
    %2 = vector.load %arg2[%c0_7, %c0_8, %c0_9, %c0_10] : memref<2x9x9x16xf32, #tpu.memory_space<vmem>>, vector<2x9x9x16xf32>
    %c0_11 = arith.constant 0 : index
    %c0_12 = arith.constant 0 : index
    %c0_13 = arith.constant 0 : index
    %c0_14 = arith.constant 0 : index
    %3 = vector.load %arg3[%c0_11, %c0_12, %c0_13, %c0_14] : memref<2x9x9x16xf32, #tpu.memory_space<vmem>>, vector<2x9x9x16xf32>
    %4 = vector.extract_strided_slice %0 {offsets = [0, 0, 0, 0], sizes = [2, 8, 8, 16], strides = [1, 1, 1, 1]} : vector<2x9x9x16xf32> to vector<2x8x8x16xf32>
    %5 = vector.extract_strided_slice %0 {offsets = [0, 0, 1, 0], sizes = [2, 8, 8, 16], strides = [1, 1, 1, 1]} : vector<2x9x9x16xf32> to vector<2x8x8x16xf32>
    %6 = arith.maximumf %4, %5 : vector<2x8x8x16xf32>
    %7 = vector.extract_strided_slice %0 {offsets = [0, 1, 0, 0], sizes = [2, 8, 8, 16], strides = [1, 1, 1, 1]} : vector<2x9x9x16xf32> to vector<2x8x8x16xf32>
    %8 = arith.maximumf %6, %7 : vector<2x8x8x16xf32>
    %9 = vector.extract_strided_slice %0 {offsets = [0, 1, 1, 0], sizes = [2, 8, 8, 16], strides = [1, 1, 1, 1]} : vector<2x9x9x16xf32> to vector<2x8x8x16xf32>
    %10 = arith.maximumf %8, %9 : vector<2x8x8x16xf32>
    %11 = vector.extract_strided_slice %1 {offsets = [0, 0, 0, 0], sizes = [2, 8, 8, 16], strides = [1, 1, 1, 1]} : vector<2x9x9x16xf32> to vector<2x8x8x16xf32>
    %12 = arith.maximumf %10, %11 : vector<2x8x8x16xf32>
    %13 = vector.extract_strided_slice %1 {offsets = [0, 1, 0, 0], sizes = [2, 8, 8, 16], strides = [1, 1, 1, 1]} : vector<2x9x9x16xf32> to vector<2x8x8x16xf32>
    %14 = arith.maximumf %12, %13 : vector<2x8x8x16xf32>
    %15 = vector.extract_strided_slice %2 {offsets = [0, 0, 0, 0], sizes = [2, 8, 8, 16], strides = [1, 1, 1, 1]} : vector<2x9x9x16xf32> to vector<2x8x8x16xf32>
    %16 = arith.maximumf %14, %15 : vector<2x8x8x16xf32>
    %17 = vector.extract_strided_slice %2 {offsets = [0, 0, 1, 0], sizes = [2, 8, 8, 16], strides = [1, 1, 1, 1]} : vector<2x9x9x16xf32> to vector<2x8x8x16xf32>
    %18 = arith.maximumf %16, %17 : vector<2x8x8x16xf32>
    %19 = vector.extract_strided_slice %3 {offsets = [0, 0, 0, 0], sizes = [2, 8, 8, 16], strides = [1, 1, 1, 1]} : vector<2x9x9x16xf32> to vector<2x8x8x16xf32>
    %20 = arith.maximumf %18, %19 : vector<2x8x8x16xf32>
    %c0_15 = arith.constant 0 : index
    %c0_16 = arith.constant 0 : index
    %c0_17 = arith.constant 0 : index
    %c0_18 = arith.constant 0 : index
    %21 = vector.load %arg4[%c0_15, %c0_16, %c0_17, %c0_18] : memref<2x8x8x16xf32, #tpu.memory_space<vmem>>, vector<2x8x8x16xf32>
    tpu.vector_store %arg4[%c0_15, %c0_16, %c0_17, %c0_18], %20 {strides = array<i32>} : memref<2x8x8x16xf32, #tpu.memory_space<vmem>>, vector<2x8x8x16xf32>,
    return
  }
}

module attributes {stable_mosaic.version = 11 : i64} {
  func.func @_bn_relu_mm_bn_relu_kernel(%arg0: i32, %arg1: memref<128x24xf32, #tpu.memory_space<vmem>>, %arg2: memref<1x24xf32, #tpu.memory_space<vmem>>, %arg3: memref<1x24xf32, #tpu.memory_space<vmem>>, %arg4: memref<24x16xbf16, #tpu.memory_space<vmem>>, %arg5: memref<1x16xf32, #tpu.memory_space<vmem>>, %arg6: memref<1x16xf32, #tpu.memory_space<vmem>>, %arg7: memref<128x16xbf16, #tpu.memory_space<vmem>>) attributes {dimension_semantics = [#tpu.dimension_semantics<parallel>], iteration_bounds = array<i64: 1>, scalar_prefetch = 0 : i64, scratch_operands = 0 : i64, tpu.core_type = #tpu.core_type<tc>, window_params = [{transform_indices = @transform_0, window_bounds = array<i64: 128, 24>}, {pipeline_mode = #tpu.pipeline_mode<synchronous>, transform_indices = @transform_1, window_bounds = array<i64: 1, 24>}, {pipeline_mode = #tpu.pipeline_mode<synchronous>, transform_indices = @transform_2, window_bounds = array<i64: 1, 24>}, {pipeline_mode = #tpu.pipeline_mode<synchronous>, transform_indices = @transform_3, window_bounds = array<i64: 24, 16>}, {pipeline_mode = #tpu.pipeline_mode<synchronous>, transform_indices = @transform_4, window_bounds = array<i64: 1, 16>}, {pipeline_mode = #tpu.pipeline_mode<synchronous>, transform_indices = @transform_5, window_bounds = array<i64: 1, 16>}, {transform_indices = @transform_6, window_bounds = array<i64: 128, 16>}]} {
    %c0 = arith.constant 0 : index
    %c0_0 = arith.constant 0 : index
    %0 = vector.load %arg1[%c0, %c0_0] : memref<128x24xf32, #tpu.memory_space<vmem>>, vector<128x24xf32>
    %c0_1 = arith.constant 0 : index
    %c0_2 = arith.constant 0 : index
    %1 = vector.load %arg2[%c0_1, %c0_2] : memref<1x24xf32, #tpu.memory_space<vmem>>, vector<1x24xf32>
    %2 = vector.broadcast %1 : vector<1x24xf32> to vector<128x24xf32>
    %3 = arith.mulf %0, %2 : vector<128x24xf32>
    %c0_3 = arith.constant 0 : index
    %c0_4 = arith.constant 0 : index
    %4 = vector.load %arg3[%c0_3, %c0_4] : memref<1x24xf32, #tpu.memory_space<vmem>>, vector<1x24xf32>
    %5 = vector.broadcast %4 : vector<1x24xf32> to vector<128x24xf32>
    %6 = arith.addf %3, %5 : vector<128x24xf32>
    %cst = arith.constant 0.000000e+00 : f32
    %7 = vector.broadcast %cst : f32 to vector<128x24xf32>
    %8 = arith.maximumf %6, %7 : vector<128x24xf32>
    %9 = arith.truncf %8 : vector<128x24xf32> to vector<128x24xbf16>
    %c0_5 = arith.constant 0 : index
    %c0_6 = arith.constant 0 : index
    %10 = vector.load %arg4[%c0_5, %c0_6] : memref<24x16xbf16, #tpu.memory_space<vmem>>, vector<24x16xbf16>
    %cst_7 = arith.constant dense<0.000000e+00> : vector<128x16xf32>
    %11 = tpu.matmul %9, %10, %cst_7 {dimension_numbers = #tpu.dot_dimension_numbers<[1], [0], [0], [1], [0, 0, 1, 1], [], []>} : vector<128x24xbf16>, vector<24x16xbf16>, vector<128x16xf32> -> vector<128x16xf32>
    %c0_8 = arith.constant 0 : index
    %c0_9 = arith.constant 0 : index
    %12 = vector.load %arg5[%c0_8, %c0_9] : memref<1x16xf32, #tpu.memory_space<vmem>>, vector<1x16xf32>
    %13 = vector.broadcast %12 : vector<1x16xf32> to vector<128x16xf32>
    %14 = arith.mulf %11, %13 : vector<128x16xf32>
    %c0_10 = arith.constant 0 : index
    %c0_11 = arith.constant 0 : index
    %15 = vector.load %arg6[%c0_10, %c0_11] : memref<1x16xf32, #tpu.memory_space<vmem>>, vector<1x16xf32>
    %16 = vector.broadcast %15 : vector<1x16xf32> to vector<128x16xf32>
    %17 = arith.addf %14, %16 : vector<128x16xf32>
    %cst_12 = arith.constant 0.000000e+00 : f32
    %18 = vector.broadcast %cst_12 : f32 to vector<128x16xf32>
    %19 = arith.maximumf %17, %18 : vector<128x16xf32>
    %20 = arith.truncf %19 : vector<128x16xf32> to vector<128x16xbf16>
    %c0_13 = arith.constant 0 : index
    %c0_14 = arith.constant 0 : index
    %21 = vector.load %arg7[%c0_13, %c0_14] : memref<128x16xbf16, #tpu.memory_space<vmem>>, vector<128x16xbf16>
    tpu.vector_store %arg7[%c0_13, %c0_14], %20 {strides = array<i32>} : memref<128x16xbf16, #tpu.memory_space<vmem>>, vector<128x16xbf16>,
    return
  }
  func.func @transform_0(%arg0: i32) -> (i32, i32) {
    %c0_i32 = arith.constant 0 : i32
    %c0_i32_0 = arith.constant 0 : i32
    return %arg0, %c0_i32 : i32, i32
  }
  func.func @transform_1(%arg0: i32) -> (i32, i32) {
    %c0_i32 = arith.constant 0 : i32
    %c0_i32_0 = arith.constant 0 : i32
    %c0_i32_1 = arith.constant 0 : i32
    return %c0_i32, %c0_i32_0 : i32, i32
  }
  func.func @transform_2(%arg0: i32) -> (i32, i32) {
    %c0_i32 = arith.constant 0 : i32
    %c0_i32_0 = arith.constant 0 : i32
    %c0_i32_1 = arith.constant 0 : i32
    return %c0_i32, %c0_i32_0 : i32, i32
  }
  func.func @transform_3(%arg0: i32) -> (i32, i32) {
    %c0_i32 = arith.constant 0 : i32
    %c0_i32_0 = arith.constant 0 : i32
    %c0_i32_1 = arith.constant 0 : i32
    return %c0_i32, %c0_i32_0 : i32, i32
  }
  func.func @transform_4(%arg0: i32) -> (i32, i32) {
    %c0_i32 = arith.constant 0 : i32
    %c0_i32_0 = arith.constant 0 : i32
    %c0_i32_1 = arith.constant 0 : i32
    return %c0_i32, %c0_i32_0 : i32, i32
  }
  func.func @transform_5(%arg0: i32) -> (i32, i32) {
    %c0_i32 = arith.constant 0 : i32
    %c0_i32_0 = arith.constant 0 : i32
    %c0_i32_1 = arith.constant 0 : i32
    return %c0_i32, %c0_i32_0 : i32, i32
  }
  func.func @transform_6(%arg0: i32) -> (i32, i32) {
    %c0_i32 = arith.constant 0 : i32
    %c0_i32_0 = arith.constant 0 : i32
    return %arg0, %c0_i32 : i32, i32
  }
}

module attributes {stable_mosaic.version = 11 : i64} {
  func.func @_mm_kernel(%arg0: i32, %arg1: memref<128x144xbf16, #tpu.memory_space<vmem>>, %arg2: memref<144x8xbf16, #tpu.memory_space<vmem>>, %arg3: memref<128x8xf32, #tpu.memory_space<vmem>>) attributes {dimension_semantics = [#tpu.dimension_semantics<parallel>], iteration_bounds = array<i64: 1>, scalar_prefetch = 0 : i64, scratch_operands = 0 : i64, tpu.core_type = #tpu.core_type<tc>, window_params = [{transform_indices = @transform_0, window_bounds = array<i64: 128, 144>}, {pipeline_mode = #tpu.pipeline_mode<synchronous>, transform_indices = @transform_1, window_bounds = array<i64: 144, 8>}, {transform_indices = @transform_2, window_bounds = array<i64: 128, 8>}]} {
    %c0 = arith.constant 0 : index
    %c0_0 = arith.constant 0 : index
    %0 = vector.load %arg1[%c0, %c0_0] : memref<128x144xbf16, #tpu.memory_space<vmem>>, vector<128x144xbf16>
    %c0_1 = arith.constant 0 : index
    %c0_2 = arith.constant 0 : index
    %1 = vector.load %arg2[%c0_1, %c0_2] : memref<144x8xbf16, #tpu.memory_space<vmem>>, vector<144x8xbf16>
    %cst = arith.constant dense<0.000000e+00> : vector<128x8xf32>
    %2 = tpu.matmul %0, %1, %cst {dimension_numbers = #tpu.dot_dimension_numbers<[1], [0], [0], [1], [0, 0, 1, 1], [], []>} : vector<128x144xbf16>, vector<144x8xbf16>, vector<128x8xf32> -> vector<128x8xf32>
    %c0_3 = arith.constant 0 : index
    %c0_4 = arith.constant 0 : index
    %3 = vector.load %arg3[%c0_3, %c0_4] : memref<128x8xf32, #tpu.memory_space<vmem>>, vector<128x8xf32>
    tpu.vector_store %arg3[%c0_3, %c0_4], %2 {strides = array<i32>} : memref<128x8xf32, #tpu.memory_space<vmem>>, vector<128x8xf32>,
    return
  }
  func.func @transform_0(%arg0: i32) -> (i32, i32) {
    %c0_i32 = arith.constant 0 : i32
    %c0_i32_0 = arith.constant 0 : i32
    return %arg0, %c0_i32 : i32, i32
  }
  func.func @transform_1(%arg0: i32) -> (i32, i32) {
    %c0_i32 = arith.constant 0 : i32
    %c0_i32_0 = arith.constant 0 : i32
    %c0_i32_1 = arith.constant 0 : i32
    return %c0_i32, %c0_i32_0 : i32, i32
  }
  func.func @transform_2(%arg0: i32) -> (i32, i32) {
    %c0_i32 = arith.constant 0 : i32
    %c0_i32_0 = arith.constant 0 : i32
    return %arg0, %c0_i32 : i32, i32
  }
}

module attributes {stable_mosaic.version = 11 : i64} {
  func.func @_bn_relu_avgpool_kernel(%arg0: memref<2x4x4x32xf32, #tpu.memory_space<vmem>>, %arg1: memref<2x4x4x32xf32, #tpu.memory_space<vmem>>, %arg2: memref<2x4x4x32xf32, #tpu.memory_space<vmem>>, %arg3: memref<2x4x4x32xf32, #tpu.memory_space<vmem>>, %arg4: memref<1x1x1x32xf32, #tpu.memory_space<vmem>>, %arg5: memref<1x1x1x32xf32, #tpu.memory_space<vmem>>, %arg6: memref<2x4x4x32xbf16, #tpu.memory_space<vmem>>) attributes {dimension_semantics = [], scalar_prefetch = 0 : i64, scratch_operands = 0 : i64, tpu.core_type = #tpu.core_type<tc>} {
    %c0 = arith.constant 0 : index
    %c0_0 = arith.constant 0 : index
    %c0_1 = arith.constant 0 : index
    %c0_2 = arith.constant 0 : index
    %0 = vector.load %arg4[%c0, %c0_0, %c0_1, %c0_2] : memref<1x1x1x32xf32, #tpu.memory_space<vmem>>, vector<1x1x1x32xf32>
    %c0_3 = arith.constant 0 : index
    %c0_4 = arith.constant 0 : index
    %c0_5 = arith.constant 0 : index
    %c0_6 = arith.constant 0 : index
    %1 = vector.load %arg5[%c0_3, %c0_4, %c0_5, %c0_6] : memref<1x1x1x32xf32, #tpu.memory_space<vmem>>, vector<1x1x1x32xf32>
    %c0_7 = arith.constant 0 : index
    %c0_8 = arith.constant 0 : index
    %c0_9 = arith.constant 0 : index
    %c0_10 = arith.constant 0 : index
    %2 = vector.load %arg0[%c0_7, %c0_8, %c0_9, %c0_10] : memref<2x4x4x32xf32, #tpu.memory_space<vmem>>, vector<2x4x4x32xf32>
    %3 = vector.broadcast %0 : vector<1x1x1x32xf32> to vector<2x4x4x32xf32>
    %4 = arith.mulf %2, %3 : vector<2x4x4x32xf32>
    %5 = vector.broadcast %1 : vector<1x1x1x32xf32> to vector<2x4x4x32xf32>
    %6 = arith.addf %4, %5 : vector<2x4x4x32xf32>
    %cst = arith.constant 0.000000e+00 : f32
    %7 = vector.broadcast %cst : f32 to vector<2x4x4x32xf32>
    %8 = arith.maximumf %6, %7 : vector<2x4x4x32xf32>
    %c0_11 = arith.constant 0 : index
    %c0_12 = arith.constant 0 : index
    %c0_13 = arith.constant 0 : index
    %c0_14 = arith.constant 0 : index
    %9 = vector.load %arg1[%c0_11, %c0_12, %c0_13, %c0_14] : memref<2x4x4x32xf32, #tpu.memory_space<vmem>>, vector<2x4x4x32xf32>
    %10 = vector.broadcast %0 : vector<1x1x1x32xf32> to vector<2x4x4x32xf32>
    %11 = arith.mulf %9, %10 : vector<2x4x4x32xf32>
    %12 = vector.broadcast %1 : vector<1x1x1x32xf32> to vector<2x4x4x32xf32>
    %13 = arith.addf %11, %12 : vector<2x4x4x32xf32>
    %cst_15 = arith.constant 0.000000e+00 : f32
    %14 = vector.broadcast %cst_15 : f32 to vector<2x4x4x32xf32>
    %15 = arith.maximumf %13, %14 : vector<2x4x4x32xf32>
    %16 = arith.addf %8, %15 : vector<2x4x4x32xf32>
    %c0_16 = arith.constant 0 : index
    %c0_17 = arith.constant 0 : index
    %c0_18 = arith.constant 0 : index
    %c0_19 = arith.constant 0 : index
    %17 = vector.load %arg2[%c0_16, %c0_17, %c0_18, %c0_19] : memref<2x4x4x32xf32, #tpu.memory_space<vmem>>, vector<2x4x4x32xf32>
    %18 = vector.broadcast %0 : vector<1x1x1x32xf32> to vector<2x4x4x32xf32>
    %19 = arith.mulf %17, %18 : vector<2x4x4x32xf32>
    %20 = vector.broadcast %1 : vector<1x1x1x32xf32> to vector<2x4x4x32xf32>
    %21 = arith.addf %19, %20 : vector<2x4x4x32xf32>
    %cst_20 = arith.constant 0.000000e+00 : f32
    %22 = vector.broadcast %cst_20 : f32 to vector<2x4x4x32xf32>
    %23 = arith.maximumf %21, %22 : vector<2x4x4x32xf32>
    %24 = arith.addf %16, %23 : vector<2x4x4x32xf32>
    %c0_21 = arith.constant 0 : index
    %c0_22 = arith.constant 0 : index
    %c0_23 = arith.constant 0 : index
    %c0_24 = arith.constant 0 : index
    %25 = vector.load %arg3[%c0_21, %c0_22, %c0_23, %c0_24] : memref<2x4x4x32xf32, #tpu.memory_space<vmem>>, vector<2x4x4x32xf32>
    %26 = vector.broadcast %0 : vector<1x1x1x32xf32> to vector<2x4x4x32xf32>
    %27 = arith.mulf %25, %26 : vector<2x4x4x32xf32>
    %28 = vector.broadcast %1 : vector<1x1x1x32xf32> to vector<2x4x4x32xf32>
    %29 = arith.addf %27, %28 : vector<2x4x4x32xf32>
    %cst_25 = arith.constant 0.000000e+00 : f32
    %30 = vector.broadcast %cst_25 : f32 to vector<2x4x4x32xf32>
    %31 = arith.maximumf %29, %30 : vector<2x4x4x32xf32>
    %32 = arith.addf %24, %31 : vector<2x4x4x32xf32>
    %cst_26 = arith.constant 2.500000e-01 : f32
    %33 = vector.broadcast %cst_26 : f32 to vector<2x4x4x32xf32>
    %34 = arith.mulf %33, %32 : vector<2x4x4x32xf32>
    %35 = arith.truncf %34 : vector<2x4x4x32xf32> to vector<2x4x4x32xbf16>
    %c0_27 = arith.constant 0 : index
    %c0_28 = arith.constant 0 : index
    %c0_29 = arith.constant 0 : index
    %c0_30 = arith.constant 0 : index
    %36 = vector.load %arg6[%c0_27, %c0_28, %c0_29, %c0_30] : memref<2x4x4x32xbf16, #tpu.memory_space<vmem>>, vector<2x4x4x32xbf16>
    tpu.vector_store %arg6[%c0_27, %c0_28, %c0_29, %c0_30], %35 {strides = array<i32>} : memref<2x4x4x32xbf16, #tpu.memory_space<vmem>>, vector<2x4x4x32xbf16>,
    return
  }
}

module attributes {stable_mosaic.version = 11 : i64} {
  func.func @_mm_kernel(%arg0: i32, %arg1: memref<32x32xbf16, #tpu.memory_space<vmem>>, %arg2: memref<32x16xbf16, #tpu.memory_space<vmem>>, %arg3: memref<32x16xf32, #tpu.memory_space<vmem>>) attributes {dimension_semantics = [#tpu.dimension_semantics<parallel>], iteration_bounds = array<i64: 1>, scalar_prefetch = 0 : i64, scratch_operands = 0 : i64, tpu.core_type = #tpu.core_type<tc>, window_params = [{transform_indices = @transform_0, window_bounds = array<i64: 32, 32>}, {pipeline_mode = #tpu.pipeline_mode<synchronous>, transform_indices = @transform_1, window_bounds = array<i64: 32, 16>}, {transform_indices = @transform_2, window_bounds = array<i64: 32, 16>}]} {
    %c0 = arith.constant 0 : index
    %c0_0 = arith.constant 0 : index
    %0 = vector.load %arg1[%c0, %c0_0] : memref<32x32xbf16, #tpu.memory_space<vmem>>, vector<32x32xbf16>
    %c0_1 = arith.constant 0 : index
    %c0_2 = arith.constant 0 : index
    %1 = vector.load %arg2[%c0_1, %c0_2] : memref<32x16xbf16, #tpu.memory_space<vmem>>, vector<32x16xbf16>
    %cst = arith.constant dense<0.000000e+00> : vector<32x16xf32>
    %2 = tpu.matmul %0, %1, %cst {dimension_numbers = #tpu.dot_dimension_numbers<[1], [0], [0], [1], [0, 0, 1, 1], [], []>} : vector<32x32xbf16>, vector<32x16xbf16>, vector<32x16xf32> -> vector<32x16xf32>
    %c0_3 = arith.constant 0 : index
    %c0_4 = arith.constant 0 : index
    %3 = vector.load %arg3[%c0_3, %c0_4] : memref<32x16xf32, #tpu.memory_space<vmem>>, vector<32x16xf32>
    tpu.vector_store %arg3[%c0_3, %c0_4], %2 {strides = array<i32>} : memref<32x16xf32, #tpu.memory_space<vmem>>, vector<32x16xf32>,
    return
  }
  func.func @transform_0(%arg0: i32) -> (i32, i32) {
    %c0_i32 = arith.constant 0 : i32
    %c0_i32_0 = arith.constant 0 : i32
    return %arg0, %c0_i32 : i32, i32
  }
  func.func @transform_1(%arg0: i32) -> (i32, i32) {
    %c0_i32 = arith.constant 0 : i32
    %c0_i32_0 = arith.constant 0 : i32
    %c0_i32_1 = arith.constant 0 : i32
    return %c0_i32, %c0_i32_0 : i32, i32
  }
  func.func @transform_2(%arg0: i32) -> (i32, i32) {
    %c0_i32 = arith.constant 0 : i32
    %c0_i32_0 = arith.constant 0 : i32
    return %arg0, %c0_i32 : i32, i32
  }
}

module attributes {stable_mosaic.version = 11 : i64} {
  func.func @_bn_relu_mm_bn_relu_kernel(%arg0: i32, %arg1: memref<32x16xf32, #tpu.memory_space<vmem>>, %arg2: memref<1x16xf32, #tpu.memory_space<vmem>>, %arg3: memref<1x16xf32, #tpu.memory_space<vmem>>, %arg4: memref<16x16xbf16, #tpu.memory_space<vmem>>, %arg5: memref<1x16xf32, #tpu.memory_space<vmem>>, %arg6: memref<1x16xf32, #tpu.memory_space<vmem>>, %arg7: memref<32x16xbf16, #tpu.memory_space<vmem>>) attributes {dimension_semantics = [#tpu.dimension_semantics<parallel>], iteration_bounds = array<i64: 1>, scalar_prefetch = 0 : i64, scratch_operands = 0 : i64, tpu.core_type = #tpu.core_type<tc>, window_params = [{transform_indices = @transform_0, window_bounds = array<i64: 32, 16>}, {pipeline_mode = #tpu.pipeline_mode<synchronous>, transform_indices = @transform_1, window_bounds = array<i64: 1, 16>}, {pipeline_mode = #tpu.pipeline_mode<synchronous>, transform_indices = @transform_2, window_bounds = array<i64: 1, 16>}, {pipeline_mode = #tpu.pipeline_mode<synchronous>, transform_indices = @transform_3, window_bounds = array<i64: 16, 16>}, {pipeline_mode = #tpu.pipeline_mode<synchronous>, transform_indices = @transform_4, window_bounds = array<i64: 1, 16>}, {pipeline_mode = #tpu.pipeline_mode<synchronous>, transform_indices = @transform_5, window_bounds = array<i64: 1, 16>}, {transform_indices = @transform_6, window_bounds = array<i64: 32, 16>}]} {
    %c0 = arith.constant 0 : index
    %c0_0 = arith.constant 0 : index
    %0 = vector.load %arg1[%c0, %c0_0] : memref<32x16xf32, #tpu.memory_space<vmem>>, vector<32x16xf32>
    %c0_1 = arith.constant 0 : index
    %c0_2 = arith.constant 0 : index
    %1 = vector.load %arg2[%c0_1, %c0_2] : memref<1x16xf32, #tpu.memory_space<vmem>>, vector<1x16xf32>
    %2 = vector.broadcast %1 : vector<1x16xf32> to vector<32x16xf32>
    %3 = arith.mulf %0, %2 : vector<32x16xf32>
    %c0_3 = arith.constant 0 : index
    %c0_4 = arith.constant 0 : index
    %4 = vector.load %arg3[%c0_3, %c0_4] : memref<1x16xf32, #tpu.memory_space<vmem>>, vector<1x16xf32>
    %5 = vector.broadcast %4 : vector<1x16xf32> to vector<32x16xf32>
    %6 = arith.addf %3, %5 : vector<32x16xf32>
    %cst = arith.constant 0.000000e+00 : f32
    %7 = vector.broadcast %cst : f32 to vector<32x16xf32>
    %8 = arith.maximumf %6, %7 : vector<32x16xf32>
    %9 = arith.truncf %8 : vector<32x16xf32> to vector<32x16xbf16>
    %c0_5 = arith.constant 0 : index
    %c0_6 = arith.constant 0 : index
    %10 = vector.load %arg4[%c0_5, %c0_6] : memref<16x16xbf16, #tpu.memory_space<vmem>>, vector<16x16xbf16>
    %cst_7 = arith.constant dense<0.000000e+00> : vector<32x16xf32>
    %11 = tpu.matmul %9, %10, %cst_7 {dimension_numbers = #tpu.dot_dimension_numbers<[1], [0], [0], [1], [0, 0, 1, 1], [], []>} : vector<32x16xbf16>, vector<16x16xbf16>, vector<32x16xf32> -> vector<32x16xf32>
    %c0_8 = arith.constant 0 : index
    %c0_9 = arith.constant 0 : index
    %12 = vector.load %arg5[%c0_8, %c0_9] : memref<1x16xf32, #tpu.memory_space<vmem>>, vector<1x16xf32>
    %13 = vector.broadcast %12 : vector<1x16xf32> to vector<32x16xf32>
    %14 = arith.mulf %11, %13 : vector<32x16xf32>
    %c0_10 = arith.constant 0 : index
    %c0_11 = arith.constant 0 : index
    %15 = vector.load %arg6[%c0_10, %c0_11] : memref<1x16xf32, #tpu.memory_space<vmem>>, vector<1x16xf32>
    %16 = vector.broadcast %15 : vector<1x16xf32> to vector<32x16xf32>
    %17 = arith.addf %14, %16 : vector<32x16xf32>
    %cst_12 = arith.constant 0.000000e+00 : f32
    %18 = vector.broadcast %cst_12 : f32 to vector<32x16xf32>
    %19 = arith.maximumf %17, %18 : vector<32x16xf32>
    %20 = arith.truncf %19 : vector<32x16xf32> to vector<32x16xbf16>
    %c0_13 = arith.constant 0 : index
    %c0_14 = arith.constant 0 : index
    %21 = vector.load %arg7[%c0_13, %c0_14] : memref<32x16xbf16, #tpu.memory_space<vmem>>, vector<32x16xbf16>
    tpu.vector_store %arg7[%c0_13, %c0_14], %20 {strides = array<i32>} : memref<32x16xbf16, #tpu.memory_space<vmem>>, vector<32x16xbf16>,
    return
  }
  func.func @transform_0(%arg0: i32) -> (i32, i32) {
    %c0_i32 = arith.constant 0 : i32
    %c0_i32_0 = arith.constant 0 : i32
    return %arg0, %c0_i32 : i32, i32
  }
  func.func @transform_1(%arg0: i32) -> (i32, i32) {
    %c0_i32 = arith.constant 0 : i32
    %c0_i32_0 = arith.constant 0 : i32
    %c0_i32_1 = arith.constant 0 : i32
    return %c0_i32, %c0_i32_0 : i32, i32
  }
  func.func @transform_2(%arg0: i32) -> (i32, i32) {
    %c0_i32 = arith.constant 0 : i32
    %c0_i32_0 = arith.constant 0 : i32
    %c0_i32_1 = arith.constant 0 : i32
    return %c0_i32, %c0_i32_0 : i32, i32
  }
  func.func @transform_3(%arg0: i32) -> (i32, i32) {
    %c0_i32 = arith.constant 0 : i32
    %c0_i32_0 = arith.constant 0 : i32
    %c0_i32_1 = arith.constant 0 : i32
    return %c0_i32, %c0_i32_0 : i32, i32
  }
  func.func @transform_4(%arg0: i32) -> (i32, i32) {
    %c0_i32 = arith.constant 0 : i32
    %c0_i32_0 = arith.constant 0 : i32
    %c0_i32_1 = arith.constant 0 : i32
    return %c0_i32, %c0_i32_0 : i32, i32
  }
  func.func @transform_5(%arg0: i32) -> (i32, i32) {
    %c0_i32 = arith.constant 0 : i32
    %c0_i32_0 = arith.constant 0 : i32
    %c0_i32_1 = arith.constant 0 : i32
    return %c0_i32, %c0_i32_0 : i32, i32
  }
  func.func @transform_6(%arg0: i32) -> (i32, i32) {
    %c0_i32 = arith.constant 0 : i32
    %c0_i32_0 = arith.constant 0 : i32
    return %arg0, %c0_i32 : i32, i32
  }
}

module attributes {stable_mosaic.version = 11 : i64} {
  func.func @_mm_kernel(%arg0: i32, %arg1: memref<32x144xbf16, #tpu.memory_space<vmem>>, %arg2: memref<144x8xbf16, #tpu.memory_space<vmem>>, %arg3: memref<32x8xf32, #tpu.memory_space<vmem>>) attributes {dimension_semantics = [#tpu.dimension_semantics<parallel>], iteration_bounds = array<i64: 1>, scalar_prefetch = 0 : i64, scratch_operands = 0 : i64, tpu.core_type = #tpu.core_type<tc>, window_params = [{transform_indices = @transform_0, window_bounds = array<i64: 32, 144>}, {pipeline_mode = #tpu.pipeline_mode<synchronous>, transform_indices = @transform_1, window_bounds = array<i64: 144, 8>}, {transform_indices = @transform_2, window_bounds = array<i64: 32, 8>}]} {
    %c0 = arith.constant 0 : index
    %c0_0 = arith.constant 0 : index
    %0 = vector.load %arg1[%c0, %c0_0] : memref<32x144xbf16, #tpu.memory_space<vmem>>, vector<32x144xbf16>
    %c0_1 = arith.constant 0 : index
    %c0_2 = arith.constant 0 : index
    %1 = vector.load %arg2[%c0_1, %c0_2] : memref<144x8xbf16, #tpu.memory_space<vmem>>, vector<144x8xbf16>
    %cst = arith.constant dense<0.000000e+00> : vector<32x8xf32>
    %2 = tpu.matmul %0, %1, %cst {dimension_numbers = #tpu.dot_dimension_numbers<[1], [0], [0], [1], [0, 0, 1, 1], [], []>} : vector<32x144xbf16>, vector<144x8xbf16>, vector<32x8xf32> -> vector<32x8xf32>
    %c0_3 = arith.constant 0 : index
    %c0_4 = arith.constant 0 : index
    %3 = vector.load %arg3[%c0_3, %c0_4] : memref<32x8xf32, #tpu.memory_space<vmem>>, vector<32x8xf32>
    tpu.vector_store %arg3[%c0_3, %c0_4], %2 {strides = array<i32>} : memref<32x8xf32, #tpu.memory_space<vmem>>, vector<32x8xf32>,
    return
  }
  func.func @transform_0(%arg0: i32) -> (i32, i32) {
    %c0_i32 = arith.constant 0 : i32
    %c0_i32_0 = arith.constant 0 : i32
    return %arg0, %c0_i32 : i32, i32
  }
  func.func @transform_1(%arg0: i32) -> (i32, i32) {
    %c0_i32 = arith.constant 0 : i32
    %c0_i32_0 = arith.constant 0 : i32
    %c0_i32_1 = arith.constant 0 : i32
    return %c0_i32, %c0_i32_0 : i32, i32
  }
  func.func @transform_2(%arg0: i32) -> (i32, i32) {
    %c0_i32 = arith.constant 0 : i32
    %c0_i32_0 = arith.constant 0 : i32
    return %arg0, %c0_i32 : i32, i32
  }
}

module attributes {stable_mosaic.version = 11 : i64} {
  func.func @_bn_relu_mm_bn_relu_kernel(%arg0: i32, %arg1: memref<32x24xf32, #tpu.memory_space<vmem>>, %arg2: memref<1x24xf32, #tpu.memory_space<vmem>>, %arg3: memref<1x24xf32, #tpu.memory_space<vmem>>, %arg4: memref<24x16xbf16, #tpu.memory_space<vmem>>, %arg5: memref<1x16xf32, #tpu.memory_space<vmem>>, %arg6: memref<1x16xf32, #tpu.memory_space<vmem>>, %arg7: memref<32x16xbf16, #tpu.memory_space<vmem>>) attributes {dimension_semantics = [#tpu.dimension_semantics<parallel>], iteration_bounds = array<i64: 1>, scalar_prefetch = 0 : i64, scratch_operands = 0 : i64, tpu.core_type = #tpu.core_type<tc>, window_params = [{transform_indices = @transform_0, window_bounds = array<i64: 32, 24>}, {pipeline_mode = #tpu.pipeline_mode<synchronous>, transform_indices = @transform_1, window_bounds = array<i64: 1, 24>}, {pipeline_mode = #tpu.pipeline_mode<synchronous>, transform_indices = @transform_2, window_bounds = array<i64: 1, 24>}, {pipeline_mode = #tpu.pipeline_mode<synchronous>, transform_indices = @transform_3, window_bounds = array<i64: 24, 16>}, {pipeline_mode = #tpu.pipeline_mode<synchronous>, transform_indices = @transform_4, window_bounds = array<i64: 1, 16>}, {pipeline_mode = #tpu.pipeline_mode<synchronous>, transform_indices = @transform_5, window_bounds = array<i64: 1, 16>}, {transform_indices = @transform_6, window_bounds = array<i64: 32, 16>}]} {
    %c0 = arith.constant 0 : index
    %c0_0 = arith.constant 0 : index
    %0 = vector.load %arg1[%c0, %c0_0] : memref<32x24xf32, #tpu.memory_space<vmem>>, vector<32x24xf32>
    %c0_1 = arith.constant 0 : index
    %c0_2 = arith.constant 0 : index
    %1 = vector.load %arg2[%c0_1, %c0_2] : memref<1x24xf32, #tpu.memory_space<vmem>>, vector<1x24xf32>
    %2 = vector.broadcast %1 : vector<1x24xf32> to vector<32x24xf32>
    %3 = arith.mulf %0, %2 : vector<32x24xf32>
    %c0_3 = arith.constant 0 : index
    %c0_4 = arith.constant 0 : index
    %4 = vector.load %arg3[%c0_3, %c0_4] : memref<1x24xf32, #tpu.memory_space<vmem>>, vector<1x24xf32>
    %5 = vector.broadcast %4 : vector<1x24xf32> to vector<32x24xf32>
    %6 = arith.addf %3, %5 : vector<32x24xf32>
    %cst = arith.constant 0.000000e+00 : f32
    %7 = vector.broadcast %cst : f32 to vector<32x24xf32>
    %8 = arith.maximumf %6, %7 : vector<32x24xf32>
    %9 = arith.truncf %8 : vector<32x24xf32> to vector<32x24xbf16>
    %c0_5 = arith.constant 0 : index
    %c0_6 = arith.constant 0 : index
    %10 = vector.load %arg4[%c0_5, %c0_6] : memref<24x16xbf16, #tpu.memory_space<vmem>>, vector<24x16xbf16>
    %cst_7 = arith.constant dense<0.000000e+00> : vector<32x16xf32>
    %11 = tpu.matmul %9, %10, %cst_7 {dimension_numbers = #tpu.dot_dimension_numbers<[1], [0], [0], [1], [0, 0, 1, 1], [], []>} : vector<32x24xbf16>, vector<24x16xbf16>, vector<32x16xf32> -> vector<32x16xf32>
    %c0_8 = arith.constant 0 : index
    %c0_9 = arith.constant 0 : index
    %12 = vector.load %arg5[%c0_8, %c0_9] : memref<1x16xf32, #tpu.memory_space<vmem>>, vector<1x16xf32>
    %13 = vector.broadcast %12 : vector<1x16xf32> to vector<32x16xf32>
    %14 = arith.mulf %11, %13 : vector<32x16xf32>
    %c0_10 = arith.constant 0 : index
    %c0_11 = arith.constant 0 : index
    %15 = vector.load %arg6[%c0_10, %c0_11] : memref<1x16xf32, #tpu.memory_space<vmem>>, vector<1x16xf32>
    %16 = vector.broadcast %15 : vector<1x16xf32> to vector<32x16xf32>
    %17 = arith.addf %14, %16 : vector<32x16xf32>
    %cst_12 = arith.constant 0.000000e+00 : f32
    %18 = vector.broadcast %cst_12 : f32 to vector<32x16xf32>
    %19 = arith.maximumf %17, %18 : vector<32x16xf32>
    %20 = arith.truncf %19 : vector<32x16xf32> to vector<32x16xbf16>
    %c0_13 = arith.constant 0 : index
    %c0_14 = arith.constant 0 : index
    %21 = vector.load %arg7[%c0_13, %c0_14] : memref<32x16xbf16, #tpu.memory_space<vmem>>, vector<32x16xbf16>
    tpu.vector_store %arg7[%c0_13, %c0_14], %20 {strides = array<i32>} : memref<32x16xbf16, #tpu.memory_space<vmem>>, vector<32x16xbf16>,
    return
  }
  func.func @transform_0(%arg0: i32) -> (i32, i32) {
    %c0_i32 = arith.constant 0 : i32
    %c0_i32_0 = arith.constant 0 : i32
    return %arg0, %c0_i32 : i32, i32
  }
  func.func @transform_1(%arg0: i32) -> (i32, i32) {
    %c0_i32 = arith.constant 0 : i32
    %c0_i32_0 = arith.constant 0 : i32
    %c0_i32_1 = arith.constant 0 : i32
    return %c0_i32, %c0_i32_0 : i32, i32
  }
  func.func @transform_2(%arg0: i32) -> (i32, i32) {
    %c0_i32 = arith.constant 0 : i32
    %c0_i32_0 = arith.constant 0 : i32
    %c0_i32_1 = arith.constant 0 : i32
    return %c0_i32, %c0_i32_0 : i32, i32
  }
  func.func @transform_3(%arg0: i32) -> (i32, i32) {
    %c0_i32 = arith.constant 0 : i32
    %c0_i32_0 = arith.constant 0 : i32
    %c0_i32_1 = arith.constant 0 : i32
    return %c0_i32, %c0_i32_0 : i32, i32
  }
  func.func @transform_4(%arg0: i32) -> (i32, i32) {
    %c0_i32 = arith.constant 0 : i32
    %c0_i32_0 = arith.constant 0 : i32
    %c0_i32_1 = arith.constant 0 : i32
    return %c0_i32, %c0_i32_0 : i32, i32
  }
  func.func @transform_5(%arg0: i32) -> (i32, i32) {
    %c0_i32 = arith.constant 0 : i32
    %c0_i32_0 = arith.constant 0 : i32
    %c0_i32_1 = arith.constant 0 : i32
    return %c0_i32, %c0_i32_0 : i32, i32
  }
  func.func @transform_6(%arg0: i32) -> (i32, i32) {
    %c0_i32 = arith.constant 0 : i32
    %c0_i32_0 = arith.constant 0 : i32
    return %arg0, %c0_i32 : i32, i32
  }
}

module attributes {stable_mosaic.version = 11 : i64} {
  func.func @_bn_relu_gap_fc_kernel(%arg0: memref<2x16x32xf32, #tpu.memory_space<vmem>>, %arg1: memref<1x1x32xf32, #tpu.memory_space<vmem>>, %arg2: memref<1x1x32xf32, #tpu.memory_space<vmem>>, %arg3: memref<32x10xf32, #tpu.memory_space<vmem>>, %arg4: memref<1x10xf32, #tpu.memory_space<vmem>>, %arg5: memref<2x10xf32, #tpu.memory_space<vmem>>) attributes {dimension_semantics = [], scalar_prefetch = 0 : i64, scratch_operands = 0 : i64, tpu.core_type = #tpu.core_type<tc>} {
    %c0 = arith.constant 0 : index
    %c0_0 = arith.constant 0 : index
    %c0_1 = arith.constant 0 : index
    %0 = vector.load %arg0[%c0, %c0_0, %c0_1] : memref<2x16x32xf32, #tpu.memory_space<vmem>>, vector<2x16x32xf32>
    %c0_2 = arith.constant 0 : index
    %c0_3 = arith.constant 0 : index
    %c0_4 = arith.constant 0 : index
    %1 = vector.load %arg1[%c0_2, %c0_3, %c0_4] : memref<1x1x32xf32, #tpu.memory_space<vmem>>, vector<1x1x32xf32>
    %2 = vector.broadcast %1 : vector<1x1x32xf32> to vector<2x16x32xf32>
    %3 = arith.mulf %0, %2 : vector<2x16x32xf32>
    %c0_5 = arith.constant 0 : index
    %c0_6 = arith.constant 0 : index
    %c0_7 = arith.constant 0 : index
    %4 = vector.load %arg2[%c0_5, %c0_6, %c0_7] : memref<1x1x32xf32, #tpu.memory_space<vmem>>, vector<1x1x32xf32>
    %5 = vector.broadcast %4 : vector<1x1x32xf32> to vector<2x16x32xf32>
    %6 = arith.addf %3, %5 : vector<2x16x32xf32>
    %cst = arith.constant 0.000000e+00 : f32
    %7 = vector.broadcast %cst : f32 to vector<2x16x32xf32>
    %8 = arith.maximumf %6, %7 : vector<2x16x32xf32>
    %cst_8 = arith.constant dense<0.000000e+00> : vector<2x32xf32>
    %9 = vector.multi_reduction <add>, %8, %cst_8 [1] : vector<2x16x32xf32> to vector<2x32xf32>
    %cst_9 = arith.constant 1.600000e+01 : f32
    %10 = vector.broadcast %cst_9 : f32 to vector<2x32xf32>
    %11 = arith.divf %9, %10 : vector<2x32xf32>
    %c0_10 = arith.constant 0 : index
    %c0_11 = arith.constant 0 : index
    %12 = vector.load %arg3[%c0_10, %c0_11] : memref<32x10xf32, #tpu.memory_space<vmem>>, vector<32x10xf32>
    %cst_12 = arith.constant dense<0.000000e+00> : vector<2x10xf32>
    %13 = tpu.matmul %11, %12, %cst_12 {dimension_numbers = #tpu.dot_dimension_numbers<[1], [0], [0], [1], [0, 0, 1, 1], [], []>} : vector<2x32xf32>, vector<32x10xf32>, vector<2x10xf32> -> vector<2x10xf32>
    %c0_13 = arith.constant 0 : index
    %c0_14 = arith.constant 0 : index
    %14 = vector.load %arg4[%c0_13, %c0_14] : memref<1x10xf32, #tpu.memory_space<vmem>>, vector<1x10xf32>
    %15 = vector.broadcast %14 : vector<1x10xf32> to vector<2x10xf32>
    %16 = arith.addf %13, %15 : vector<2x10xf32>
    %c0_15 = arith.constant 0 : index
    %c0_16 = arith.constant 0 : index
    %17 = vector.load %arg5[%c0_15, %c0_16] : memref<2x10xf32, #tpu.memory_space<vmem>>, vector<2x10xf32>
    tpu.vector_store %arg5[%c0_15, %c0_16], %16 {strides = array<i32>} : memref<2x10xf32, #tpu.memory_space<vmem>>, vector<2x10xf32>,
    return
  }
}

</mosaic_0001>

<llo_original>
// kernel: densenet_forward.15
$region0: #{densenet_forward.15}
  #allocation0 [shape = 'u32[]', space=smem, size = 0x4, offset = 0x4, fixed_abs, tag = 'smem constant byte address 0x4 - core index']
  #allocation1 [shape = 'u32[144,128]{1,0:T(1,128)}', space=vmem, size = 0x12000, scoped, tag = 'internal scratch']
  %s0 = inlined_call_operand.vmem [shape: f32[128,16], index: 0, kind: input, shape index: {}]
  %s1 = inlined_call_operand.vmem [shape: f32[1,16], index: 1, kind: input, shape index: {}]
  %s2 = inlined_call_operand.vmem [shape: f32[1,16], index: 2, kind: input, shape index: {}]
  %s3 = inlined_call_operand.vmem [shape: bf16[16,16], index: 3, kind: input, shape index: {}]
  %s4 = inlined_call_operand.vmem [shape: f32[1,16], index: 4, kind: input, shape index: {}]
  %s5 = inlined_call_operand.vmem [shape: f32[1,16], index: 5, kind: input, shape index: {}]
  %s6 = inlined_call_operand.vmem [shape: bf16[128,16], index: 6, kind: output, shape index: {}]
  %s7 = sld [smem:[#allocation0]]
  $region34: #{densenet_forward.15} parent=0
    _
  %s9 = ssub.s32 1, %s7
  %s10 = scalar_select 0, %s9, %s7
  // Predicated region
  $region2: #{densenet_forward.15} parent=0 // pred_check
    _
  $region3: #{densenet_forward.15} parent=0 // pred_check_branch
    %12 = sbr.rel (0) target = $region5
  $region4: #{densenet_forward.15} parent=0 // pred_region
    _
  $region5: #{densenet_forward.15} parent=0 // pred_fallthru
    _
  // Predicated region
  $region6: #{densenet_forward.15} parent=0 // pred_check
    _
  $region7: #{densenet_forward.15} parent=0 // pred_check_branch
    %14 = sbr.rel (0) target = $region9
  $region8: #{densenet_forward.15} parent=0 // pred_region
    _
  $region9: #{densenet_forward.15} parent=0 // pred_fallthru
    _
  // Predicated region
  $region10: #{densenet_forward.15} parent=0 // pred_check
    _
  $region11: #{densenet_forward.15} parent=0 // pred_check_branch
    %16 = sbr.rel (0) target = $region13
  $region12: #{densenet_forward.15} parent=0 // pred_region
    _
  $region13: #{densenet_forward.15} parent=0 // pred_fallthru
    _
  // Predicated region
  $region14: #{densenet_forward.15} parent=0 // pred_check
    _
  $region15: #{densenet_forward.15} parent=0 // pred_check_branch
    %18 = sbr.rel (0) target = $region17
  $region16: #{densenet_forward.15} parent=0 // pred_region
    _
  $region17: #{densenet_forward.15} parent=0 // pred_fallthru
    _
  // Predicated region
  $region18: #{densenet_forward.15} parent=0 // pred_check
    _
  $region19: #{densenet_forward.15} parent=0 // pred_check_branch
    %20 = sbr.rel (0) target = $region21
  $region20: #{densenet_forward.15} parent=0 // pred_region
    _
  $region21: #{densenet_forward.15} parent=0 // pred_fallthru
    _
  // Predicated region
  $region22: #{densenet_forward.15} parent=0 // pred_check
    _
  $region23: #{densenet_forward.15} parent=0 // pred_check_branch
    %22 = sbr.rel (0) target = $region25
  $region24: #{densenet_forward.15} parent=0 // pred_region
    _
  $region25: #{densenet_forward.15} parent=0 // pred_fallthru
    _
  %v24 = vld [vmem:[%s0] sm:$0xff]
  %v25 = vld [vmem:[%s0 + $0x8] sm:$0xff]
  %v26 = vld [vmem:[%s0 + $0x10] sm:$0xff]
  %v27 = vld [vmem:[%s0 + $0x18] sm:$0xff]
  %v28 = vld [vmem:[%s0 + $0x20] sm:$0xff]
  %v29 = vld [vmem:[%s0 + $0x28] sm:$0xff]
  %v30 = vld [vmem:[%s0 + $0x30] sm:$0xff]
  %v31 = vld [vmem:[%s0 + $0x38] sm:$0xff]
  %v32 = vld [vmem:[%s0 + $0x40] sm:$0xff]
  %v33 = vld [vmem:[%s0 + $0x48] sm:$0xff]
  %v34 = vld [vmem:[%s0 + $0x50] sm:$0xff]
  %v35 = vld [vmem:[%s0 + $0x58] sm:$0xff]
  %v36 = vld [vmem:[%s0 + $0x60] sm:$0xff]
  %v37 = vld [vmem:[%s0 + $0x68] sm:$0xff]
  %v38 = vld [vmem:[%s0 + $0x70] sm:$0xff]
  %v39 = vld [vmem:[%s0 + $0x78] sm:$0xff]
  %v40 = vld [vmem:[%s1] sm:$0x1]
  %v42 = vlaneseq
  %v43 = vshrl.u32 %v42, 7
  %v44 = vsub.s32 0, %v43
  %v45 = vrot.slane %v40, %v44
  %v47 = vmul.f32 %v24, %v45
  %v48 = vmul.f32 %v25, %v45
  %v49 = vmul.f32 %v26, %v45
  %v50 = vmul.f32 %v27, %v45
  %v51 = vmul.f32 %v28, %v45
  %v52 = vmul.f32 %v29, %v45
  %v53 = vmul.f32 %v30, %v45
  %v54 = vmul.f32 %v31, %v45
  %v55 = vmul.f32 %v32, %v45
  %v56 = vmul.f32 %v33, %v45
  %v57 = vmul.f32 %v34, %v45
  %v58 = vmul.f32 %v35, %v45
  %v59 = vmul.f32 %v36, %v45
  %v60 = vmul.f32 %v37, %v45
  %v61 = vmul.f32 %v38, %v45
  %v62 = vmul.f32 %v39, %v45
  %v63 = vld [vmem:[%s2] sm:$0x1]
  %v65 = vlaneseq
  %v66 = vshrl.u32 %v65, 7
  %v67 = vsub.s32 0, %v66
  %v68 = vrot.slane %v63, %v67
  %v70 = vadd.f32 %v47, %v68
  %v71 = vadd.f32 %v48, %v68
  %v72 = vadd.f32 %v49, %v68
  %v73 = vadd.f32 %v50, %v68
  %v74 = vadd.f32 %v51, %v68
  %v75 = vadd.f32 %v52, %v68
  %v76 = vadd.f32 %v53, %v68
  %v77 = vadd.f32 %v54, %v68
  %v78 = vadd.f32 %v55, %v68
  %v79 = vadd.f32 %v56, %v68
  %v80 = vadd.f32 %v57, %v68
  %v81 = vadd.f32 %v58, %v68
  %v82 = vadd.f32 %v59, %v68
  %v83 = vadd.f32 %v60, %v68
  %v84 = vadd.f32 %v61, %v68
  %v85 = vadd.f32 %v62, %v68
  %v86 = vmax.f32 %v70, 0.0
  %v87 = vmax.f32 %v71, 0.0
  %v88 = vmax.f32 %v72, 0.0
  %v89 = vmax.f32 %v73, 0.0
  %v90 = vmax.f32 %v74, 0.0
  %v91 = vmax.f32 %v75, 0.0
  %v92 = vmax.f32 %v76, 0.0
  %v93 = vmax.f32 %v77, 0.0
  %v94 = vmax.f32 %v78, 0.0
  %v95 = vmax.f32 %v79, 0.0
  %v96 = vmax.f32 %v80, 0.0
  %v97 = vmax.f32 %v81, 0.0
  %v98 = vmax.f32 %v82, 0.0
  %v99 = vmax.f32 %v83, 0.0
  %v100 = vmax.f32 %v84, 0.0
  %v101 = vmax.f32 %v85, 0.0
  %v102 = vpack.c.bf16 %v87, %v86
  %v103 = vpack.c.bf16 %v89, %v88
  %v104 = vpack.c.bf16 %v91, %v90
  %v105 = vpack.c.bf16 %v93, %v92
  %v106 = vpack.c.bf16 %v95, %v94
  %v107 = vpack.c.bf16 %v97, %v96
  %v108 = vpack.c.bf16 %v99, %v98
  %v109 = vpack.c.bf16 %v101, %v100
  %v110 = vld [vmem:[%s3] sm:$0xf]
  %v111 = vld [vmem:[%s3 + $0x4] sm:$0xf]
  %v114 = vunpack.c.l.b16 %v110
  %v115 = vunpack.c.l.b16 %v111
  %v116 = vpack.c.b16 %v115, %v114
  %vm118 = vcmask 130048
  %v120 = vsel %vm118, %v102, 0
  %v123 = vsel %vm118, %v103, 0
  %v126 = vsel %vm118, %v104, 0
  %v129 = vsel %vm118, %v105, 0
  %v132 = vsel %vm118, %v106, 0
  %v135 = vsel %vm118, %v107, 0
  %v138 = vsel %vm118, %v108, 0
  %v141 = vsel %vm118, %v109, 0
  %143 = vmatprep.subr.bf16.mxu0 0
  %144 = vmatpush1.bf16.msra.mxu0 %v116
  %145 = vmatprep.subr.bf16.mxu0 0
  %146 = vmatpush1.bf16.msra.mxu0 0
  %147 = vmatprep.subr.bf16.mxu0 0
  %148 = vmatpush1.bf16.msra.mxu0 0
  %149 = vmatprep.subr.bf16.mxu0 0
  %150 = vmatpush1.bf16.msra.mxu0 0
  %151 = vmatprep.subr.bf16.mxu0 0
  %152 = vmatpush1.bf16.msra.mxu0 0
  %153 = vmatprep.subr.bf16.mxu0 0
  %154 = vmatpush1.bf16.msra.mxu0 0
  %155 = vmatprep.subr.bf16.mxu0 0
  %156 = vmatpush1.bf16.msra.mxu0 0
  %157 = vmatprep.subr.bf16.mxu0 0
  %158 = vmatpush1.bf16.msra.mxu0 0
  %159 = vmatprep.subr.bf16.mxu0 0
  %160 = vmatpush1.bf16.msra.mxu0 0
  %161 = vmatprep.subr.bf16.mxu0 0
  %162 = vmatpush1.bf16.msra.mxu0 0
  %163 = vmatprep.subr.bf16.mxu0 0
  %164 = vmatpush1.bf16.msra.mxu0 0
  %165 = vmatprep.subr.bf16.mxu0 0
  %166 = vmatpush1.bf16.msra.mxu0 0
  %167 = vmatprep.subr.bf16.mxu0 0
  %168 = vmatpush1.bf16.msra.mxu0 0
  %169 = vmatprep.subr.bf16.mxu0 0
  %170 = vmatpush1.bf16.msra.mxu0 0
  %171 = vmatprep.subr.bf16.mxu0 0
  %172 = vmatpush1.bf16.msra.mxu0 0
  %173 = vmatprep.subr.bf16.mxu0 0
  %174 = vmatpush1.bf16.msra.mxu0 0
  %175 = vmatprep.mubr.bf16.mxu0 0
  %176 = vmatmul.mubr.bf16.gmra.mrb[0].mxu0 %v120
  %v177 = vpop.f32.mrb[0].mxu0
  %v178 = vadd.f32 0.0, %v177
  %v179 = vpop.f32.mrb[0].mxu0
  %v180 = vpop.f32.mrb[0].mxu0
  %v181 = vadd.f32 0.0, %v180
  %v182 = vpop.f32.mrb[0].mxu0
  %183 = vmatprep.mubr.bf16.mxu0 0
  %184 = vmatmul.mubr.bf16.gmra.mrb[0].mxu0 %v123
  %v185 = vpop.f32.mrb[0].mxu0
  %v186 = vadd.f32 0.0, %v185
  %v187 = vpop.f32.mrb[0].mxu0
  %v188 = vpop.f32.mrb[0].mxu0
  %v189 = vadd.f32 0.0, %v188
  %v190 = vpop.f32.mrb[0].mxu0
  %191 = vmatprep.mubr.bf16.mxu0 0
  %192 = vmatmul.mubr.bf16.gmra.mrb[0].mxu0 %v126
  %v193 = vpop.f32.mrb[0].mxu0
  %v194 = vadd.f32 0.0, %v193
  %v195 = vpop.f32.mrb[0].mxu0
  %v196 = vpop.f32.mrb[0].mxu0
  %v197 = vadd.f32 0.0, %v196
  %v198 = vpop.f32.mrb[0].mxu0
  %199 = vmatprep.mubr.bf16.mxu0 0
  %200 = vmatmul.mubr.bf16.gmra.mrb[0].mxu0 %v129
  %v201 = vpop.f32.mrb[0].mxu0
  %v202 = vadd.f32 0.0, %v201
  %v203 = vpop.f32.mrb[0].mxu0
  %v204 = vpop.f32.mrb[0].mxu0
  %v205 = vadd.f32 0.0, %v204
  %v206 = vpop.f32.mrb[0].mxu0
  %207 = vmatprep.mubr.bf16.mxu0 0
  %208 = vmatmul.mubr.bf16.gmra.mrb[0].mxu0 %v132
  %v209 = vpop.f32.mrb[0].mxu0
  %v210 = vadd.f32 0.0, %v209
  %v211 = vpop.f32.mrb[0].mxu0
  %v212 = vpop.f32.mrb[0].mxu0
  %v213 = vadd.f32 0.0, %v212
  %v214 = vpop.f32.mrb[0].mxu0
  %215 = vmatprep.mubr.bf16.mxu0 0
  %216 = vmatmul.mubr.bf16.gmra.mrb[0].mxu0 %v135
  %v217 = vpop.f32.mrb[0].mxu0
  %v218 = vadd.f32 0.0, %v217
  %v219 = vpop.f32.mrb[0].mxu0
  %v220 = vpop.f32.mrb[0].mxu0
  %v221 = vadd.f32 0.0, %v220
  %v222 = vpop.f32.mrb[0].mxu0
  %223 = vmatprep.mubr.bf16.mxu0 0
  %224 = vmatmul.mubr.bf16.gmra.mrb[0].mxu0 %v138
  %v225 = vpop.f32.mrb[0].mxu0
  %v226 = vadd.f32 0.0, %v225
  %v227 = vpop.f32.mrb[0].mxu0
  %v228 = vpop.f32.mrb[0].mxu0
  %v229 = vadd.f32 0.0, %v228
  %v230 = vpop.f32.mrb[0].mxu0
  %231 = vmatprep.mubr.bf16.mxu0 0
  %232 = vmatmul.mubr.bf16.gmra.mrb[0].mxu0 %v141
  %v233 = vpop.f32.mrb[0].mxu0
  %v234 = vadd.f32 0.0, %v233
  %v235 = vpop.f32.mrb[0].mxu0
  %v236 = vpop.f32.mrb[0].mxu0
  %v237 = vadd.f32 0.0, %v236
  %v238 = vpop.f32.mrb[0].mxu0
  %239 = vdwg.mxu0
  %v240 = vld [vmem:[%s4] sm:$0x1]
  %v242 = vlaneseq
  %v243 = vshrl.u32 %v242, 7
  %v244 = vsub.s32 0, %v243
  %v245 = vrot.slane %v240, %v244
  %v247 = vmul.f32 %v178, %v245
  %v248 = vmul.f32 %v181, %v245
  %v249 = vmul.f32 %v186, %v245
  %v250 = vmul.f32 %v189, %v245
  %v251 = vmul.f32 %v194, %v245
  %v252 = vmul.f32 %v197, %v245
  %v253 = vmul.f32 %v202, %v245
  %v254 = vmul.f32 %v205, %v245
  %v255 = vmul.f32 %v210, %v245
  %v256 = vmul.f32 %v213, %v245
  %v257 = vmul.f32 %v218, %v245
  %v258 = vmul.f32 %v221, %v245
  %v259 = vmul.f32 %v226, %v245
  %v260 = vmul.f32 %v229, %v245
  %v261 = vmul.f32 %v234, %v245
  %v262 = vmul.f32 %v237, %v245
  %v263 = vld [vmem:[%s5] sm:$0x1]
  %v265 = vlaneseq
  %v266 = vshrl.u32 %v265, 7
  %v267 = vsub.s32 0, %v266
  %v268 = vrot.slane %v263, %v267
  %v270 = vadd.f32 %v247, %v268
  %v271 = vadd.f32 %v248, %v268
  %v272 = vadd.f32 %v249, %v268
  %v273 = vadd.f32 %v250, %v268
  %v274 = vadd.f32 %v251, %v268
  %v275 = vadd.f32 %v252, %v268
  %v276 = vadd.f32 %v253, %v268
  %v277 = vadd.f32 %v254, %v268
  %v278 = vadd.f32 %v255, %v268
  %v279 = vadd.f32 %v256, %v268
  %v280 = vadd.f32 %v257, %v268
  %v281 = vadd.f32 %v258, %v268
  %v282 = vadd.f32 %v259, %v268
  %v283 = vadd.f32 %v260, %v268
  %v284 = vadd.f32 %v261, %v268
  %v285 = vadd.f32 %v262, %v268
  %v286 = vmax.f32 %v270, 0.0
  %v287 = vmax.f32 %v271, 0.0
  %v288 = vmax.f32 %v272, 0.0
  %v289 = vmax.f32 %v273, 0.0
  %v290 = vmax.f32 %v274, 0.0
  %v291 = vmax.f32 %v275, 0.0
  %v292 = vmax.f32 %v276, 0.0
  %v293 = vmax.f32 %v277, 0.0
  %v294 = vmax.f32 %v278, 0.0
  %v295 = vmax.f32 %v279, 0.0
  %v296 = vmax.f32 %v280, 0.0
  %v297 = vmax.f32 %v281, 0.0
  %v298 = vmax.f32 %v282, 0.0
  %v299 = vmax.f32 %v283, 0.0
  %v300 = vmax.f32 %v284, 0.0
  %v301 = vmax.f32 %v285, 0.0
  %v302 = vpack.c.bf16 %v287, %v286
  %v303 = vpack.c.bf16 %v289, %v288
  %v304 = vpack.c.bf16 %v291, %v290
  %v305 = vpack.c.bf16 %v293, %v292
  %v306 = vpack.c.bf16 %v295, %v294
  %v307 = vpack.c.bf16 %v297, %v296
  %v308 = vpack.c.bf16 %v299, %v298
  %v309 = vpack.c.bf16 %v301, %v300
  %v318 = vunpack.c.l.b16 %v302
  %v319 = vunpack.c.h.b16 %v302
  %v320 = vunpack.c.l.b16 %v303
  %v321 = vunpack.c.h.b16 %v303
  %v322 = vunpack.c.l.b16 %v304
  %v323 = vunpack.c.h.b16 %v304
  %v324 = vunpack.c.l.b16 %v305
  %v325 = vunpack.c.h.b16 %v305
  %v326 = vunpack.c.l.b16 %v306
  %v327 = vunpack.c.h.b16 %v306
  %v328 = vunpack.c.l.b16 %v307
  %v329 = vunpack.c.h.b16 %v307
  %v330 = vunpack.c.l.b16 %v308
  %v331 = vunpack.c.h.b16 %v308
  %v332 = vunpack.c.l.b16 %v309
  %v333 = vunpack.c.h.b16 %v309
  %v334 = vpack.c.b16 %v318, %v318
  %v335 = vpack.c.b16 %v319, %v319
  %v336 = vpack.c.b16 %v320, %v320
  %v337 = vpack.c.b16 %v321, %v321
  %v338 = vpack.c.b16 %v322, %v322
  %v339 = vpack.c.b16 %v323, %v323
  %v340 = vpack.c.b16 %v324, %v324
  %v341 = vpack.c.b16 %v325, %v325
  %v342 = vpack.c.b16 %v326, %v326
  %v343 = vpack.c.b16 %v327, %v327
  %v344 = vpack.c.b16 %v328, %v328
  %v345 = vpack.c.b16 %v329, %v329
  %v346 = vpack.c.b16 %v330, %v330
  %v347 = vpack.c.b16 %v331, %v331
  %v348 = vpack.c.b16 %v332, %v332
  %v349 = vpack.c.b16 %v333, %v333
  %vm366 = vcmask 125952
  %367 = vst.msk [vmem:[%s6] sm:$0xf] %vm366, %v334
  %368 = vst.msk [vmem:[%s6 + $0x4] sm:$0xf] %vm366, %v335
  %369 = vst.msk [vmem:[%s6 + $0x8] sm:$0xf] %vm366, %v336
  %370 = vst.msk [vmem:[%s6 + $0xc] sm:$0xf] %vm366, %v337
  %371 = vst.msk [vmem:[%s6 + $0x10] sm:$0xf] %vm366, %v338
  %372 = vst.msk [vmem:[%s6 + $0x14] sm:$0xf] %vm366, %v339
  %373 = vst.msk [vmem:[%s6 + $0x18] sm:$0xf] %vm366, %v340
  %374 = vst.msk [vmem:[%s6 + $0x1c] sm:$0xf] %vm366, %v341
  %375 = vst.msk [vmem:[%s6 + $0x20] sm:$0xf] %vm366, %v342
  %376 = vst.msk [vmem:[%s6 + $0x24] sm:$0xf] %vm366, %v343
  %377 = vst.msk [vmem:[%s6 + $0x28] sm:$0xf] %vm366, %v344
  %378 = vst.msk [vmem:[%s6 + $0x2c] sm:$0xf] %vm366, %v345
  %379 = vst.msk [vmem:[%s6 + $0x30] sm:$0xf] %vm366, %v346
  %380 = vst.msk [vmem:[%s6 + $0x34] sm:$0xf] %vm366, %v347
  %381 = vst.msk [vmem:[%s6 + $0x38] sm:$0xf] %vm366, %v348
  %382 = vst.msk [vmem:[%s6 + $0x3c] sm:$0xf] %vm366, %v349
  // Predicated region
  $region26: #{densenet_forward.15} parent=0 // pred_check
    _
  $region27: #{densenet_forward.15} parent=0 // pred_check_branch
    %384 = sbr.rel (0) target = $region29
  $region28: #{densenet_forward.15} parent=0 // pred_region
    _
  $region29: #{densenet_forward.15} parent=0 // pred_fallthru
    _
  // Predicated region
  $region30: #{densenet_forward.15} parent=0 // pred_check
    _
  $region31: #{densenet_forward.15} parent=0 // pred_check_branch
    %386 = sbr.rel (0) target = $region33
  $region32: #{densenet_forward.15} parent=0 // pred_region
    _
  $region33: #{densenet_forward.15} parent=0 // pred_fallthru
    _

// kernel: densenet_forward.14
$region0: #{densenet_forward.14}
  #allocation0 [shape = 'u32[]', space=smem, size = 0x4, offset = 0x4, fixed_abs, tag = 'smem constant byte address 0x4 - core index']
  #allocation1 [shape = 'u32[144,128]{1,0:T(1,128)}', space=vmem, size = 0x12000, scoped, tag = 'internal scratch']
  %s0 = inlined_call_operand.vmem [shape: f32[2,9,9,16], index: 0, kind: input, shape index: {}]
  %s1 = inlined_call_operand.vmem [shape: f32[2,9,9,16], index: 1, kind: input, shape index: {}]
  %s2 = inlined_call_operand.vmem [shape: f32[2,9,9,16], index: 2, kind: input, shape index: {}]
  %s3 = inlined_call_operand.vmem [shape: f32[2,9,9,16], index: 3, kind: input, shape index: {}]
  %s4 = inlined_call_operand.vmem [shape: f32[2,8,8,16], index: 4, kind: output, shape index: {}]
  %s5 = sld [smem:[#allocation0]]
  $region26: #{densenet_forward.14} parent=0
    _
  %s7 = ssub.s32 1, %s5
  %s8 = scalar_select 0, %s7, %s5
  // Predicated region
  $region2: #{densenet_forward.14} parent=0 // pred_check
    _
  $region3: #{densenet_forward.14} parent=0 // pred_check_branch
    %10 = sbr.rel (0) target = $region5
  $region4: #{densenet_forward.14} parent=0 // pred_region
    _
  $region5: #{densenet_forward.14} parent=0 // pred_fallthru
    _
  // Predicated region
  $region6: #{densenet_forward.14} parent=0 // pred_check
    _
  $region7: #{densenet_forward.14} parent=0 // pred_check_branch
    %12 = sbr.rel (0) target = $region9
  $region8: #{densenet_forward.14} parent=0 // pred_region
    _
  $region9: #{densenet_forward.14} parent=0 // pred_fallthru
    _
  // Predicated region
  $region10: #{densenet_forward.14} parent=0 // pred_check
    _
  $region11: #{densenet_forward.14} parent=0 // pred_check_branch
    %14 = sbr.rel (0) target = $region13
  $region12: #{densenet_forward.14} parent=0 // pred_region
    _
  $region13: #{densenet_forward.14} parent=0 // pred_fallthru
    _
  // Predicated region
  $region14: #{densenet_forward.14} parent=0 // pred_check
    _
  $region15: #{densenet_forward.14} parent=0 // pred_check_branch
    %16 = sbr.rel (0) target = $region17
  $region16: #{densenet_forward.14} parent=0 // pred_region
    _
  $region17: #{densenet_forward.14} parent=0 // pred_fallthru
    _
  %v17 = vld [vmem:[%s0] sm:$0xff]
  %v18 = vld [vmem:[%s0 + $0x8] sm:$0x1]
  %v19 = vld [vmem:[%s0 + $0x10] sm:$0xff]
  %v20 = vld [vmem:[%s0 + $0x18] sm:$0x1]
  %v21 = vld [vmem:[%s0 + $0x20] sm:$0xff]
  %v22 = vld [vmem:[%s0 + $0x28] sm:$0x1]
  %v23 = vld [vmem:[%s0 + $0x30] sm:$0xff]
  %v24 = vld [vmem:[%s0 + $0x38] sm:$0x1]
  %v25 = vld [vmem:[%s0 + $0x40] sm:$0xff]
  %v26 = vld [vmem:[%s0 + $0x48] sm:$0x1]
  %v27 = vld [vmem:[%s0 + $0x50] sm:$0xff]
  %v28 = vld [vmem:[%s0 + $0x58] sm:$0x1]
  %v29 = vld [vmem:[%s0 + $0x60] sm:$0xff]
  %v30 = vld [vmem:[%s0 + $0x68] sm:$0x1]
  %v31 = vld [vmem:[%s0 + $0x70] sm:$0xff]
  %v32 = vld [vmem:[%s0 + $0x78] sm:$0x1]
  %v33 = vld [vmem:[%s0 + $0x80] sm:$0xff]
  %v34 = vld [vmem:[%s0 + $0x88] sm:$0x1]
  %v35 = vld [vmem:[%s0 + $0x90] sm:$0xff]
  %v36 = vld [vmem:[%s0 + $0x98] sm:$0x1]
  %v37 = vld [vmem:[%s0 + $0xa0] sm:$0xff]
  %v38 = vld [vmem:[%s0 + $0xa8] sm:$0x1]
  %v39 = vld [vmem:[%s0 + $0xb0] sm:$0xff]
  %v40 = vld [vmem:[%s0 + $0xb8] sm:$0x1]
  %v41 = vld [vmem:[%s0 + $0xc0] sm:$0xff]
  %v42 = vld [vmem:[%s0 + $0xc8] sm:$0x1]
  %v43 = vld [vmem:[%s0 + $0xd0] sm:$0xff]
  %v44 = vld [vmem:[%s0 + $0xd8] sm:$0x1]
  %v45 = vld [vmem:[%s0 + $0xe0] sm:$0xff]
  %v46 = vld [vmem:[%s0 + $0xe8] sm:$0x1]
  %v47 = vld [vmem:[%s0 + $0xf0] sm:$0xff]
  %v48 = vld [vmem:[%s0 + $0xf8] sm:$0x1]
  %v49 = vld [vmem:[%s0 + $0x100] sm:$0xff]
  %v50 = vld [vmem:[%s0 + $0x108] sm:$0x1]
  %v51 = vld [vmem:[%s0 + $0x110] sm:$0xff]
  %v52 = vld [vmem:[%s0 + $0x118] sm:$0x1]
  %v53 = vld [vmem:[%s1] sm:$0xff]
  %v54 = vld [vmem:[%s1 + $0x10] sm:$0xff]
  %v55 = vld [vmem:[%s1 + $0x20] sm:$0xff]
  %v56 = vld [vmem:[%s1 + $0x30] sm:$0xff]
  %v57 = vld [vmem:[%s1 + $0x40] sm:$0xff]
  %v58 = vld [vmem:[%s1 + $0x50] sm:$0xff]
  %v59 = vld [vmem:[%s1 + $0x60] sm:$0xff]
  %v60 = vld [vmem:[%s1 + $0x70] sm:$0xff]
  %v61 = vld [vmem:[%s1 + $0x80] sm:$0xff]
  %v62 = vld [vmem:[%s1 + $0x90] sm:$0xff]
  %v63 = vld [vmem:[%s1 + $0xa0] sm:$0xff]
  %v64 = vld [vmem:[%s1 + $0xb0] sm:$0xff]
  %v65 = vld [vmem:[%s1 + $0xc0] sm:$0xff]
  %v66 = vld [vmem:[%s1 + $0xd0] sm:$0xff]
  %v67 = vld [vmem:[%s1 + $0xe0] sm:$0xff]
  %v68 = vld [vmem:[%s1 + $0xf0] sm:$0xff]
  %v69 = vld [vmem:[%s1 + $0x100] sm:$0xff]
  %v70 = vld [vmem:[%s1 + $0x110] sm:$0xff]
  %v71 = vld [vmem:[%s2] sm:$0xff]
  %v72 = vld [vmem:[%s2 + $0x8] sm:$0x1]
  %v73 = vld [vmem:[%s2 + $0x10] sm:$0xff]
  %v74 = vld [vmem:[%s2 + $0x18] sm:$0x1]
  %v75 = vld [vmem:[%s2 + $0x20] sm:$0xff]
  %v76 = vld [vmem:[%s2 + $0x28] sm:$0x1]
  %v77 = vld [vmem:[%s2 + $0x30] sm:$0xff]
  %v78 = vld [vmem:[%s2 + $0x38] sm:$0x1]
  %v79 = vld [vmem:[%s2 + $0x40] sm:$0xff]
  %v80 = vld [vmem:[%s2 + $0x48] sm:$0x1]
  %v81 = vld [vmem:[%s2 + $0x50] sm:$0xff]
  %v82 = vld [vmem:[%s2 + $0x58] sm:$0x1]
  %v83 = vld [vmem:[%s2 + $0x60] sm:$0xff]
  %v84 = vld [vmem:[%s2 + $0x68] sm:$0x1]
  %v85 = vld [vmem:[%s2 + $0x70] sm:$0xff]
  %v86 = vld [vmem:[%s2 + $0x78] sm:$0x1]
  %v87 = vld [vmem:[%s2 + $0x90] sm:$0xff]
  %v88 = vld [vmem:[%s2 + $0x98] sm:$0x1]
  %v89 = vld [vmem:[%s2 + $0xa0] sm:$0xff]
  %v90 = vld [vmem:[%s2 + $0xa8] sm:$0x1]
  %v91 = vld [vmem:[%s2 + $0xb0] sm:$0xff]
  %v92 = vld [vmem:[%s2 + $0xb8] sm:$0x1]
  %v93 = vld [vmem:[%s2 + $0xc0] sm:$0xff]
  %v94 = vld [vmem:[%s2 + $0xc8] sm:$0x1]
  %v95 = vld [vmem:[%s2 + $0xd0] sm:$0xff]
  %v96 = vld [vmem:[%s2 + $0xd8] sm:$0x1]
  %v97 = vld [vmem:[%s2 + $0xe0] sm:$0xff]
  %v98 = vld [vmem:[%s2 + $0xe8] sm:$0x1]
  %v99 = vld [vmem:[%s2 + $0xf0] sm:$0xff]
  %v100 = vld [vmem:[%s2 + $0xf8] sm:$0x1]
  %v101 = vld [vmem:[%s2 + $0x100] sm:$0xff]
  %v102 = vld [vmem:[%s2 + $0x108] sm:$0x1]
  %v103 = vld [vmem:[%s3] sm:$0xff]
  %v104 = vld [vmem:[%s3 + $0x10] sm:$0xff]
  %v105 = vld [vmem:[%s3 + $0x20] sm:$0xff]
  %v106 = vld [vmem:[%s3 + $0x30] sm:$0xff]
  %v107 = vld [vmem:[%s3 + $0x40] sm:$0xff]
  %v108 = vld [vmem:[%s3 + $0x50] sm:$0xff]
  %v109 = vld [vmem:[%s3 + $0x60] sm:$0xff]
  %v110 = vld [vmem:[%s3 + $0x70] sm:$0xff]
  %v111 = vld [vmem:[%s3 + $0x90] sm:$0xff]
  %v112 = vld [vmem:[%s3 + $0xa0] sm:$0xff]
  %v113 = vld [vmem:[%s3 + $0xb0] sm:$0xff]
  %v114 = vld [vmem:[%s3 + $0xc0] sm:$0xff]
  %v115 = vld [vmem:[%s3 + $0xd0] sm:$0xff]
  %v116 = vld [vmem:[%s3 + $0xe0] sm:$0xff]
  %v117 = vld [vmem:[%s3 + $0xf0] sm:$0xff]
  %v118 = vld [vmem:[%s3 + $0x100] sm:$0xff]
  %vm151 = vcmask 1046528
  %v152 = vrot.slane %v17, 1
  %v153 = vrot.slane %v18, 1
  %v154 = vsel %vm151, %v152, %v153
  %v155 = vrot.slane %v19, 1
  %v156 = vrot.slane %v20, 1
  %v157 = vsel %vm151, %v155, %v156
  %v158 = vrot.slane %v21, 1
  %v159 = vrot.slane %v22, 1
  %v160 = vsel %vm151, %v158, %v159
  %v161 = vrot.slane %v23, 1
  %v162 = vrot.slane %v24, 1
  %v163 = vsel %vm151, %v161, %v162
  %v164 = vrot.slane %v25, 1
  %v165 = vrot.slane %v26, 1
  %v166 = vsel %vm151, %v164, %v165
  %v167 = vrot.slane %v27, 1
  %v168 = vrot.slane %v28, 1
  %v169 = vsel %vm151, %v167, %v168
  %v170 = vrot.slane %v29, 1
  %v171 = vrot.slane %v30, 1
  %v172 = vsel %vm151, %v170, %v171
  %v173 = vrot.slane %v31, 1
  %v174 = vrot.slane %v32, 1
  %v175 = vsel %vm151, %v173, %v174
  %v176 = vrot.slane %v35, 1
  %v177 = vrot.slane %v36, 1
  %v178 = vsel %vm151, %v176, %v177
  %v179 = vrot.slane %v37, 1
  %v180 = vrot.slane %v38, 1
  %v181 = vsel %vm151, %v179, %v180
  %v182 = vrot.slane %v39, 1
  %v183 = vrot.slane %v40, 1
  %v184 = vsel %vm151, %v182, %v183
  %v185 = vrot.slane %v41, 1
  %v186 = vrot.slane %v42, 1
  %v187 = vsel %vm151, %v185, %v186
  %v188 = vrot.slane %v43, 1
  %v189 = vrot.slane %v44, 1
  %v190 = vsel %vm151, %v188, %v189
  %v191 = vrot.slane %v45, 1
  %v192 = vrot.slane %v46, 1
  %v193 = vsel %vm151, %v191, %v192
  %v194 = vrot.slane %v47, 1
  %v195 = vrot.slane %v48, 1
  %v196 = vsel %vm151, %v194, %v195
  %v197 = vrot.slane %v49, 1
  %v198 = vrot.slane %v50, 1
  %v199 = vsel %vm151, %v197, %v198
  %v216 = vmax.f32 %v17, %v154
  %v217 = vmax.f32 %v19, %v157
  %v218 = vmax.f32 %v21, %v160
  %v219 = vmax.f32 %v23, %v163
  %v220 = vmax.f32 %v25, %v166
  %v221 = vmax.f32 %v27, %v169
  %v222 = vmax.f32 %v29, %v172
  %v223 = vmax.f32 %v31, %v175
  %v224 = vmax.f32 %v35, %v178
  %v225 = vmax.f32 %v37, %v181
  %v226 = vmax.f32 %v39, %v184
  %v227 = vmax.f32 %v41, %v187
  %v228 = vmax.f32 %v43, %v190
  %v229 = vmax.f32 %v45, %v193
  %v230 = vmax.f32 %v47, %v196
  %v231 = vmax.f32 %v49, %v199
  %v232 = vmax.f32 %v216, %v19
  %v233 = vmax.f32 %v217, %v21
  %v234 = vmax.f32 %v218, %v23
  %v235 = vmax.f32 %v219, %v25
  %v236 = vmax.f32 %v220, %v27
  %v237 = vmax.f32 %v221, %v29
  %v238 = vmax.f32 %v222, %v31
  %v239 = vmax.f32 %v223, %v33
  %v240 = vmax.f32 %v224, %v37
  %v241 = vmax.f32 %v225, %v39
  %v242 = vmax.f32 %v226, %v41
  %v243 = vmax.f32 %v227, %v43
  %v244 = vmax.f32 %v228, %v45
  %v245 = vmax.f32 %v229, %v47
  %v246 = vmax.f32 %v230, %v49
  %v247 = vmax.f32 %v231, %v51
  %v252 = vrot.slane %v33, 1
  %v253 = vrot.slane %v34, 1
  %v254 = vsel %vm151, %v252, %v253
  %v255 = vrot.slane %v51, 1
  %v256 = vrot.slane %v52, 1
  %v257 = vsel %vm151, %v255, %v256
  %v260 = vmax.f32 %v232, %v157
  %v261 = vmax.f32 %v233, %v160
  %v262 = vmax.f32 %v234, %v163
  %v263 = vmax.f32 %v235, %v166
  %v264 = vmax.f32 %v236, %v169
  %v265 = vmax.f32 %v237, %v172
  %v266 = vmax.f32 %v238, %v175
  %v267 = vmax.f32 %v239, %v254
  %v268 = vmax.f32 %v240, %v181
  %v269 = vmax.f32 %v241, %v184
  %v270 = vmax.f32 %v242, %v187
  %v271 = vmax.f32 %v243, %v190
  %v272 = vmax.f32 %v244, %v193
  %v273 = vmax.f32 %v245, %v196
  %v274 = vmax.f32 %v246, %v199
  %v275 = vmax.f32 %v247, %v257
  %v276 = vmax.f32 %v260, %v53
  %v277 = vmax.f32 %v261, %v54
  %v278 = vmax.f32 %v262, %v55
  %v279 = vmax.f32 %v263, %v56
  %v280 = vmax.f32 %v264, %v57
  %v281 = vmax.f32 %v265, %v58
  %v282 = vmax.f32 %v266, %v59
  %v283 = vmax.f32 %v267, %v60
  %v284 = vmax.f32 %v268, %v62
  %v285 = vmax.f32 %v269, %v63
  %v286 = vmax.f32 %v270, %v64
  %v287 = vmax.f32 %v271, %v65
  %v288 = vmax.f32 %v272, %v66
  %v289 = vmax.f32 %v273, %v67
  %v290 = vmax.f32 %v274, %v68
  %v291 = vmax.f32 %v275, %v69
  %v292 = vmax.f32 %v276, %v54
  %v293 = vmax.f32 %v277, %v55
  %v294 = vmax.f32 %v278, %v56
  %v295 = vmax.f32 %v279, %v57
  %v296 = vmax.f32 %v280, %v58
  %v297 = vmax.f32 %v281, %v59
  %v298 = vmax.f32 %v282, %v60
  %v299 = vmax.f32 %v283, %v61
  %v300 = vmax.f32 %v284, %v63
  %v301 = vmax.f32 %v285, %v64
  %v302 = vmax.f32 %v286, %v65
  %v303 = vmax.f32 %v287, %v66
  %v304 = vmax.f32 %v288, %v67
  %v305 = vmax.f32 %v289, %v68
  %v306 = vmax.f32 %v290, %v69
  %v307 = vmax.f32 %v291, %v70
  %v308 = vmax.f32 %v292, %v71
  %v309 = vmax.f32 %v293, %v73
  %v310 = vmax.f32 %v294, %v75
  %v311 = vmax.f32 %v295, %v77
  %v312 = vmax.f32 %v296, %v79
  %v313 = vmax.f32 %v297, %v81
  %v314 = vmax.f32 %v298, %v83
  %v315 = vmax.f32 %v299, %v85
  %v316 = vmax.f32 %v300, %v87
  %v317 = vmax.f32 %v301, %v89
  %v318 = vmax.f32 %v302, %v91
  %v319 = vmax.f32 %v303, %v93
  %v320 = vmax.f32 %v304, %v95
  %v321 = vmax.f32 %v305, %v97
  %v322 = vmax.f32 %v306, %v99
  %v323 = vmax.f32 %v307, %v101
  %v356 = vrot.slane %v71, 1
  %v357 = vrot.slane %v72, 1
  %v358 = vsel %vm151, %v356, %v357
  %v359 = vrot.slane %v73, 1
  %v360 = vrot.slane %v74, 1
  %v361 = vsel %vm151, %v359, %v360
  %v362 = vrot.slane %v75, 1
  %v363 = vrot.slane %v76, 1
  %v364 = vsel %vm151, %v362, %v363
  %v365 = vrot.slane %v77, 1
  %v366 = vrot.slane %v78, 1
  %v367 = vsel %vm151, %v365, %v366
  %v368 = vrot.slane %v79, 1
  %v369 = vrot.slane %v80, 1
  %v370 = vsel %vm151, %v368, %v369
  %v371 = vrot.slane %v81, 1
  %v372 = vrot.slane %v82, 1
  %v373 = vsel %vm151, %v371, %v372
  %v374 = vrot.slane %v83, 1
  %v375 = vrot.slane %v84, 1
  %v376 = vsel %vm151, %v374, %v375
  %v377 = vrot.slane %v85, 1
  %v378 = vrot.slane %v86, 1
  %v379 = vsel %vm151, %v377, %v378
  %v380 = vrot.slane %v87, 1
  %v381 = vrot.slane %v88, 1
  %v382 = vsel %vm151, %v380, %v381
  %v383 = vrot.slane %v89, 1
  %v384 = vrot.slane %v90, 1
  %v385 = vsel %vm151, %v383, %v384
  %v386 = vrot.slane %v91, 1
  %v387 = vrot.slane %v92, 1
  %v388 = vsel %vm151, %v386, %v387
  %v389 = vrot.slane %v93, 1
  %v390 = vrot.slane %v94, 1
  %v391 = vsel %vm151, %v389, %v390
  %v392 = vrot.slane %v95, 1
  %v393 = vrot.slane %v96, 1
  %v394 = vsel %vm151, %v392, %v393
  %v395 = vrot.slane %v97, 1
  %v396 = vrot.slane %v98, 1
  %v397 = vsel %vm151, %v395, %v396
  %v398 = vrot.slane %v99, 1
  %v399 = vrot.slane %v100, 1
  %v400 = vsel %vm151, %v398, %v399
  %v401 = vrot.slane %v101, 1
  %v402 = vrot.slane %v102, 1
  %v403 = vsel %vm151, %v401, %v402
  %v420 = vmax.f32 %v308, %v358
  %v421 = vmax.f32 %v309, %v361
  %v422 = vmax.f32 %v310, %v364
  %v423 = vmax.f32 %v311, %v367
  %v424 = vmax.f32 %v312, %v370
  %v425 = vmax.f32 %v313, %v373
  %v426 = vmax.f32 %v314, %v376
  %v427 = vmax.f32 %v315, %v379
  %v428 = vmax.f32 %v316, %v382
  %v429 = vmax.f32 %v317, %v385
  %v430 = vmax.f32 %v318, %v388
  %v431 = vmax.f32 %v319, %v391
  %v432 = vmax.f32 %v320, %v394
  %v433 = vmax.f32 %v321, %v397
  %v434 = vmax.f32 %v322, %v400
  %v435 = vmax.f32 %v323, %v403
  %v436 = vmax.f32 %v420, %v103
  %v437 = vmax.f32 %v421, %v104
  %v438 = vmax.f32 %v422, %v105
  %v439 = vmax.f32 %v423, %v106
  %v440 = vmax.f32 %v424, %v107
  %v441 = vmax.f32 %v425, %v108
  %v442 = vmax.f32 %v426, %v109
  %v443 = vmax.f32 %v427, %v110
  %v444 = vmax.f32 %v428, %v111
  %v445 = vmax.f32 %v429, %v112
  %v446 = vmax.f32 %v430, %v113
  %v447 = vmax.f32 %v431, %v114
  %v448 = vmax.f32 %v432, %v115
  %v449 = vmax.f32 %v433, %v116
  %v450 = vmax.f32 %v434, %v117
  %v451 = vmax.f32 %v435, %v118
  %vm452 = vcmask 130048
  %453 = vst.msk [vmem:[%s4] sm:$0xff] %vm452, %v436
  %454 = vst.msk [vmem:[%s4 + $0x8] sm:$0xff] %vm452, %v437
  %455 = vst.msk [vmem:[%s4 + $0x10] sm:$0xff] %vm452, %v438
  %456 = vst.msk [vmem:[%s4 + $0x18] sm:$0xff] %vm452, %v439
  %457 = vst.msk [vmem:[%s4 + $0x20] sm:$0xff] %vm452, %v440
  %458 = vst.msk [vmem:[%s4 + $0x28] sm:$0xff] %vm452, %v441
  %459 = vst.msk [vmem:[%s4 + $0x30] sm:$0xff] %vm452, %v442
  %460 = vst.msk [vmem:[%s4 + $0x38] sm:$0xff] %vm452, %v443
  %461 = vst.msk [vmem:[%s4 + $0x40] sm:$0xff] %vm452, %v444
  %462 = vst.msk [vmem:[%s4 + $0x48] sm:$0xff] %vm452, %v445
  %463 = vst.msk [vmem:[%s4 + $0x50] sm:$0xff] %vm452, %v446
  %464 = vst.msk [vmem:[%s4 + $0x58] sm:$0xff] %vm452, %v447
  %465 = vst.msk [vmem:[%s4 + $0x60] sm:$0xff] %vm452, %v448
  %466 = vst.msk [vmem:[%s4 + $0x68] sm:$0xff] %vm452, %v449
  %467 = vst.msk [vmem:[%s4 + $0x70] sm:$0xff] %vm452, %v450
  %468 = vst.msk [vmem:[%s4 + $0x78] sm:$0xff] %vm452, %v451
  // Predicated region
  $region18: #{densenet_forward.14} parent=0 // pred_check
    _
  $region19: #{densenet_forward.14} parent=0 // pred_check_branch
    %470 = sbr.rel (0) target = $region21
  $region20: #{densenet_forward.14} parent=0 // pred_region
    _
  $region21: #{densenet_forward.14} parent=0 // pred_fallthru
    _
  // Predicated region
  $region22: #{densenet_forward.14} parent=0 // pred_check
    _
  $region23: #{densenet_forward.14} parent=0 // pred_check_branch
    %472 = sbr.rel (0) target = $region25
  $region24: #{densenet_forward.14} parent=0 // pred_region
    _
  $region25: #{densenet_forward.14} parent=0 // pred_fallthru
    _

// kernel: densenet_forward.13
$region0: #{densenet_forward.13}
  #allocation0 [shape = 'u32[]', space=smem, size = 0x4, offset = 0x4, fixed_abs, tag = 'smem constant byte address 0x4 - core index']
  #allocation1 [shape = 'u32[144,128]{1,0:T(1,128)}', space=vmem, size = 0x12000, scoped, tag = 'internal scratch']
  %s0 = inlined_call_operand.vmem [shape: bf16[512,147], index: 0, kind: input, shape index: {}]
  %s1 = inlined_call_operand.vmem [shape: bf16[147,16], index: 1, kind: input, shape index: {}]
  %s2 = inlined_call_operand.vmem [shape: f32[1,16], index: 2, kind: input, shape index: {}]
  %s3 = inlined_call_operand.vmem [shape: f32[1,16], index: 3, kind: input, shape index: {}]
  %s4 = inlined_call_operand.vmem [shape: f32[512,16], index: 4, kind: output, shape index: {}]
  %s5 = sld [smem:[#allocation0]]
  $region26: #{densenet_forward.13} parent=0
    _
  %s7 = ssub.s32 1, %s5
  %s8 = scalar_select 0, %s7, %s5
  // Predicated region
  $region2: #{densenet_forward.13} parent=0 // pred_check
    _
  $region3: #{densenet_forward.13} parent=0 // pred_check_branch
    %10 = sbr.rel (0) target = $region5
  $region4: #{densenet_forward.13} parent=0 // pred_region
    _
  $region5: #{densenet_forward.13} parent=0 // pred_fallthru
    _
  // Predicated region
  $region6: #{densenet_forward.13} parent=0 // pred_check
    _
  $region7: #{densenet_forward.13} parent=0 // pred_check_branch
    %12 = sbr.rel (0) target = $region9
  $region8: #{densenet_forward.13} parent=0 // pred_region
    _
  $region9: #{densenet_forward.13} parent=0 // pred_fallthru
    _
  // Predicated region
  $region10: #{densenet_forward.13} parent=0 // pred_check
    _
  $region11: #{densenet_forward.13} parent=0 // pred_check_branch
    %14 = sbr.rel (0) target = $region13
  $region12: #{densenet_forward.13} parent=0 // pred_region
    _
  $region13: #{densenet_forward.13} parent=0 // pred_fallthru
    _
  // Predicated region
  $region14: #{densenet_forward.13} parent=0 // pred_check
    _
  $region15: #{densenet_forward.13} parent=0 // pred_check_branch
    %16 = sbr.rel (0) target = $region17
  $region16: #{densenet_forward.13} parent=0 // pred_region
    _
  $region17: #{densenet_forward.13} parent=0 // pred_fallthru
    _
  %v18 = vld [vmem:[%s0] sm:$0xff]
  %v19 = vld [vmem:[%s0 + $0x8] sm:$0xff]
  %v20 = vld [vmem:[%s0 + $0x10] sm:$0xff]
  %v21 = vld [vmem:[%s0 + $0x18] sm:$0xff]
  %v22 = vld [vmem:[%s0 + $0x20] sm:$0xff]
  %v23 = vld [vmem:[%s0 + $0x28] sm:$0xff]
  %v24 = vld [vmem:[%s0 + $0x30] sm:$0xff]
  %v25 = vld [vmem:[%s0 + $0x38] sm:$0xff]
  %v26 = vld [vmem:[%s0 + $0x40] sm:$0xff]
  %v27 = vld [vmem:[%s0 + $0x48] sm:$0xff]
  %v28 = vld [vmem:[%s0 + $0x50] sm:$0xff]
  %v29 = vld [vmem:[%s0 + $0x58] sm:$0xff]
  %v30 = vld [vmem:[%s0 + $0x60] sm:$0xff]
  %v31 = vld [vmem:[%s0 + $0x68] sm:$0xff]
  %v32 = vld [vmem:[%s0 + $0x70] sm:$0xff]
  %v33 = vld [vmem:[%s0 + $0x78] sm:$0xff]
  %v34 = vld [vmem:[%s0 + $0x80] sm:$0xff]
  %v35 = vld [vmem:[%s0 + $0x88] sm:$0xff]
  %v36 = vld [vmem:[%s0 + $0x90] sm:$0xff]
  %v37 = vld [vmem:[%s0 + $0x98] sm:$0xff]
  %v38 = vld [vmem:[%s0 + $0xa0] sm:$0xff]
  %v39 = vld [vmem:[%s0 + $0xa8] sm:$0xff]
  %v40 = vld [vmem:[%s0 + $0xb0] sm:$0xff]
  %v41 = vld [vmem:[%s0 + $0xb8] sm:$0xff]
  %v42 = vld [vmem:[%s0 + $0xc0] sm:$0xff]
  %v43 = vld [vmem:[%s0 + $0xc8] sm:$0xff]
  %v44 = vld [vmem:[%s0 + $0xd0] sm:$0xff]
  %v45 = vld [vmem:[%s0 + $0xd8] sm:$0xff]
  %v46 = vld [vmem:[%s0 + $0xe0] sm:$0xff]
  %v47 = vld [vmem:[%s0 + $0xe8] sm:$0xff]
  %v48 = vld [vmem:[%s0 + $0xf0] sm:$0xff]
  %v49 = vld [vmem:[%s0 + $0xf8] sm:$0xff]
  %v50 = vld [vmem:[%s0 + $0x100] sm:$0xff]
  %v51 = vld [vmem:[%s0 + $0x108] sm:$0xff]
  %v52 = vld [vmem:[%s0 + $0x110] sm:$0xff]
  %v53 = vld [vmem:[%s0 + $0x118] sm:$0xff]
  %v54 = vld [vmem:[%s0 + $0x120] sm:$0xff]
  %v55 = vld [vmem:[%s0 + $0x128] sm:$0xff]
  %v56 = vld [vmem:[%s0 + $0x130] sm:$0xff]
  %v57 = vld [vmem:[%s0 + $0x138] sm:$0xff]
  %v58 = vld [vmem:[%s0 + $0x140] sm:$0xff]
  %v59 = vld [vmem:[%s0 + $0x148] sm:$0xff]
  %v60 = vld [vmem:[%s0 + $0x150] sm:$0xff]
  %v61 = vld [vmem:[%s0 + $0x158] sm:$0xff]
  %v62 = vld [vmem:[%s0 + $0x160] sm:$0xff]
  %v63 = vld [vmem:[%s0 + $0x168] sm:$0xff]
  %v64 = vld [vmem:[%s0 + $0x170] sm:$0xff]
  %v65 = vld [vmem:[%s0 + $0x178] sm:$0xff]
  %v66 = vld [vmem:[%s0 + $0x180] sm:$0xff]
  %v67 = vld [vmem:[%s0 + $0x188] sm:$0xff]
  %v68 = vld [vmem:[%s0 + $0x190] sm:$0xff]
  %v69 = vld [vmem:[%s0 + $0x198] sm:$0xff]
  %v70 = vld [vmem:[%s0 + $0x1a0] sm:$0xff]
  %v71 = vld [vmem:[%s0 + $0x1a8] sm:$0xff]
  %v72 = vld [vmem:[%s0 + $0x1b0] sm:$0xff]
  %v73 = vld [vmem:[%s0 + $0x1b8] sm:$0xff]
  %v74 = vld [vmem:[%s0 + $0x1c0] sm:$0xff]
  %v75 = vld [vmem:[%s0 + $0x1c8] sm:$0xff]
  %v76 = vld [vmem:[%s0 + $0x1d0] sm:$0xff]
  %v77 = vld [vmem:[%s0 + $0x1d8] sm:$0xff]
  %v78 = vld [vmem:[%s0 + $0x1e0] sm:$0xff]
  %v79 = vld [vmem:[%s0 + $0x1e8] sm:$0xff]
  %v80 = vld [vmem:[%s0 + $0x1f0] sm:$0xff]
  %v81 = vld [vmem:[%s0 + $0x1f8] sm:$0xff]
  %v82 = vld [vmem:[%s1] sm:$0xf]
  %v83 = vld [vmem:[%s1 + $0x4] sm:$0xf]
  %v84 = vld [vmem:[%s1 + $0x8] sm:$0xf]
  %v85 = vld [vmem:[%s1 + $0xc] sm:$0xf]
  %v86 = vld [vmem:[%s1 + $0x10] sm:$0xf]
  %v87 = vld [vmem:[%s1 + $0x14] sm:$0xf]
  %v88 = vld [vmem:[%s1 + $0x18] sm:$0xf]
  %v89 = vld [vmem:[%s1 + $0x1c] sm:$0xf]
  %v90 = vld [vmem:[%s1 + $0x20] sm:$0xf]
  %v91 = vld [vmem:[%s1 + $0x24] sm:$0xf]
  %v92 = vld [vmem:[%s1 + $0x28] sm:$0xf]
  %v93 = vld [vmem:[%s1 + $0x2c] sm:$0xf]
  %v94 = vld [vmem:[%s1 + $0x30] sm:$0xf]
  %v95 = vld [vmem:[%s1 + $0x34] sm:$0xf]
  %v96 = vld [vmem:[%s1 + $0x38] sm:$0xf]
  %v97 = vld [vmem:[%s1 + $0x3c] sm:$0xf]
  %v98 = vld [vmem:[%s1 + $0x40] sm:$0xf]
  %v99 = vld [vmem:[%s1 + $0x44] sm:$0xf]
  %v100 = vld [vmem:[%s1 + $0x48] sm:$0x3]
  %v165 = vunpack.c.l.b16 %v18
  %v166 = vunpack.c.h.b16 %v18
  %v167 = vunpack.c.l.b16 %v19
  %v168 = vunpack.c.h.b16 %v19
  %v169 = vunpack.c.l.b16 %v20
  %v170 = vunpack.c.h.b16 %v20
  %v171 = vunpack.c.l.b16 %v21
  %v172 = vunpack.c.h.b16 %v21
  %v173 = vunpack.c.l.b16 %v22
  %v174 = vunpack.c.h.b16 %v22
  %v175 = vunpack.c.l.b16 %v23
  %v176 = vunpack.c.h.b16 %v23
  %v177 = vunpack.c.l.b16 %v24
  %v178 = vunpack.c.h.b16 %v24
  %v179 = vunpack.c.l.b16 %v25
  %v180 = vunpack.c.h.b16 %v25
  %v181 = vunpack.c.l.b16 %v26
  %v182 = vunpack.c.h.b16 %v26
  %v183 = vunpack.c.l.b16 %v27
  %v184 = vunpack.c.h.b16 %v27
  %v185 = vunpack.c.l.b16 %v28
  %v186 = vunpack.c.h.b16 %v28
  %v187 = vunpack.c.l.b16 %v29
  %v188 = vunpack.c.h.b16 %v29
  %v189 = vunpack.c.l.b16 %v30
  %v190 = vunpack.c.h.b16 %v30
  %v191 = vunpack.c.l.b16 %v31
  %v192 = vunpack.c.h.b16 %v31
  %v193 = vunpack.c.l.b16 %v32
  %v194 = vunpack.c.h.b16 %v32
  %v195 = vunpack.c.l.b16 %v33
  %v196 = vunpack.c.h.b16 %v33
  %v197 = vunpack.c.l.b16 %v34
  %v198 = vunpack.c.h.b16 %v34
  %v199 = vunpack.c.l.b16 %v35
  %v200 = vunpack.c.h.b16 %v35
  %v201 = vunpack.c.l.b16 %v36
  %v202 = vunpack.c.h.b16 %v36
  %v203 = vunpack.c.l.b16 %v37
  %v204 = vunpack.c.h.b16 %v37
  %v205 = vunpack.c.l.b16 %v38
  %v206 = vunpack.c.h.b16 %v38
  %v207 = vunpack.c.l.b16 %v39
  %v208 = vunpack.c.h.b16 %v39
  %v209 = vunpack.c.l.b16 %v40
  %v210 = vunpack.c.h.b16 %v40
  %v211 = vunpack.c.l.b16 %v41
  %v212 = vunpack.c.h.b16 %v41
  %v213 = vunpack.c.l.b16 %v42
  %v214 = vunpack.c.h.b16 %v42
  %v215 = vunpack.c.l.b16 %v43
  %v216 = vunpack.c.h.b16 %v43
  %v217 = vunpack.c.l.b16 %v44
  %v218 = vunpack.c.h.b16 %v44
  %v219 = vunpack.c.l.b16 %v45
  %v220 = vunpack.c.h.b16 %v45
  %v221 = vunpack.c.l.b16 %v46
  %v222 = vunpack.c.h.b16 %v46
  %v223 = vunpack.c.l.b16 %v47
  %v224 = vunpack.c.h.b16 %v47
  %v225 = vunpack.c.l.b16 %v48
  %v226 = vunpack.c.h.b16 %v48
  %v227 = vunpack.c.l.b16 %v49
  %v228 = vunpack.c.h.b16 %v49
  %v229 = vunpack.c.l.b16 %v50
  %v230 = vunpack.c.h.b16 %v50
  %v231 = vunpack.c.l.b16 %v51
  %v232 = vunpack.c.h.b16 %v51
  %v233 = vunpack.c.l.b16 %v52
  %v234 = vunpack.c.h.b16 %v52
  %v235 = vunpack.c.l.b16 %v53
  %v236 = vunpack.c.h.b16 %v53
  %v237 = vunpack.c.l.b16 %v54
  %v238 = vunpack.c.h.b16 %v54
  %v239 = vunpack.c.l.b16 %v55
  %v240 = vunpack.c.h.b16 %v55
  %v241 = vunpack.c.l.b16 %v56
  %v242 = vunpack.c.h.b16 %v56
  %v243 = vunpack.c.l.b16 %v57
  %v244 = vunpack.c.h.b16 %v57
  %v245 = vunpack.c.l.b16 %v58
  %v246 = vunpack.c.h.b16 %v58
  %v247 = vunpack.c.l.b16 %v59
  %v248 = vunpack.c.h.b16 %v59
  %v249 = vunpack.c.l.b16 %v60
  %v250 = vunpack.c.h.b16 %v60
  %v251 = vunpack.c.l.b16 %v61
  %v252 = vunpack.c.h.b16 %v61
  %v253 = vunpack.c.l.b16 %v62
  %v254 = vunpack.c.h.b16 %v62
  %v255 = vunpack.c.l.b16 %v63
  %v256 = vunpack.c.h.b16 %v63
  %v257 = vunpack.c.l.b16 %v64
  %v258 = vunpack.c.h.b16 %v64
  %v259 = vunpack.c.l.b16 %v65
  %v260 = vunpack.c.h.b16 %v65
  %v261 = vunpack.c.l.b16 %v66
  %v262 = vunpack.c.h.b16 %v66
  %v263 = vunpack.c.l.b16 %v67
  %v264 = vunpack.c.h.b16 %v67
  %v265 = vunpack.c.l.b16 %v68
  %v266 = vunpack.c.h.b16 %v68
  %v267 = vunpack.c.l.b16 %v69
  %v268 = vunpack.c.h.b16 %v69
  %v269 = vunpack.c.l.b16 %v70
  %v270 = vunpack.c.h.b16 %v70
  %v271 = vunpack.c.l.b16 %v71
  %v272 = vunpack.c.h.b16 %v71
  %v273 = vunpack.c.l.b16 %v72
  %v274 = vunpack.c.h.b16 %v72
  %v275 = vunpack.c.l.b16 %v73
  %v276 = vunpack.c.h.b16 %v73
  %v277 = vunpack.c.l.b16 %v74
  %v278 = vunpack.c.h.b16 %v74
  %v279 = vunpack.c.l.b16 %v75
  %v280 = vunpack.c.h.b16 %v75
  %v281 = vunpack.c.l.b16 %v76
  %v282 = vunpack.c.h.b16 %v76
  %v283 = vunpack.c.l.b16 %v77
  %v284 = vunpack.c.h.b16 %v77
  %v285 = vunpack.c.l.b16 %v78
  %v286 = vunpack.c.h.b16 %v78
  %v287 = vunpack.c.l.b16 %v79
  %v288 = vunpack.c.h.b16 %v79
  %v289 = vunpack.c.l.b16 %v80
  %v290 = vunpack.c.h.b16 %v80
  %v291 = vunpack.c.l.b16 %v81
  %v292 = vunpack.c.h.b16 %v81
  %v293 = vpack.c.b16 %v167, %v165
  %v294 = vpack.c.b16 %v168, %v166
  %v295 = vpack.c.b16 %v171, %v169
  %v296 = vpack.c.b16 %v172, %v170
  %v297 = vpack.c.b16 %v175, %v173
  %v298 = vpack.c.b16 %v176, %v174
  %v299 = vpack.c.b16 %v179, %v177
  %v300 = vpack.c.b16 %v180, %v178
  %v301 = vpack.c.b16 %v183, %v181
  %v302 = vpack.c.b16 %v184, %v182
  %v303 = vpack.c.b16 %v187, %v185
  %v304 = vpack.c.b16 %v188, %v186
  %v305 = vpack.c.b16 %v191, %v189
  %v306 = vpack.c.b16 %v192, %v190
  %v307 = vpack.c.b16 %v195, %v193
  %v308 = vpack.c.b16 %v196, %v194
  %v309 = vpack.c.b16 %v199, %v197
  %v310 = vpack.c.b16 %v200, %v198
  %v311 = vpack.c.b16 %v203, %v201
  %v312 = vpack.c.b16 %v204, %v202
  %v313 = vpack.c.b16 %v207, %v205
  %v314 = vpack.c.b16 %v208, %v206
  %v315 = vpack.c.b16 %v211, %v209
  %v316 = vpack.c.b16 %v212, %v210
  %v317 = vpack.c.b16 %v215, %v213
  %v318 = vpack.c.b16 %v216, %v214
  %v319 = vpack.c.b16 %v219, %v217
  %v320 = vpack.c.b16 %v220, %v218
  %v321 = vpack.c.b16 %v223, %v221
  %v322 = vpack.c.b16 %v224, %v222
  %v323 = vpack.c.b16 %v227, %v225
  %v324 = vpack.c.b16 %v228, %v226
  %v325 = vpack.c.b16 %v231, %v229
  %v326 = vpack.c.b16 %v232, %v230
  %v327 = vpack.c.b16 %v235, %v233
  %v328 = vpack.c.b16 %v236, %v234
  %v329 = vpack.c.b16 %v239, %v237
  %v330 = vpack.c.b16 %v240, %v238
  %v331 = vpack.c.b16 %v243, %v241
  %v332 = vpack.c.b16 %v244, %v242
  %v333 = vpack.c.b16 %v247, %v245
  %v334 = vpack.c.b16 %v248, %v246
  %v335 = vpack.c.b16 %v251, %v249
  %v336 = vpack.c.b16 %v252, %v250
  %v337 = vpack.c.b16 %v255, %v253
  %v338 = vpack.c.b16 %v256, %v254
  %v339 = vpack.c.b16 %v259, %v257
  %v340 = vpack.c.b16 %v260, %v258
  %v341 = vpack.c.b16 %v263, %v261
  %v342 = vpack.c.b16 %v264, %v262
  %v343 = vpack.c.b16 %v267, %v265
  %v344 = vpack.c.b16 %v268, %v266
  %v345 = vpack.c.b16 %v271, %v269
  %v346 = vpack.c.b16 %v272, %v270
  %v347 = vpack.c.b16 %v275, %v273
  %v348 = vpack.c.b16 %v276, %v274
  %v349 = vpack.c.b16 %v279, %v277
  %v350 = vpack.c.b16 %v280, %v278
  %v351 = vpack.c.b16 %v283, %v281
  %v352 = vpack.c.b16 %v284, %v282
  %v353 = vpack.c.b16 %v287, %v285
  %v354 = vpack.c.b16 %v288, %v286
  %v355 = vpack.c.b16 %v291, %v289
  %v356 = vpack.c.b16 %v292, %v290
  %v408 = vunpack.c.l.b16 %v82
  %v409 = vunpack.c.l.b16 %v83
  %v410 = vunpack.c.l.b16 %v84
  %v411 = vunpack.c.l.b16 %v85
  %v412 = vunpack.c.l.b16 %v86
  %v413 = vunpack.c.l.b16 %v87
  %v414 = vunpack.c.l.b16 %v88
  %v415 = vunpack.c.l.b16 %v89
  %v416 = vunpack.c.l.b16 %v90
  %v417 = vunpack.c.l.b16 %v91
  %v418 = vunpack.c.l.b16 %v92
  %v419 = vunpack.c.l.b16 %v93
  %v420 = vunpack.c.l.b16 %v94
  %v421 = vunpack.c.l.b16 %v95
  %v422 = vunpack.c.l.b16 %v96
  %v423 = vunpack.c.l.b16 %v97
  %v424 = vunpack.c.l.b16 %v98
  %v425 = vunpack.c.l.b16 %v99
  %v426 = vunpack.c.l.b16 %v100
  %v427 = vpack.c.b16 %v409, %v408
  %v428 = vpack.c.b16 %v411, %v410
  %v429 = vpack.c.b16 %v413, %v412
  %v430 = vpack.c.b16 %v415, %v414
  %v431 = vpack.c.b16 %v417, %v416
  %v432 = vpack.c.b16 %v419, %v418
  %v433 = vpack.c.b16 %v421, %v420
  %v434 = vpack.c.b16 %v423, %v422
  %v435 = vpack.c.b16 %v425, %v424
  %v436 = vpack.c.b16 %v426, %v426
  %vm446 = vcmask 154624
  %v448 = vsel %vm446, %v294, 0
  %v451 = vsel %vm446, %v296, 0
  %v454 = vsel %vm446, %v298, 0
  %v457 = vsel %vm446, %v300, 0
  %v460 = vsel %vm446, %v302, 0
  %v463 = vsel %vm446, %v304, 0
  %v466 = vsel %vm446, %v306, 0
  %v469 = vsel %vm446, %v308, 0
  %v472 = vsel %vm446, %v310, 0
  %v475 = vsel %vm446, %v312, 0
  %v478 = vsel %vm446, %v314, 0
  %v481 = vsel %vm446, %v316, 0
  %v484 = vsel %vm446, %v318, 0
  %v487 = vsel %vm446, %v320, 0
  %v490 = vsel %vm446, %v322, 0
  %v493 = vsel %vm446, %v324, 0
  %v496 = vsel %vm446, %v326, 0
  %v499 = vsel %vm446, %v328, 0
  %v502 = vsel %vm446, %v330, 0
  %v505 = vsel %vm446, %v332, 0
  %v508 = vsel %vm446, %v334, 0
  %v511 = vsel %vm446, %v336, 0
  %v514 = vsel %vm446, %v338, 0
  %v517 = vsel %vm446, %v340, 0
  %v520 = vsel %vm446, %v342, 0
  %v523 = vsel %vm446, %v344, 0
  %v526 = vsel %vm446, %v346, 0
  %v529 = vsel %vm446, %v348, 0
  %v532 = vsel %vm446, %v350, 0
  %v535 = vsel %vm446, %v352, 0
  %v538 = vsel %vm446, %v354, 0
  %v541 = vsel %vm446, %v356, 0
  %vm543 = vcmask 1040384
  %vm544 = vcmask 1041408
  %v545 = vsel %vm543, 4294967295, 65535
  %v546 = vsel %vm544, %v545, 0
  %v548 = vand.u32 %v436, %v546
  %550 = vmatprep.subr.bf16.mxu0 0
  %551 = vmatpush1.bf16.msra.mxu0 %v427
  %552 = vmatprep.subr.bf16.mxu0 0
  %553 = vmatpush1.bf16.msra.mxu0 %v428
  %554 = vmatprep.subr.bf16.mxu0 0
  %555 = vmatpush1.bf16.msra.mxu0 %v429
  %556 = vmatprep.subr.bf16.mxu0 0
  %557 = vmatpush1.bf16.msra.mxu0 %v430
  %558 = vmatprep.subr.bf16.mxu0 0
  %559 = vmatpush1.bf16.msra.mxu0 %v431
  %560 = vmatprep.subr.bf16.mxu0 0
  %561 = vmatpush1.bf16.msra.mxu0 %v432
  %562 = vmatprep.subr.bf16.mxu0 0
  %563 = vmatpush1.bf16.msra.mxu0 %v433
  %564 = vmatprep.subr.bf16.mxu0 0
  %565 = vmatpush1.bf16.msra.mxu0 %v434
  %566 = vmatprep.subr.bf16.mxu0 0
  %567 = vmatpush1.bf16.msra.mxu0 %v435
  %568 = vmatprep.subr.bf16.mxu0 0
  %569 = vmatpush1.bf16.msra.mxu0 %v548
  %570 = vmatprep.subr.bf16.mxu0 0
  %571 = vmatpush1.bf16.msra.mxu0 0
  %572 = vmatprep.subr.bf16.mxu0 0
  %573 = vmatpush1.bf16.msra.mxu0 0
  %574 = vmatprep.subr.bf16.mxu0 0
  %575 = vmatpush1.bf16.msra.mxu0 0
  %576 = vmatprep.subr.bf16.mxu0 0
  %577 = vmatpush1.bf16.msra.mxu0 0
  %578 = vmatprep.subr.bf16.mxu0 0
  %579 = vmatpush1.bf16.msra.mxu0 0
  %580 = vmatprep.subr.bf16.mxu0 0
  %581 = vmatpush1.bf16.msra.mxu0 0
  %582 = vmatprep.mubr.bf16.mxu0 %v448
  %583 = vmatmul.mubr.bf16.gmra.mrb[0].mxu0 %v293
  %v584 = vpop.f32.mrb[0].mxu0
  %v585 = vadd.f32 0.0, %v584
  %v586 = vpop.f32.mrb[0].mxu0
  %v587 = vpop.f32.mrb[0].mxu0
  %v588 = vadd.f32 0.0, %v587
  %v589 = vpop.f32.mrb[0].mxu0
  %590 = vmatprep.mubr.bf16.mxu0 %v451
  %591 = vmatmul.mubr.bf16.gmra.mrb[0].mxu0 %v295
  %v592 = vpop.f32.mrb[0].mxu0
  %v593 = vadd.f32 0.0, %v592
  %v594 = vpop.f32.mrb[0].mxu0
  %v595 = vpop.f32.mrb[0].mxu0
  %v596 = vadd.f32 0.0, %v595
  %v597 = vpop.f32.mrb[0].mxu0
  %598 = vmatprep.mubr.bf16.mxu0 %v454
  %599 = vmatmul.mubr.bf16.gmra.mrb[0].mxu0 %v297
  %v600 = vpop.f32.mrb[0].mxu0
  %v601 = vadd.f32 0.0, %v600
  %v602 = vpop.f32.mrb[0].mxu0
  %v603 = vpop.f32.mrb[0].mxu0
  %v604 = vadd.f32 0.0, %v603
  %v605 = vpop.f32.mrb[0].mxu0
  %606 = vmatprep.mubr.bf16.mxu0 %v457
  %607 = vmatmul.mubr.bf16.gmra.mrb[0].mxu0 %v299
  %v608 = vpop.f32.mrb[0].mxu0
  %v609 = vadd.f32 0.0, %v608
  %v610 = vpop.f32.mrb[0].mxu0
  %v611 = vpop.f32.mrb[0].mxu0
  %v612 = vadd.f32 0.0, %v611
  %v613 = vpop.f32.mrb[0].mxu0
  %614 = vmatprep.mubr.bf16.mxu0 %v460
  %615 = vmatmul.mubr.bf16.gmra.mrb[0].mxu0 %v301
  %v616 = vpop.f32.mrb[0].mxu0
  %v617 = vadd.f32 0.0, %v616
  %v618 = vpop.f32.mrb[0].mxu0
  %v619 = vpop.f32.mrb[0].mxu0
  %v620 = vadd.f32 0.0, %v619
  %v621 = vpop.f32.mrb[0].mxu0
  %622 = vmatprep.mubr.bf16.mxu0 %v463
  %623 = vmatmul.mubr.bf16.gmra.mrb[0].mxu0 %v303
  %v624 = vpop.f32.mrb[0].mxu0
  %v625 = vadd.f32 0.0, %v624
  %v626 = vpop.f32.mrb[0].mxu0
  %v627 = vpop.f32.mrb[0].mxu0
  %v628 = vadd.f32 0.0, %v627
  %v629 = vpop.f32.mrb[0].mxu0
  %630 = vmatprep.mubr.bf16.mxu0 %v466
  %631 = vmatmul.mubr.bf16.gmra.mrb[0].mxu0 %v305
  %v632 = vpop.f32.mrb[0].mxu0
  %v633 = vadd.f32 0.0, %v632
  %v634 = vpop.f32.mrb[0].mxu0
  %v635 = vpop.f32.mrb[0].mxu0
  %v636 = vadd.f32 0.0, %v635
  %v637 = vpop.f32.mrb[0].mxu0
  %638 = vmatprep.mubr.bf16.mxu0 %v469
  %639 = vmatmul.mubr.bf16.gmra.mrb[0].mxu0 %v307
  %v640 = vpop.f32.mrb[0].mxu0
  %v641 = vadd.f32 0.0, %v640
  %v642 = vpop.f32.mrb[0].mxu0
  %v643 = vpop.f32.mrb[0].mxu0
  %v644 = vadd.f32 0.0, %v643
  %v645 = vpop.f32.mrb[0].mxu0
  %646 = vmatprep.mubr.bf16.mxu0 %v472
  %647 = vmatmul.mubr.bf16.gmra.mrb[0].mxu0 %v309
  %v648 = vpop.f32.mrb[0].mxu0
  %v649 = vadd.f32 0.0, %v648
  %v650 = vpop.f32.mrb[0].mxu0
  %v651 = vpop.f32.mrb[0].mxu0
  %v652 = vadd.f32 0.0, %v651
  %v653 = vpop.f32.mrb[0].mxu0
  %654 = vmatprep.mubr.bf16.mxu0 %v475
  %655 = vmatmul.mubr.bf16.gmra.mrb[0].mxu0 %v311
  %v656 = vpop.f32.mrb[0].mxu0
  %v657 = vadd.f32 0.0, %v656
  %v658 = vpop.f32.mrb[0].mxu0
  %v659 = vpop.f32.mrb[0].mxu0
  %v660 = vadd.f32 0.0, %v659
  %v661 = vpop.f32.mrb[0].mxu0
  %662 = vmatprep.mubr.bf16.mxu0 %v478
  %663 = vmatmul.mubr.bf16.gmra.mrb[0].mxu0 %v313
  %v664 = vpop.f32.mrb[0].mxu0
  %v665 = vadd.f32 0.0, %v664
  %v666 = vpop.f32.mrb[0].mxu0
  %v667 = vpop.f32.mrb[0].mxu0
  %v668 = vadd.f32 0.0, %v667
  %v669 = vpop.f32.mrb[0].mxu0
  %670 = vmatprep.mubr.bf16.mxu0 %v481
  %671 = vmatmul.mubr.bf16.gmra.mrb[0].mxu0 %v315
  %v672 = vpop.f32.mrb[0].mxu0
  %v673 = vadd.f32 0.0, %v672
  %v674 = vpop.f32.mrb[0].mxu0
  %v675 = vpop.f32.mrb[0].mxu0
  %v676 = vadd.f32 0.0, %v675
  %v677 = vpop.f32.mrb[0].mxu0
  %678 = vmatprep.mubr.bf16.mxu0 %v484
  %679 = vmatmul.mubr.bf16.gmra.mrb[0].mxu0 %v317
  %v680 = vpop.f32.mrb[0].mxu0
  %v681 = vadd.f32 0.0, %v680
  %v682 = vpop.f32.mrb[0].mxu0
  %v683 = vpop.f32.mrb[0].mxu0
  %v684 = vadd.f32 0.0, %v683
  %v685 = vpop.f32.mrb[0].mxu0
  %686 = vmatprep.mubr.bf16.mxu0 %v487
  %687 = vmatmul.mubr.bf16.gmra.mrb[0].mxu0 %v319
  %v688 = vpop.f32.mrb[0].mxu0
  %v689 = vadd.f32 0.0, %v688
  %v690 = vpop.f32.mrb[0].mxu0
  %v691 = vpop.f32.mrb[0].mxu0
  %v692 = vadd.f32 0.0, %v691
  %v693 = vpop.f32.mrb[0].mxu0
  %694 = vmatprep.mubr.bf16.mxu0 %v490
  %695 = vmatmul.mubr.bf16.gmra.mrb[0].mxu0 %v321
  %v696 = vpop.f32.mrb[0].mxu0
  %v697 = vadd.f32 0.0, %v696
  %v698 = vpop.f32.mrb[0].mxu0
  %v699 = vpop.f32.mrb[0].mxu0
  %v700 = vadd.f32 0.0, %v699
  %v701 = vpop.f32.mrb[0].mxu0
  %702 = vmatprep.mubr.bf16.mxu0 %v493
  %703 = vmatmul.mubr.bf16.gmra.mrb[0].mxu0 %v323
  %v704 = vpop.f32.mrb[0].mxu0
  %v705 = vadd.f32 0.0, %v704
  %v706 = vpop.f32.mrb[0].mxu0
  %v707 = vpop.f32.mrb[0].mxu0
  %v708 = vadd.f32 0.0, %v707
  %v709 = vpop.f32.mrb[0].mxu0
  %710 = vmatprep.mubr.bf16.mxu0 %v496
  %711 = vmatmul.mubr.bf16.gmra.mrb[0].mxu0 %v325
  %v712 = vpop.f32.mrb[0].mxu0
  %v713 = vadd.f32 0.0, %v712
  %v714 = vpop.f32.mrb[0].mxu0
  %v715 = vpop.f32.mrb[0].mxu0
  %v716 = vadd.f32 0.0, %v715
  %v717 = vpop.f32.mrb[0].mxu0
  %718 = vmatprep.mubr.bf16.mxu0 %v499
  %719 = vmatmul.mubr.bf16.gmra.mrb[0].mxu0 %v327
  %v720 = vpop.f32.mrb[0].mxu0
  %v721 = vadd.f32 0.0, %v720
  %v722 = vpop.f32.mrb[0].mxu0
  %v723 = vpop.f32.mrb[0].mxu0
  %v724 = vadd.f32 0.0, %v723
  %v725 = vpop.f32.mrb[0].mxu0
  %726 = vmatprep.mubr.bf16.mxu0 %v502
  %727 = vmatmul.mubr.bf16.gmra.mrb[0].mxu0 %v329
  %v728 = vpop.f32.mrb[0].mxu0
  %v729 = vadd.f32 0.0, %v728
  %v730 = vpop.f32.mrb[0].mxu0
  %v731 = vpop.f32.mrb[0].mxu0
  %v732 = vadd.f32 0.0, %v731
  %v733 = vpop.f32.mrb[0].mxu0
  %734 = vmatprep.mubr.bf16.mxu0 %v505
  %735 = vmatmul.mubr.bf16.gmra.mrb[0].mxu0 %v331
  %v736 = vpop.f32.mrb[0].mxu0
  %v737 = vadd.f32 0.0, %v736
  %v738 = vpop.f32.mrb[0].mxu0
  %v739 = vpop.f32.mrb[0].mxu0
  %v740 = vadd.f32 0.0, %v739
  %v741 = vpop.f32.mrb[0].mxu0
  %742 = vmatprep.mubr.bf16.mxu0 %v508
  %743 = vmatmul.mubr.bf16.gmra.mrb[0].mxu0 %v333
  %v744 = vpop.f32.mrb[0].mxu0
  %v745 = vadd.f32 0.0, %v744
  %v746 = vpop.f32.mrb[0].mxu0
  %v747 = vpop.f32.mrb[0].mxu0
  %v748 = vadd.f32 0.0, %v747
  %v749 = vpop.f32.mrb[0].mxu0
  %750 = vmatprep.mubr.bf16.mxu0 %v511
  %751 = vmatmul.mubr.bf16.gmra.mrb[0].mxu0 %v335
  %v752 = vpop.f32.mrb[0].mxu0
  %v753 = vadd.f32 0.0, %v752
  %v754 = vpop.f32.mrb[0].mxu0
  %v755 = vpop.f32.mrb[0].mxu0
  %v756 = vadd.f32 0.0, %v755
  %v757 = vpop.f32.mrb[0].mxu0
  %758 = vmatprep.mubr.bf16.mxu0 %v514
  %759 = vmatmul.mubr.bf16.gmra.mrb[0].mxu0 %v337
  %v760 = vpop.f32.mrb[0].mxu0
  %v761 = vadd.f32 0.0, %v760
  %v762 = vpop.f32.mrb[0].mxu0
  %v763 = vpop.f32.mrb[0].mxu0
  %v764 = vadd.f32 0.0, %v763
  %v765 = vpop.f32.mrb[0].mxu0
  %766 = vmatprep.mubr.bf16.mxu0 %v517
  %767 = vmatmul.mubr.bf16.gmra.mrb[0].mxu0 %v339
  %v768 = vpop.f32.mrb[0].mxu0
  %v769 = vadd.f32 0.0, %v768
  %v770 = vpop.f32.mrb[0].mxu0
  %v771 = vpop.f32.mrb[0].mxu0
  %v772 = vadd.f32 0.0, %v771
  %v773 = vpop.f32.mrb[0].mxu0
  %774 = vmatprep.mubr.bf16.mxu0 %v520
  %775 = vmatmul.mubr.bf16.gmra.mrb[0].mxu0 %v341
  %v776 = vpop.f32.mrb[0].mxu0
  %v777 = vadd.f32 0.0, %v776
  %v778 = vpop.f32.mrb[0].mxu0
  %v779 = vpop.f32.mrb[0].mxu0
  %v780 = vadd.f32 0.0, %v779
  %v781 = vpop.f32.mrb[0].mxu0
  %782 = vmatprep.mubr.bf16.mxu0 %v523
  %783 = vmatmul.mubr.bf16.gmra.mrb[0].mxu0 %v343
  %v784 = vpop.f32.mrb[0].mxu0
  %v785 = vadd.f32 0.0, %v784
  %v786 = vpop.f32.mrb[0].mxu0
  %v787 = vpop.f32.mrb[0].mxu0
  %v788 = vadd.f32 0.0, %v787
  %v789 = vpop.f32.mrb[0].mxu0
  %790 = vmatprep.mubr.bf16.mxu0 %v526
  %791 = vmatmul.mubr.bf16.gmra.mrb[0].mxu0 %v345
  %v792 = vpop.f32.mrb[0].mxu0
  %v793 = vadd.f32 0.0, %v792
  %v794 = vpop.f32.mrb[0].mxu0
  %v795 = vpop.f32.mrb[0].mxu0
  %v796 = vadd.f32 0.0, %v795
  %v797 = vpop.f32.mrb[0].mxu0
  %798 = vmatprep.mubr.bf16.mxu0 %v529
  %799 = vmatmul.mubr.bf16.gmra.mrb[0].mxu0 %v347
  %v800 = vpop.f32.mrb[0].mxu0
  %v801 = vadd.f32 0.0, %v800
  %v802 = vpop.f32.mrb[0].mxu0
  %v803 = vpop.f32.mrb[0].mxu0
  %v804 = vadd.f32 0.0, %v803
  %v805 = vpop.f32.mrb[0].mxu0
  %806 = vmatprep.mubr.bf16.mxu0 %v532
  %807 = vmatmul.mubr.bf16.gmra.mrb[0].mxu0 %v349
  %v808 = vpop.f32.mrb[0].mxu0
  %v809 = vadd.f32 0.0, %v808
  %v810 = vpop.f32.mrb[0].mxu0
  %v811 = vpop.f32.mrb[0].mxu0
  %v812 = vadd.f32 0.0, %v811
  %v813 = vpop.f32.mrb[0].mxu0
  %814 = vmatprep.mubr.bf16.mxu0 %v535
  %815 = vmatmul.mubr.bf16.gmra.mrb[0].mxu0 %v351
  %v816 = vpop.f32.mrb[0].mxu0
  %v817 = vadd.f32 0.0, %v816
  %v818 = vpop.f32.mrb[0].mxu0
  %v819 = vpop.f32.mrb[0].mxu0
  %v820 = vadd.f32 0.0, %v819
  %v821 = vpop.f32.mrb[0].mxu0
  %822 = vmatprep.mubr.bf16.mxu0 %v538
  %823 = vmatmul.mubr.bf16.gmra.mrb[0].mxu0 %v353
  %v824 = vpop.f32.mrb[0].mxu0
  %v825 = vadd.f32 0.0, %v824
  %v826 = vpop.f32.mrb[0].mxu0
  %v827 = vpop.f32.mrb[0].mxu0
  %v828 = vadd.f32 0.0, %v827
  %v829 = vpop.f32.mrb[0].mxu0
  %830 = vmatprep.mubr.bf16.mxu0 %v541
  %831 = vmatmul.mubr.bf16.gmra.mrb[0].mxu0 %v355
  %v832 = vpop.f32.mrb[0].mxu0
  %v833 = vadd.f32 0.0, %v832
  %v834 = vpop.f32.mrb[0].mxu0
  %v835 = vpop.f32.mrb[0].mxu0
  %v836 = vadd.f32 0.0, %v835
  %v837 = vpop.f32.mrb[0].mxu0
  %838 = vdwg.mxu0
  %v839 = vld [vmem:[%s2] sm:$0x1]
  %v841 = vlaneseq
  %v842 = vshrl.u32 %v841, 7
  %v843 = vsub.s32 0, %v842
  %v844 = vrot.slane %v839, %v843
  %v846 = vmul.f32 %v585, %v844
  %v847 = vmul.f32 %v588, %v844
  %v848 = vmul.f32 %v593, %v844
  %v849 = vmul.f32 %v596, %v844
  %v850 = vmul.f32 %v601, %v844
  %v851 = vmul.f32 %v604, %v844
  %v852 = vmul.f32 %v609, %v844
  %v853 = vmul.f32 %v612, %v844
  %v854 = vmul.f32 %v617, %v844
  %v855 = vmul.f32 %v620, %v844
  %v856 = vmul.f32 %v625, %v844
  %v857 = vmul.f32 %v628, %v844
  %v858 = vmul.f32 %v633, %v844
  %v859 = vmul.f32 %v636, %v844
  %v860 = vmul.f32 %v641, %v844
  %v861 = vmul.f32 %v644, %v844
  %v862 = vmul.f32 %v649, %v844
  %v863 = vmul.f32 %v652, %v844
  %v864 = vmul.f32 %v657, %v844
  %v865 = vmul.f32 %v660, %v844
  %v866 = vmul.f32 %v665, %v844
  %v867 = vmul.f32 %v668, %v844
  %v868 = vmul.f32 %v673, %v844
  %v869 = vmul.f32 %v676, %v844
  %v870 = vmul.f32 %v681, %v844
  %v871 = vmul.f32 %v684, %v844
  %v872 = vmul.f32 %v689, %v844
  %v873 = vmul.f32 %v692, %v844
  %v874 = vmul.f32 %v697, %v844
  %v875 = vmul.f32 %v700, %v844
  %v876 = vmul.f32 %v705, %v844
  %v877 = vmul.f32 %v708, %v844
  %v878 = vmul.f32 %v713, %v844
  %v879 = vmul.f32 %v716, %v844
  %v880 = vmul.f32 %v721, %v844
  %v881 = vmul.f32 %v724, %v844
  %v882 = vmul.f32 %v729, %v844
  %v883 = vmul.f32 %v732, %v844
  %v884 = vmul.f32 %v737, %v844
  %v885 = vmul.f32 %v740, %v844
  %v886 = vmul.f32 %v745, %v844
  %v887 = vmul.f32 %v748, %v844
  %v888 = vmul.f32 %v753, %v844
  %v889 = vmul.f32 %v756, %v844
  %v890 = vmul.f32 %v761, %v844
  %v891 = vmul.f32 %v764, %v844
  %v892 = vmul.f32 %v769, %v844
  %v893 = vmul.f32 %v772, %v844
  %v894 = vmul.f32 %v777, %v844
  %v895 = vmul.f32 %v780, %v844
  %v896 = vmul.f32 %v785, %v844
  %v897 = vmul.f32 %v788, %v844
  %v898 = vmul.f32 %v793, %v844
  %v899 = vmul.f32 %v796, %v844
  %v900 = vmul.f32 %v801, %v844
  %v901 = vmul.f32 %v804, %v844
  %v902 = vmul.f32 %v809, %v844
  %v903 = vmul.f32 %v812, %v844
  %v904 = vmul.f32 %v817, %v844
  %v905 = vmul.f32 %v820, %v844
  %v906 = vmul.f32 %v825, %v844
  %v907 = vmul.f32 %v828, %v844
  %v908 = vmul.f32 %v833, %v844
  %v909 = vmul.f32 %v836, %v844
  %v910 = vld [vmem:[%s3] sm:$0x1]
  %v912 = vlaneseq
  %v913 = vshrl.u32 %v912, 7
  %v914 = vsub.s32 0, %v913
  %v915 = vrot.slane %v910, %v914
  %v917 = vadd.f32 %v846, %v915
  %v918 = vadd.f32 %v847, %v915
  %v919 = vadd.f32 %v848, %v915
  %v920 = vadd.f32 %v849, %v915
  %v921 = vadd.f32 %v850, %v915
  %v922 = vadd.f32 %v851, %v915
  %v923 = vadd.f32 %v852, %v915
  %v924 = vadd.f32 %v853, %v915
  %v925 = vadd.f32 %v854, %v915
  %v926 = vadd.f32 %v855, %v915
  %v927 = vadd.f32 %v856, %v915
  %v928 = vadd.f32 %v857, %v915
  %v929 = vadd.f32 %v858, %v915
  %v930 = vadd.f32 %v859, %v915
  %v931 = vadd.f32 %v860, %v915
  %v932 = vadd.f32 %v861, %v915
  %v933 = vadd.f32 %v862, %v915
  %v934 = vadd.f32 %v863, %v915
  %v935 = vadd.f32 %v864, %v915
  %v936 = vadd.f32 %v865, %v915
  %v937 = vadd.f32 %v866, %v915
  %v938 = vadd.f32 %v867, %v915
  %v939 = vadd.f32 %v868, %v915
  %v940 = vadd.f32 %v869, %v915
  %v941 = vadd.f32 %v870, %v915
  %v942 = vadd.f32 %v871, %v915
  %v943 = vadd.f32 %v872, %v915
  %v944 = vadd.f32 %v873, %v915
  %v945 = vadd.f32 %v874, %v915
  %v946 = vadd.f32 %v875, %v915
  %v947 = vadd.f32 %v876, %v915
  %v948 = vadd.f32 %v877, %v915
  %v949 = vadd.f32 %v878, %v915
  %v950 = vadd.f32 %v879, %v915
  %v951 = vadd.f32 %v880, %v915
  %v952 = vadd.f32 %v881, %v915
  %v953 = vadd.f32 %v882, %v915
  %v954 = vadd.f32 %v883, %v915
  %v955 = vadd.f32 %v884, %v915
  %v956 = vadd.f32 %v885, %v915
  %v957 = vadd.f32 %v886, %v915
  %v958 = vadd.f32 %v887, %v915
  %v959 = vadd.f32 %v888, %v915
  %v960 = vadd.f32 %v889, %v915
  %v961 = vadd.f32 %v890, %v915
  %v962 = vadd.f32 %v891, %v915
  %v963 = vadd.f32 %v892, %v915
  %v964 = vadd.f32 %v893, %v915
  %v965 = vadd.f32 %v894, %v915
  %v966 = vadd.f32 %v895, %v915
  %v967 = vadd.f32 %v896, %v915
  %v968 = vadd.f32 %v897, %v915
  %v969 = vadd.f32 %v898, %v915
  %v970 = vadd.f32 %v899, %v915
  %v971 = vadd.f32 %v900, %v915
  %v972 = vadd.f32 %v901, %v915
  %v973 = vadd.f32 %v902, %v915
  %v974 = vadd.f32 %v903, %v915
  %v975 = vadd.f32 %v904, %v915
  %v976 = vadd.f32 %v905, %v915
  %v977 = vadd.f32 %v906, %v915
  %v978 = vadd.f32 %v907, %v915
  %v979 = vadd.f32 %v908, %v915
  %v980 = vadd.f32 %v909, %v915
  %v981 = vmax.f32 %v917, 0.0
  %v982 = vmax.f32 %v918, 0.0
  %v983 = vmax.f32 %v919, 0.0
  %v984 = vmax.f32 %v920, 0.0
  %v985 = vmax.f32 %v921, 0.0
  %v986 = vmax.f32 %v922, 0.0
  %v987 = vmax.f32 %v923, 0.0
  %v988 = vmax.f32 %v924, 0.0
  %v989 = vmax.f32 %v925, 0.0
  %v990 = vmax.f32 %v926, 0.0
  %v991 = vmax.f32 %v927, 0.0
  %v992 = vmax.f32 %v928, 0.0
  %v993 = vmax.f32 %v929, 0.0
  %v994 = vmax.f32 %v930, 0.0
  %v995 = vmax.f32 %v931, 0.0
  %v996 = vmax.f32 %v932, 0.0
  %v997 = vmax.f32 %v933, 0.0
  %v998 = vmax.f32 %v934, 0.0
  %v999 = vmax.f32 %v935, 0.0
  %v1000 = vmax.f32 %v936, 0.0
  %v1001 = vmax.f32 %v937, 0.0
  %v1002 = vmax.f32 %v938, 0.0
  %v1003 = vmax.f32 %v939, 0.0
  %v1004 = vmax.f32 %v940, 0.0
  %v1005 = vmax.f32 %v941, 0.0
  %v1006 = vmax.f32 %v942, 0.0
  %v1007 = vmax.f32 %v943, 0.0
  %v1008 = vmax.f32 %v944, 0.0
  %v1009 = vmax.f32 %v945, 0.0
  %v1010 = vmax.f32 %v946, 0.0
  %v1011 = vmax.f32 %v947, 0.0
  %v1012 = vmax.f32 %v948, 0.0
  %v1013 = vmax.f32 %v949, 0.0
  %v1014 = vmax.f32 %v950, 0.0
  %v1015 = vmax.f32 %v951, 0.0
  %v1016 = vmax.f32 %v952, 0.0
  %v1017 = vmax.f32 %v953, 0.0
  %v1018 = vmax.f32 %v954, 0.0
  %v1019 = vmax.f32 %v955, 0.0
  %v1020 = vmax.f32 %v956, 0.0
  %v1021 = vmax.f32 %v957, 0.0
  %v1022 = vmax.f32 %v958, 0.0
  %v1023 = vmax.f32 %v959, 0.0
  %v1024 = vmax.f32 %v960, 0.0
  %v1025 = vmax.f32 %v961, 0.0
  %v1026 = vmax.f32 %v962, 0.0
  %v1027 = vmax.f32 %v963, 0.0
  %v1028 = vmax.f32 %v964, 0.0
  %v1029 = vmax.f32 %v965, 0.0
  %v1030 = vmax.f32 %v966, 0.0
  %v1031 = vmax.f32 %v967, 0.0
  %v1032 = vmax.f32 %v968, 0.0
  %v1033 = vmax.f32 %v969, 0.0
  %v1034 = vmax.f32 %v970, 0.0
  %v1035 = vmax.f32 %v971, 0.0
  %v1036 = vmax.f32 %v972, 0.0
  %v1037 = vmax.f32 %v973, 0.0
  %v1038 = vmax.f32 %v974, 0.0
  %v1039 = vmax.f32 %v975, 0.0
  %v1040 = vmax.f32 %v976, 0.0
  %v1041 = vmax.f32 %v977, 0.0
  %v1042 = vmax.f32 %v978, 0.0
  %v1043 = vmax.f32 %v979, 0.0
  %v1044 = vmax.f32 %v980, 0.0
  %vm1045 = vcmask 130048
  %1046 = vst.msk [vmem:[%s4] sm:$0xff] %vm1045, %v981
  %1047 = vst.msk [vmem:[%s4 + $0x8] sm:$0xff] %vm1045, %v982
  %1048 = vst.msk [vmem:[%s4 + $0x10] sm:$0xff] %vm1045, %v983
  %1049 = vst.msk [vmem:[%s4 + $0x18] sm:$0xff] %vm1045, %v984
  %1050 = vst.msk [vmem:[%s4 + $0x20] sm:$0xff] %vm1045, %v985
  %1051 = vst.msk [vmem:[%s4 + $0x28] sm:$0xff] %vm1045, %v986
  %1052 = vst.msk [vmem:[%s4 + $0x30] sm:$0xff] %vm1045, %v987
  %1053 = vst.msk [vmem:[%s4 + $0x38] sm:$0xff] %vm1045, %v988
  %1054 = vst.msk [vmem:[%s4 + $0x40] sm:$0xff] %vm1045, %v989
  %1055 = vst.msk [vmem:[%s4 + $0x48] sm:$0xff] %vm1045, %v990
  %1056 = vst.msk [vmem:[%s4 + $0x50] sm:$0xff] %vm1045, %v991
  %1057 = vst.msk [vmem:[%s4 + $0x58] sm:$0xff] %vm1045, %v992
  %1058 = vst.msk [vmem:[%s4 + $0x60] sm:$0xff] %vm1045, %v993
  %1059 = vst.msk [vmem:[%s4 + $0x68] sm:$0xff] %vm1045, %v994
  %1060 = vst.msk [vmem:[%s4 + $0x70] sm:$0xff] %vm1045, %v995
  %1061 = vst.msk [vmem:[%s4 + $0x78] sm:$0xff] %vm1045, %v996
  %1062 = vst.msk [vmem:[%s4 + $0x80] sm:$0xff] %vm1045, %v997
  %1063 = vst.msk [vmem:[%s4 + $0x88] sm:$0xff] %vm1045, %v998
  %1064 = vst.msk [vmem:[%s4 + $0x90] sm:$0xff] %vm1045, %v999
  %1065 = vst.msk [vmem:[%s4 + $0x98] sm:$0xff] %vm1045, %v1000
  %1066 = vst.msk [vmem:[%s4 + $0xa0] sm:$0xff] %vm1045, %v1001
  %1067 = vst.msk [vmem:[%s4 + $0xa8] sm:$0xff] %vm1045, %v1002
  %1068 = vst.msk [vmem:[%s4 + $0xb0] sm:$0xff] %vm1045, %v1003
  %1069 = vst.msk [vmem:[%s4 + $0xb8] sm:$0xff] %vm1045, %v1004
  %1070 = vst.msk [vmem:[%s4 + $0xc0] sm:$0xff] %vm1045, %v1005
  %1071 = vst.msk [vmem:[%s4 + $0xc8] sm:$0xff] %vm1045, %v1006
  %1072 = vst.msk [vmem:[%s4 + $0xd0] sm:$0xff] %vm1045, %v1007
  %1073 = vst.msk [vmem:[%s4 + $0xd8] sm:$0xff] %vm1045, %v1008
  %1074 = vst.msk [vmem:[%s4 + $0xe0] sm:$0xff] %vm1045, %v1009
  %1075 = vst.msk [vmem:[%s4 + $0xe8] sm:$0xff] %vm1045, %v1010
  %1076 = vst.msk [vmem:[%s4 + $0xf0] sm:$0xff] %vm1045, %v1011
  %1077 = vst.msk [vmem:[%s4 + $0xf8] sm:$0xff] %vm1045, %v1012
  %1078 = vst.msk [vmem:[%s4 + $0x100] sm:$0xff] %vm1045, %v1013
  %1079 = vst.msk [vmem:[%s4 + $0x108] sm:$0xff] %vm1045, %v1014
  %1080 = vst.msk [vmem:[%s4 + $0x110] sm:$0xff] %vm1045, %v1015
  %1081 = vst.msk [vmem:[%s4 + $0x118] sm:$0xff] %vm1045, %v1016
  %1082 = vst.msk [vmem:[%s4 + $0x120] sm:$0xff] %vm1045, %v1017
  %1083 = vst.msk [vmem:[%s4 + $0x128] sm:$0xff] %vm1045, %v1018
  %1084 = vst.msk [vmem:[%s4 + $0x130] sm:$0xff] %vm1045, %v1019
  %1085 = vst.msk [vmem:[%s4 + $0x138] sm:$0xff] %vm1045, %v1020
  %1086 = vst.msk [vmem:[%s4 + $0x140] sm:$0xff] %vm1045, %v1021
  %1087 = vst.msk [vmem:[%s4 + $0x148] sm:$0xff] %vm1045, %v1022
  %1088 = vst.msk [vmem:[%s4 + $0x150] sm:$0xff] %vm1045, %v1023
  %1089 = vst.msk [vmem:[%s4 + $0x158] sm:$0xff] %vm1045, %v1024
  %1090 = vst.msk [vmem:[%s4 + $0x160] sm:$0xff] %vm1045, %v1025
  %1091 = vst.msk [vmem:[%s4 + $0x168] sm:$0xff] %vm1045, %v1026
  %1092 = vst.msk [vmem:[%s4 + $0x170] sm:$0xff] %vm1045, %v1027
  %1093 = vst.msk [vmem:[%s4 + $0x178] sm:$0xff] %vm1045, %v1028
  %1094 = vst.msk [vmem:[%s4 + $0x180] sm:$0xff] %vm1045, %v1029
  %1095 = vst.msk [vmem:[%s4 + $0x188] sm:$0xff] %vm1045, %v1030
  %1096 = vst.msk [vmem:[%s4 + $0x190] sm:$0xff] %vm1045, %v1031
  %1097 = vst.msk [vmem:[%s4 + $0x198] sm:$0xff] %vm1045, %v1032
  %1098 = vst.msk [vmem:[%s4 + $0x1a0] sm:$0xff] %vm1045, %v1033
  %1099 = vst.msk [vmem:[%s4 + $0x1a8] sm:$0xff] %vm1045, %v1034
  %1100 = vst.msk [vmem:[%s4 + $0x1b0] sm:$0xff] %vm1045, %v1035
  %1101 = vst.msk [vmem:[%s4 + $0x1b8] sm:$0xff] %vm1045, %v1036
  %1102 = vst.msk [vmem:[%s4 + $0x1c0] sm:$0xff] %vm1045, %v1037
  %1103 = vst.msk [vmem:[%s4 + $0x1c8] sm:$0xff] %vm1045, %v1038
  %1104 = vst.msk [vmem:[%s4 + $0x1d0] sm:$0xff] %vm1045, %v1039
  %1105 = vst.msk [vmem:[%s4 + $0x1d8] sm:$0xff] %vm1045, %v1040
  %1106 = vst.msk [vmem:[%s4 + $0x1e0] sm:$0xff] %vm1045, %v1041
  %1107 = vst.msk [vmem:[%s4 + $0x1e8] sm:$0xff] %vm1045, %v1042
  %1108 = vst.msk [vmem:[%s4 + $0x1f0] sm:$0xff] %vm1045, %v1043
  %1109 = vst.msk [vmem:[%s4 + $0x1f8] sm:$0xff] %vm1045, %v1044
  // Predicated region
  $region18: #{densenet_forward.13} parent=0 // pred_check
    _
  $region19: #{densenet_forward.13} parent=0 // pred_check_branch
    %1111 = sbr.rel (0) target = $region21
  $region20: #{densenet_forward.13} parent=0 // pred_region
    _
  $region21: #{densenet_forward.13} parent=0 // pred_fallthru
    _
  // Predicated region
  $region22: #{densenet_forward.13} parent=0 // pred_check
    _
  $region23: #{densenet_forward.13} parent=0 // pred_check_branch
    %1113 = sbr.rel (0) target = $region25
  $region24: #{densenet_forward.13} parent=0 // pred_region
    _
  $region25: #{densenet_forward.13} parent=0 // pred_fallthru
    _

// kernel: densenet_forward.16
$region0: #{densenet_forward.16}
  #allocation0 [shape = 'u32[]', space=smem, size = 0x4, offset = 0x4, fixed_abs, tag = 'smem constant byte address 0x4 - core index']
  #allocation1 [shape = 'u32[144,128]{1,0:T(1,128)}', space=vmem, size = 0x12000, scoped, tag = 'internal scratch']
  %s0 = inlined_call_operand.vmem [shape: bf16[128,144], index: 0, kind: input, shape index: {}]
  %s1 = inlined_call_operand.vmem [shape: bf16[144,8], index: 1, kind: input, shape index: {}]
  %s2 = inlined_call_operand.vmem [shape: f32[128,8], index: 2, kind: output, shape index: {}]
  %s3 = sld [smem:[#allocation0]]
  $region18: #{densenet_forward.16} parent=0
    _
  %s5 = ssub.s32 1, %s3
  %s6 = scalar_select 0, %s5, %s3
  // Predicated region
  $region2: #{densenet_forward.16} parent=0 // pred_check
    _
  $region3: #{densenet_forward.16} parent=0 // pred_check_branch
    %8 = sbr.rel (0) target = $region5
  $region4: #{densenet_forward.16} parent=0 // pred_region
    _
  $region5: #{densenet_forward.16} parent=0 // pred_fallthru
    _
  // Predicated region
  $region6: #{densenet_forward.16} parent=0 // pred_check
    _
  $region7: #{densenet_forward.16} parent=0 // pred_check_branch
    %10 = sbr.rel (0) target = $region9
  $region8: #{densenet_forward.16} parent=0 // pred_region
    _
  $region9: #{densenet_forward.16} parent=0 // pred_fallthru
    _
  %v12 = vld [vmem:[%s0] sm:$0xff]
  %v13 = vld [vmem:[%s0 + $0x8] sm:$0xff]
  %v14 = vld [vmem:[%s0 + $0x10] sm:$0xff]
  %v15 = vld [vmem:[%s0 + $0x18] sm:$0xff]
  %v16 = vld [vmem:[%s0 + $0x20] sm:$0xff]
  %v17 = vld [vmem:[%s0 + $0x28] sm:$0xff]
  %v18 = vld [vmem:[%s0 + $0x30] sm:$0xff]
  %v19 = vld [vmem:[%s0 + $0x38] sm:$0xff]
  %v20 = vld [vmem:[%s0 + $0x40] sm:$0xff]
  %v21 = vld [vmem:[%s0 + $0x48] sm:$0xff]
  %v22 = vld [vmem:[%s0 + $0x50] sm:$0xff]
  %v23 = vld [vmem:[%s0 + $0x58] sm:$0xff]
  %v24 = vld [vmem:[%s0 + $0x60] sm:$0xff]
  %v25 = vld [vmem:[%s0 + $0x68] sm:$0xff]
  %v26 = vld [vmem:[%s0 + $0x70] sm:$0xff]
  %v27 = vld [vmem:[%s0 + $0x78] sm:$0xff]
  %v28 = vld [vmem:[%s1] sm:$0xf]
  %v29 = vld [vmem:[%s1 + $0x4] sm:$0xf]
  %v30 = vld [vmem:[%s1 + $0x8] sm:$0xf]
  %v31 = vld [vmem:[%s1 + $0xc] sm:$0xf]
  %v32 = vld [vmem:[%s1 + $0x10] sm:$0xf]
  %v33 = vld [vmem:[%s1 + $0x14] sm:$0xf]
  %v34 = vld [vmem:[%s1 + $0x18] sm:$0xf]
  %v35 = vld [vmem:[%s1 + $0x1c] sm:$0xf]
  %v36 = vld [vmem:[%s1 + $0x20] sm:$0xf]
  %v37 = vld [vmem:[%s1 + $0x24] sm:$0xf]
  %v38 = vld [vmem:[%s1 + $0x28] sm:$0xf]
  %v39 = vld [vmem:[%s1 + $0x2c] sm:$0xf]
  %v40 = vld [vmem:[%s1 + $0x30] sm:$0xf]
  %v41 = vld [vmem:[%s1 + $0x34] sm:$0xf]
  %v42 = vld [vmem:[%s1 + $0x38] sm:$0xf]
  %v43 = vld [vmem:[%s1 + $0x3c] sm:$0xf]
  %v44 = vld [vmem:[%s1 + $0x40] sm:$0xf]
  %v45 = vld [vmem:[%s1 + $0x44] sm:$0xf]
  %v62 = vunpack.c.l.b16 %v12
  %v63 = vunpack.c.h.b16 %v12
  %v64 = vunpack.c.l.b16 %v13
  %v65 = vunpack.c.h.b16 %v13
  %v66 = vunpack.c.l.b16 %v14
  %v67 = vunpack.c.h.b16 %v14
  %v68 = vunpack.c.l.b16 %v15
  %v69 = vunpack.c.h.b16 %v15
  %v70 = vunpack.c.l.b16 %v16
  %v71 = vunpack.c.h.b16 %v16
  %v72 = vunpack.c.l.b16 %v17
  %v73 = vunpack.c.h.b16 %v17
  %v74 = vunpack.c.l.b16 %v18
  %v75 = vunpack.c.h.b16 %v18
  %v76 = vunpack.c.l.b16 %v19
  %v77 = vunpack.c.h.b16 %v19
  %v78 = vunpack.c.l.b16 %v20
  %v79 = vunpack.c.h.b16 %v20
  %v80 = vunpack.c.l.b16 %v21
  %v81 = vunpack.c.h.b16 %v21
  %v82 = vunpack.c.l.b16 %v22
  %v83 = vunpack.c.h.b16 %v22
  %v84 = vunpack.c.l.b16 %v23
  %v85 = vunpack.c.h.b16 %v23
  %v86 = vunpack.c.l.b16 %v24
  %v87 = vunpack.c.h.b16 %v24
  %v88 = vunpack.c.l.b16 %v25
  %v89 = vunpack.c.h.b16 %v25
  %v90 = vunpack.c.l.b16 %v26
  %v91 = vunpack.c.h.b16 %v26
  %v92 = vunpack.c.l.b16 %v27
  %v93 = vunpack.c.h.b16 %v27
  %v94 = vpack.c.b16 %v64, %v62
  %v95 = vpack.c.b16 %v65, %v63
  %v96 = vpack.c.b16 %v68, %v66
  %v97 = vpack.c.b16 %v69, %v67
  %v98 = vpack.c.b16 %v72, %v70
  %v99 = vpack.c.b16 %v73, %v71
  %v100 = vpack.c.b16 %v76, %v74
  %v101 = vpack.c.b16 %v77, %v75
  %v102 = vpack.c.b16 %v80, %v78
  %v103 = vpack.c.b16 %v81, %v79
  %v104 = vpack.c.b16 %v84, %v82
  %v105 = vpack.c.b16 %v85, %v83
  %v106 = vpack.c.b16 %v88, %v86
  %v107 = vpack.c.b16 %v89, %v87
  %v108 = vpack.c.b16 %v92, %v90
  %v109 = vpack.c.b16 %v93, %v91
  %v136 = vunpack.c.l.b16 %v28
  %v137 = vunpack.c.l.b16 %v29
  %v138 = vunpack.c.l.b16 %v30
  %v139 = vunpack.c.l.b16 %v31
  %v140 = vunpack.c.l.b16 %v32
  %v141 = vunpack.c.l.b16 %v33
  %v142 = vunpack.c.l.b16 %v34
  %v143 = vunpack.c.l.b16 %v35
  %v144 = vunpack.c.l.b16 %v36
  %v145 = vunpack.c.l.b16 %v37
  %v146 = vunpack.c.l.b16 %v38
  %v147 = vunpack.c.l.b16 %v39
  %v148 = vunpack.c.l.b16 %v40
  %v149 = vunpack.c.l.b16 %v41
  %v150 = vunpack.c.l.b16 %v42
  %v151 = vunpack.c.l.b16 %v43
  %v152 = vunpack.c.l.b16 %v44
  %v153 = vunpack.c.l.b16 %v45
  %v154 = vpack.c.b16 %v137, %v136
  %v155 = vpack.c.b16 %v139, %v138
  %v156 = vpack.c.b16 %v141, %v140
  %v157 = vpack.c.b16 %v143, %v142
  %v158 = vpack.c.b16 %v145, %v144
  %v159 = vpack.c.b16 %v147, %v146
  %v160 = vpack.c.b16 %v149, %v148
  %v161 = vpack.c.b16 %v151, %v150
  %v162 = vpack.c.b16 %v153, %v152
  %vm172 = vcmask 130048
  %v174 = vsel %vm172, %v95, 0
  %v177 = vsel %vm172, %v97, 0
  %v180 = vsel %vm172, %v99, 0
  %v183 = vsel %vm172, %v101, 0
  %v186 = vsel %vm172, %v103, 0
  %v189 = vsel %vm172, %v105, 0
  %v192 = vsel %vm172, %v107, 0
  %v195 = vsel %vm172, %v109, 0
  %197 = vmatprep.subr.bf16.mxu0 0
  %198 = vmatpush1.bf16.msra.mxu0 %v154
  %199 = vmatprep.subr.bf16.mxu0 0
  %200 = vmatpush1.bf16.msra.mxu0 %v155
  %201 = vmatprep.subr.bf16.mxu0 0
  %202 = vmatpush1.bf16.msra.mxu0 %v156
  %203 = vmatprep.subr.bf16.mxu0 0
  %204 = vmatpush1.bf16.msra.mxu0 %v157
  %205 = vmatprep.subr.bf16.mxu0 0
  %206 = vmatpush1.bf16.msra.mxu0 %v158
  %207 = vmatprep.subr.bf16.mxu0 0
  %208 = vmatpush1.bf16.msra.mxu0 %v159
  %209 = vmatprep.subr.bf16.mxu0 0
  %210 = vmatpush1.bf16.msra.mxu0 %v160
  %211 = vmatprep.subr.bf16.mxu0 0
  %212 = vmatpush1.bf16.msra.mxu0 %v161
  %213 = vmatprep.subr.bf16.mxu0 0
  %214 = vmatpush1.bf16.msra.mxu0 %v162
  %215 = vmatprep.subr.bf16.mxu0 0
  %216 = vmatpush1.bf16.msra.mxu0 0
  %217 = vmatprep.subr.bf16.mxu0 0
  %218 = vmatpush1.bf16.msra.mxu0 0
  %219 = vmatprep.subr.bf16.mxu0 0
  %220 = vmatpush1.bf16.msra.mxu0 0
  %221 = vmatprep.subr.bf16.mxu0 0
  %222 = vmatpush1.bf16.msra.mxu0 0
  %223 = vmatprep.subr.bf16.mxu0 0
  %224 = vmatpush1.bf16.msra.mxu0 0
  %225 = vmatprep.subr.bf16.mxu0 0
  %226 = vmatpush1.bf16.msra.mxu0 0
  %227 = vmatprep.subr.bf16.mxu0 0
  %228 = vmatpush1.bf16.msra.mxu0 0
  %229 = vmatprep.mubr.bf16.mxu0 %v174
  %230 = vmatmul.mubr.bf16.gmra.mrb[0].mxu0 %v94
  %v231 = vpop.f32.mrb[0].mxu0
  %v232 = vadd.f32 0.0, %v231
  %v233 = vpop.f32.mrb[0].mxu0
  %v234 = vpop.f32.mrb[0].mxu0
  %v235 = vadd.f32 0.0, %v234
  %v236 = vpop.f32.mrb[0].mxu0
  %237 = vmatprep.mubr.bf16.mxu0 %v177
  %238 = vmatmul.mubr.bf16.gmra.mrb[0].mxu0 %v96
  %v239 = vpop.f32.mrb[0].mxu0
  %v240 = vadd.f32 0.0, %v239
  %v241 = vpop.f32.mrb[0].mxu0
  %v242 = vpop.f32.mrb[0].mxu0
  %v243 = vadd.f32 0.0, %v242
  %v244 = vpop.f32.mrb[0].mxu0
  %245 = vmatprep.mubr.bf16.mxu0 %v180
  %246 = vmatmul.mubr.bf16.gmra.mrb[0].mxu0 %v98
  %v247 = vpop.f32.mrb[0].mxu0
  %v248 = vadd.f32 0.0, %v247
  %v249 = vpop.f32.mrb[0].mxu0
  %v250 = vpop.f32.mrb[0].mxu0
  %v251 = vadd.f32 0.0, %v250
  %v252 = vpop.f32.mrb[0].mxu0
  %253 = vmatprep.mubr.bf16.mxu0 %v183
  %254 = vmatmul.mubr.bf16.gmra.mrb[0].mxu0 %v100
  %v255 = vpop.f32.mrb[0].mxu0
  %v256 = vadd.f32 0.0, %v255
  %v257 = vpop.f32.mrb[0].mxu0
  %v258 = vpop.f32.mrb[0].mxu0
  %v259 = vadd.f32 0.0, %v258
  %v260 = vpop.f32.mrb[0].mxu0
  %261 = vmatprep.mubr.bf16.mxu0 %v186
  %262 = vmatmul.mubr.bf16.gmra.mrb[0].mxu0 %v102
  %v263 = vpop.f32.mrb[0].mxu0
  %v264 = vadd.f32 0.0, %v263
  %v265 = vpop.f32.mrb[0].mxu0
  %v266 = vpop.f32.mrb[0].mxu0
  %v267 = vadd.f32 0.0, %v266
  %v268 = vpop.f32.mrb[0].mxu0
  %269 = vmatprep.mubr.bf16.mxu0 %v189
  %270 = vmatmul.mubr.bf16.gmra.mrb[0].mxu0 %v104
  %v271 = vpop.f32.mrb[0].mxu0
  %v272 = vadd.f32 0.0, %v271
  %v273 = vpop.f32.mrb[0].mxu0
  %v274 = vpop.f32.mrb[0].mxu0
  %v275 = vadd.f32 0.0, %v274
  %v276 = vpop.f32.mrb[0].mxu0
  %277 = vmatprep.mubr.bf16.mxu0 %v192
  %278 = vmatmul.mubr.bf16.gmra.mrb[0].mxu0 %v106
  %v279 = vpop.f32.mrb[0].mxu0
  %v280 = vadd.f32 0.0, %v279
  %v281 = vpop.f32.mrb[0].mxu0
  %v282 = vpop.f32.mrb[0].mxu0
  %v283 = vadd.f32 0.0, %v282
  %v284 = vpop.f32.mrb[0].mxu0
  %285 = vmatprep.mubr.bf16.mxu0 %v195
  %286 = vmatmul.mubr.bf16.gmra.mrb[0].mxu0 %v108
  %v287 = vpop.f32.mrb[0].mxu0
  %v288 = vadd.f32 0.0, %v287
  %v289 = vpop.f32.mrb[0].mxu0
  %v290 = vpop.f32.mrb[0].mxu0
  %v291 = vadd.f32 0.0, %v290
  %v292 = vpop.f32.mrb[0].mxu0
  %293 = vdwg.mxu0
  %vm294 = vcmask 64512
  %295 = vst.msk [vmem:[%s2] sm:$0xff] %vm294, %v232
  %296 = vst.msk [vmem:[%s2 + $0x8] sm:$0xff] %vm294, %v235
  %297 = vst.msk [vmem:[%s2 + $0x10] sm:$0xff] %vm294, %v240
  %298 = vst.msk [vmem:[%s2 + $0x18] sm:$0xff] %vm294, %v243
  %299 = vst.msk [vmem:[%s2 + $0x20] sm:$0xff] %vm294, %v248
  %300 = vst.msk [vmem:[%s2 + $0x28] sm:$0xff] %vm294, %v251
  %301 = vst.msk [vmem:[%s2 + $0x30] sm:$0xff] %vm294, %v256
  %302 = vst.msk [vmem:[%s2 + $0x38] sm:$0xff] %vm294, %v259
  %303 = vst.msk [vmem:[%s2 + $0x40] sm:$0xff] %vm294, %v264
  %304 = vst.msk [vmem:[%s2 + $0x48] sm:$0xff] %vm294, %v267
  %305 = vst.msk [vmem:[%s2 + $0x50] sm:$0xff] %vm294, %v272
  %306 = vst.msk [vmem:[%s2 + $0x58] sm:$0xff] %vm294, %v275
  %307 = vst.msk [vmem:[%s2 + $0x60] sm:$0xff] %vm294, %v280
  %308 = vst.msk [vmem:[%s2 + $0x68] sm:$0xff] %vm294, %v283
  %309 = vst.msk [vmem:[%s2 + $0x70] sm:$0xff] %vm294, %v288
  %310 = vst.msk [vmem:[%s2 + $0x78] sm:$0xff] %vm294, %v291
  // Predicated region
  $region10: #{densenet_forward.16} parent=0 // pred_check
    _
  $region11: #{densenet_forward.16} parent=0 // pred_check_branch
    %312 = sbr.rel (0) target = $region13
  $region12: #{densenet_forward.16} parent=0 // pred_region
    _
  $region13: #{densenet_forward.16} parent=0 // pred_fallthru
    _
  // Predicated region
  $region14: #{densenet_forward.16} parent=0 // pred_check
    _
  $region15: #{densenet_forward.16} parent=0 // pred_check_branch
    %314 = sbr.rel (0) target = $region17
  $region16: #{densenet_forward.16} parent=0 // pred_region
    _
  $region17: #{densenet_forward.16} parent=0 // pred_fallthru
    _

// kernel: densenet_forward.19
$region0: #{densenet_forward.19}
  #allocation0 [shape = 'u32[]', space=smem, size = 0x4, offset = 0x4, fixed_abs, tag = 'smem constant byte address 0x4 - core index']
  #allocation1 [shape = 'u32[144,128]{1,0:T(1,128)}', space=vmem, size = 0x12000, scoped, tag = 'internal scratch']
  %s0 = inlined_call_operand.vmem [shape: f32[2,4,4,32], index: 0, kind: input, shape index: {}]
  %s1 = inlined_call_operand.vmem [shape: f32[2,4,4,32], index: 1, kind: input, shape index: {}]
  %s2 = inlined_call_operand.vmem [shape: f32[2,4,4,32], index: 2, kind: input, shape index: {}]
  %s3 = inlined_call_operand.vmem [shape: f32[2,4,4,32], index: 3, kind: input, shape index: {}]
  %s4 = inlined_call_operand.vmem [shape: f32[1,1,1,32], index: 4, kind: input, shape index: {}]
  %s5 = inlined_call_operand.vmem [shape: f32[1,1,1,32], index: 5, kind: input, shape index: {}]
  %s6 = inlined_call_operand.vmem [shape: bf16[2,4,4,32], index: 6, kind: output, shape index: {}]
  %s7 = sld [smem:[#allocation0]]
  $region34: #{densenet_forward.19} parent=0
    _
  %s9 = ssub.s32 1, %s7
  %s10 = scalar_select 0, %s9, %s7
  // Predicated region
  $region2: #{densenet_forward.19} parent=0 // pred_check
    _
  $region3: #{densenet_forward.19} parent=0 // pred_check_branch
    %12 = sbr.rel (0) target = $region5
  $region4: #{densenet_forward.19} parent=0 // pred_region
    _
  $region5: #{densenet_forward.19} parent=0 // pred_fallthru
    _
  // Predicated region
  $region6: #{densenet_forward.19} parent=0 // pred_check
    _
  $region7: #{densenet_forward.19} parent=0 // pred_check_branch
    %14 = sbr.rel (0) target = $region9
  $region8: #{densenet_forward.19} parent=0 // pred_region
    _
  $region9: #{densenet_forward.19} parent=0 // pred_fallthru
    _
  // Predicated region
  $region10: #{densenet_forward.19} parent=0 // pred_check
    _
  $region11: #{densenet_forward.19} parent=0 // pred_check_branch
    %16 = sbr.rel (0) target = $region13
  $region12: #{densenet_forward.19} parent=0 // pred_region
    _
  $region13: #{densenet_forward.19} parent=0 // pred_fallthru
    _
  // Predicated region
  $region14: #{densenet_forward.19} parent=0 // pred_check
    _
  $region15: #{densenet_forward.19} parent=0 // pred_check_branch
    %18 = sbr.rel (0) target = $region17
  $region16: #{densenet_forward.19} parent=0 // pred_region
    _
  $region17: #{densenet_forward.19} parent=0 // pred_fallthru
    _
  // Predicated region
  $region18: #{densenet_forward.19} parent=0 // pred_check
    _
  $region19: #{densenet_forward.19} parent=0 // pred_check_branch
    %20 = sbr.rel (0) target = $region21
  $region20: #{densenet_forward.19} parent=0 // pred_region
    _
  $region21: #{densenet_forward.19} parent=0 // pred_fallthru
    _
  // Predicated region
  $region22: #{densenet_forward.19} parent=0 // pred_check
    _
  $region23: #{densenet_forward.19} parent=0 // pred_check_branch
    %22 = sbr.rel (0) target = $region25
  $region24: #{densenet_forward.19} parent=0 // pred_region
    _
  $region25: #{densenet_forward.19} parent=0 // pred_fallthru
    _
  %v23 = vld [vmem:[%s4] sm:$0x1]
  %v24 = vld [vmem:[%s5] sm:$0x1]
  %v25 = vld [vmem:[%s0] sm:$0xf]
  %v26 = vld [vmem:[%s0 + $0x4] sm:$0xf]
  %v27 = vld [vmem:[%s0 + $0x8] sm:$0xf]
  %v28 = vld [vmem:[%s0 + $0xc] sm:$0xf]
  %v29 = vld [vmem:[%s0 + $0x10] sm:$0xf]
  %v30 = vld [vmem:[%s0 + $0x14] sm:$0xf]
  %v31 = vld [vmem:[%s0 + $0x18] sm:$0xf]
  %v32 = vld [vmem:[%s0 + $0x1c] sm:$0xf]
  %v34 = vlaneseq
  %v35 = vshrl.u32 %v34, 7
  %v36 = vsub.s32 0, %v35
  %v37 = vrot.slane %v23, %v36
  %v39 = vmul.f32 %v25, %v37
  %v40 = vmul.f32 %v26, %v37
  %v41 = vmul.f32 %v27, %v37
  %v42 = vmul.f32 %v28, %v37
  %v43 = vmul.f32 %v29, %v37
  %v44 = vmul.f32 %v30, %v37
  %v45 = vmul.f32 %v31, %v37
  %v46 = vmul.f32 %v32, %v37
  %v48 = vlaneseq
  %v49 = vshrl.u32 %v48, 7
  %v50 = vsub.s32 0, %v49
  %v51 = vrot.slane %v24, %v50
  %v53 = vadd.f32 %v39, %v51
  %v54 = vadd.f32 %v40, %v51
  %v55 = vadd.f32 %v41, %v51
  %v56 = vadd.f32 %v42, %v51
  %v57 = vadd.f32 %v43, %v51
  %v58 = vadd.f32 %v44, %v51
  %v59 = vadd.f32 %v45, %v51
  %v60 = vadd.f32 %v46, %v51
  %v61 = vmax.f32 %v53, 0.0
  %v62 = vmax.f32 %v54, 0.0
  %v63 = vmax.f32 %v55, 0.0
  %v64 = vmax.f32 %v56, 0.0
  %v65 = vmax.f32 %v57, 0.0
  %v66 = vmax.f32 %v58, 0.0
  %v67 = vmax.f32 %v59, 0.0
  %v68 = vmax.f32 %v60, 0.0
  %v69 = vld [vmem:[%s1] sm:$0xf]
  %v70 = vld [vmem:[%s1 + $0x4] sm:$0xf]
  %v71 = vld [vmem:[%s1 + $0x8] sm:$0xf]
  %v72 = vld [vmem:[%s1 + $0xc] sm:$0xf]
  %v73 = vld [vmem:[%s1 + $0x10] sm:$0xf]
  %v74 = vld [vmem:[%s1 + $0x14] sm:$0xf]
  %v75 = vld [vmem:[%s1 + $0x18] sm:$0xf]
  %v76 = vld [vmem:[%s1 + $0x1c] sm:$0xf]
  %v77 = vmul.f32 %v69, %v37
  %v78 = vmul.f32 %v70, %v37
  %v79 = vmul.f32 %v71, %v37
  %v80 = vmul.f32 %v72, %v37
  %v81 = vmul.f32 %v73, %v37
  %v82 = vmul.f32 %v74, %v37
  %v83 = vmul.f32 %v75, %v37
  %v84 = vmul.f32 %v76, %v37
  %v85 = vadd.f32 %v77, %v51
  %v86 = vadd.f32 %v78, %v51
  %v87 = vadd.f32 %v79, %v51
  %v88 = vadd.f32 %v80, %v51
  %v89 = vadd.f32 %v81, %v51
  %v90 = vadd.f32 %v82, %v51
  %v91 = vadd.f32 %v83, %v51
  %v92 = vadd.f32 %v84, %v51
  %v93 = vmax.f32 %v85, 0.0
  %v94 = vmax.f32 %v86, 0.0
  %v95 = vmax.f32 %v87, 0.0
  %v96 = vmax.f32 %v88, 0.0
  %v97 = vmax.f32 %v89, 0.0
  %v98 = vmax.f32 %v90, 0.0
  %v99 = vmax.f32 %v91, 0.0
  %v100 = vmax.f32 %v92, 0.0
  %v101 = vadd.f32 %v61, %v93
  %v102 = vadd.f32 %v62, %v94
  %v103 = vadd.f32 %v63, %v95
  %v104 = vadd.f32 %v64, %v96
  %v105 = vadd.f32 %v65, %v97
  %v106 = vadd.f32 %v66, %v98
  %v107 = vadd.f32 %v67, %v99
  %v108 = vadd.f32 %v68, %v100
  %v109 = vld [vmem:[%s2] sm:$0xf]
  %v110 = vld [vmem:[%s2 + $0x4] sm:$0xf]
  %v111 = vld [vmem:[%s2 + $0x8] sm:$0xf]
  %v112 = vld [vmem:[%s2 + $0xc] sm:$0xf]
  %v113 = vld [vmem:[%s2 + $0x10] sm:$0xf]
  %v114 = vld [vmem:[%s2 + $0x14] sm:$0xf]
  %v115 = vld [vmem:[%s2 + $0x18] sm:$0xf]
  %v116 = vld [vmem:[%s2 + $0x1c] sm:$0xf]
  %v117 = vmul.f32 %v109, %v37
  %v118 = vmul.f32 %v110, %v37
  %v119 = vmul.f32 %v111, %v37
  %v120 = vmul.f32 %v112, %v37
  %v121 = vmul.f32 %v113, %v37
  %v122 = vmul.f32 %v114, %v37
  %v123 = vmul.f32 %v115, %v37
  %v124 = vmul.f32 %v116, %v37
  %v125 = vadd.f32 %v117, %v51
  %v126 = vadd.f32 %v118, %v51
  %v127 = vadd.f32 %v119, %v51
  %v128 = vadd.f32 %v120, %v51
  %v129 = vadd.f32 %v121, %v51
  %v130 = vadd.f32 %v122, %v51
  %v131 = vadd.f32 %v123, %v51
  %v132 = vadd.f32 %v124, %v51
  %v133 = vmax.f32 %v125, 0.0
  %v134 = vmax.f32 %v126, 0.0
  %v135 = vmax.f32 %v127, 0.0
  %v136 = vmax.f32 %v128, 0.0
  %v137 = vmax.f32 %v129, 0.0
  %v138 = vmax.f32 %v130, 0.0
  %v139 = vmax.f32 %v131, 0.0
  %v140 = vmax.f32 %v132, 0.0
  %v141 = vadd.f32 %v101, %v133
  %v142 = vadd.f32 %v102, %v134
  %v143 = vadd.f32 %v103, %v135
  %v144 = vadd.f32 %v104, %v136
  %v145 = vadd.f32 %v105, %v137
  %v146 = vadd.f32 %v106, %v138
  %v147 = vadd.f32 %v107, %v139
  %v148 = vadd.f32 %v108, %v140
  %v149 = vld [vmem:[%s3] sm:$0xf]
  %v150 = vld [vmem:[%s3 + $0x4] sm:$0xf]
  %v151 = vld [vmem:[%s3 + $0x8] sm:$0xf]
  %v152 = vld [vmem:[%s3 + $0xc] sm:$0xf]
  %v153 = vld [vmem:[%s3 + $0x10] sm:$0xf]
  %v154 = vld [vmem:[%s3 + $0x14] sm:$0xf]
  %v155 = vld [vmem:[%s3 + $0x18] sm:$0xf]
  %v156 = vld [vmem:[%s3 + $0x1c] sm:$0xf]
  %v157 = vmul.f32 %v149, %v37
  %v158 = vmul.f32 %v150, %v37
  %v159 = vmul.f32 %v151, %v37
  %v160 = vmul.f32 %v152, %v37
  %v161 = vmul.f32 %v153, %v37
  %v162 = vmul.f32 %v154, %v37
  %v163 = vmul.f32 %v155, %v37
  %v164 = vmul.f32 %v156, %v37
  %v165 = vadd.f32 %v157, %v51
  %v166 = vadd.f32 %v158, %v51
  %v167 = vadd.f32 %v159, %v51
  %v168 = vadd.f32 %v160, %v51
  %v169 = vadd.f32 %v161, %v51
  %v170 = vadd.f32 %v162, %v51
  %v171 = vadd.f32 %v163, %v51
  %v172 = vadd.f32 %v164, %v51
  %v173 = vmax.f32 %v165, 0.0
  %v174 = vmax.f32 %v166, 0.0
  %v175 = vmax.f32 %v167, 0.0
  %v176 = vmax.f32 %v168, 0.0
  %v177 = vmax.f32 %v169, 0.0
  %v178 = vmax.f32 %v170, 0.0
  %v179 = vmax.f32 %v171, 0.0
  %v180 = vmax.f32 %v172, 0.0
  %v181 = vadd.f32 %v141, %v173
  %v182 = vadd.f32 %v142, %v174
  %v183 = vadd.f32 %v143, %v175
  %v184 = vadd.f32 %v144, %v176
  %v185 = vadd.f32 %v145, %v177
  %v186 = vadd.f32 %v146, %v178
  %v187 = vadd.f32 %v147, %v179
  %v188 = vadd.f32 %v148, %v180
  %v189 = vmul.f32 %v181, 0.25
  %v190 = vmul.f32 %v182, 0.25
  %v191 = vmul.f32 %v183, 0.25
  %v192 = vmul.f32 %v184, 0.25
  %v193 = vmul.f32 %v185, 0.25
  %v194 = vmul.f32 %v186, 0.25
  %v195 = vmul.f32 %v187, 0.25
  %v196 = vmul.f32 %v188, 0.25
  %v197 = vpack.c.bf16 %v189, %v189
  %v198 = vpack.c.bf16 %v190, %v190
  %v199 = vpack.c.bf16 %v191, %v191
  %v200 = vpack.c.bf16 %v192, %v192
  %v201 = vpack.c.bf16 %v193, %v193
  %v202 = vpack.c.bf16 %v194, %v194
  %v203 = vpack.c.bf16 %v195, %v195
  %v204 = vpack.c.bf16 %v196, %v196
  %vm205 = vcmask 254976
  %206 = vst.msk [vmem:[%s6] sm:$0x3] %vm205, %v197
  %207 = vst.msk [vmem:[%s6 + $0x2] sm:$0x3] %vm205, %v198
  %208 = vst.msk [vmem:[%s6 + $0x4] sm:$0x3] %vm205, %v199
  %209 = vst.msk [vmem:[%s6 + $0x6] sm:$0x3] %vm205, %v200
  %210 = vst.msk [vmem:[%s6 + $0x8] sm:$0x3] %vm205, %v201
  %211 = vst.msk [vmem:[%s6 + $0xa] sm:$0x3] %vm205, %v202
  %212 = vst.msk [vmem:[%s6 + $0xc] sm:$0x3] %vm205, %v203
  %213 = vst.msk [vmem:[%s6 + $0xe] sm:$0x3] %vm205, %v204
  // Predicated region
  $region26: #{densenet_forward.19} parent=0 // pred_check
    _
  $region27: #{densenet_forward.19} parent=0 // pred_check_branch
    %215 = sbr.rel (0) target = $region29
  $region28: #{densenet_forward.19} parent=0 // pred_region
    _
  $region29: #{densenet_forward.19} parent=0 // pred_fallthru
    _
  // Predicated region
  $region30: #{densenet_forward.19} parent=0 // pred_check
    _
  $region31: #{densenet_forward.19} parent=0 // pred_check_branch
    %217 = sbr.rel (0) target = $region33
  $region32: #{densenet_forward.19} parent=0 // pred_region
    _
  $region33: #{densenet_forward.19} parent=0 // pred_fallthru
    _

// kernel: densenet_forward.17
$region0: #{densenet_forward.17}
  #allocation0 [shape = 'u32[]', space=smem, size = 0x4, offset = 0x4, fixed_abs, tag = 'smem constant byte address 0x4 - core index']
  #allocation1 [shape = 'u32[144,128]{1,0:T(1,128)}', space=vmem, size = 0x12000, scoped, tag = 'internal scratch']
  %s0 = inlined_call_operand.vmem [shape: f32[128,24], index: 0, kind: input, shape index: {}]
  %s1 = inlined_call_operand.vmem [shape: f32[1,24], index: 1, kind: input, shape index: {}]
  %s2 = inlined_call_operand.vmem [shape: f32[1,24], index: 2, kind: input, shape index: {}]
  %s3 = inlined_call_operand.vmem [shape: bf16[24,16], index: 3, kind: input, shape index: {}]
  %s4 = inlined_call_operand.vmem [shape: f32[1,16], index: 4, kind: input, shape index: {}]
  %s5 = inlined_call_operand.vmem [shape: f32[1,16], index: 5, kind: input, shape index: {}]
  %s6 = inlined_call_operand.vmem [shape: bf16[128,16], index: 6, kind: output, shape index: {}]
  %s7 = sld [smem:[#allocation0]]
  $region34: #{densenet_forward.17} parent=0
    _
  %s9 = ssub.s32 1, %s7
  %s10 = scalar_select 0, %s9, %s7
  // Predicated region
  $region2: #{densenet_forward.17} parent=0 // pred_check
    _
  $region3: #{densenet_forward.17} parent=0 // pred_check_branch
    %12 = sbr.rel (0) target = $region5
  $region4: #{densenet_forward.17} parent=0 // pred_region
    _
  $region5: #{densenet_forward.17} parent=0 // pred_fallthru
    _
  // Predicated region
  $region6: #{densenet_forward.17} parent=0 // pred_check
    _
  $region7: #{densenet_forward.17} parent=0 // pred_check_branch
    %14 = sbr.rel (0) target = $region9
  $region8: #{densenet_forward.17} parent=0 // pred_region
    _
  $region9: #{densenet_forward.17} parent=0 // pred_fallthru
    _
  // Predicated region
  $region10: #{densenet_forward.17} parent=0 // pred_check
    _
  $region11: #{densenet_forward.17} parent=0 // pred_check_branch
    %16 = sbr.rel (0) target = $region13
  $region12: #{densenet_forward.17} parent=0 // pred_region
    _
  $region13: #{densenet_forward.17} parent=0 // pred_fallthru
    _
  // Predicated region
  $region14: #{densenet_forward.17} parent=0 // pred_check
    _
  $region15: #{densenet_forward.17} parent=0 // pred_check_branch
    %18 = sbr.rel (0) target = $region17
  $region16: #{densenet_forward.17} parent=0 // pred_region
    _
  $region17: #{densenet_forward.17} parent=0 // pred_fallthru
    _
  // Predicated region
  $region18: #{densenet_forward.17} parent=0 // pred_check
    _
  $region19: #{densenet_forward.17} parent=0 // pred_check_branch
    %20 = sbr.rel (0) target = $region21
  $region20: #{densenet_forward.17} parent=0 // pred_region
    _
  $region21: #{densenet_forward.17} parent=0 // pred_fallthru
    _
  // Predicated region
  $region22: #{densenet_forward.17} parent=0 // pred_check
    _
  $region23: #{densenet_forward.17} parent=0 // pred_check_branch
    %22 = sbr.rel (0) target = $region25
  $region24: #{densenet_forward.17} parent=0 // pred_region
    _
  $region25: #{densenet_forward.17} parent=0 // pred_fallthru
    _
  %v24 = vld [vmem:[%s0] sm:$0xff]
  %v25 = vld [vmem:[%s0 + $0x8] sm:$0xff]
  %v26 = vld [vmem:[%s0 + $0x10] sm:$0xff]
  %v27 = vld [vmem:[%s0 + $0x18] sm:$0xff]
  %v28 = vld [vmem:[%s0 + $0x20] sm:$0xff]
  %v29 = vld [vmem:[%s0 + $0x28] sm:$0xff]
  %v30 = vld [vmem:[%s0 + $0x30] sm:$0xff]
  %v31 = vld [vmem:[%s0 + $0x38] sm:$0xff]
  %v32 = vld [vmem:[%s0 + $0x40] sm:$0xff]
  %v33 = vld [vmem:[%s0 + $0x48] sm:$0xff]
  %v34 = vld [vmem:[%s0 + $0x50] sm:$0xff]
  %v35 = vld [vmem:[%s0 + $0x58] sm:$0xff]
  %v36 = vld [vmem:[%s0 + $0x60] sm:$0xff]
  %v37 = vld [vmem:[%s0 + $0x68] sm:$0xff]
  %v38 = vld [vmem:[%s0 + $0x70] sm:$0xff]
  %v39 = vld [vmem:[%s0 + $0x78] sm:$0xff]
  %v40 = vld [vmem:[%s1] sm:$0x1]
  %v42 = vlaneseq
  %v43 = vshrl.u32 %v42, 7
  %v44 = vsub.s32 0, %v43
  %v45 = vrot.slane %v40, %v44
  %v47 = vmul.f32 %v24, %v45
  %v48 = vmul.f32 %v25, %v45
  %v49 = vmul.f32 %v26, %v45
  %v50 = vmul.f32 %v27, %v45
  %v51 = vmul.f32 %v28, %v45
  %v52 = vmul.f32 %v29, %v45
  %v53 = vmul.f32 %v30, %v45
  %v54 = vmul.f32 %v31, %v45
  %v55 = vmul.f32 %v32, %v45
  %v56 = vmul.f32 %v33, %v45
  %v57 = vmul.f32 %v34, %v45
  %v58 = vmul.f32 %v35, %v45
  %v59 = vmul.f32 %v36, %v45
  %v60 = vmul.f32 %v37, %v45
  %v61 = vmul.f32 %v38, %v45
  %v62 = vmul.f32 %v39, %v45
  %v63 = vld [vmem:[%s2] sm:$0x1]
  %v65 = vlaneseq
  %v66 = vshrl.u32 %v65, 7
  %v67 = vsub.s32 0, %v66
  %v68 = vrot.slane %v63, %v67
  %v70 = vadd.f32 %v47, %v68
  %v71 = vadd.f32 %v48, %v68
  %v72 = vadd.f32 %v49, %v68
  %v73 = vadd.f32 %v50, %v68
  %v74 = vadd.f32 %v51, %v68
  %v75 = vadd.f32 %v52, %v68
  %v76 = vadd.f32 %v53, %v68
  %v77 = vadd.f32 %v54, %v68
  %v78 = vadd.f32 %v55, %v68
  %v79 = vadd.f32 %v56, %v68
  %v80 = vadd.f32 %v57, %v68
  %v81 = vadd.f32 %v58, %v68
  %v82 = vadd.f32 %v59, %v68
  %v83 = vadd.f32 %v60, %v68
  %v84 = vadd.f32 %v61, %v68
  %v85 = vadd.f32 %v62, %v68
  %v86 = vmax.f32 %v70, 0.0
  %v87 = vmax.f32 %v71, 0.0
  %v88 = vmax.f32 %v72, 0.0
  %v89 = vmax.f32 %v73, 0.0
  %v90 = vmax.f32 %v74, 0.0
  %v91 = vmax.f32 %v75, 0.0
  %v92 = vmax.f32 %v76, 0.0
  %v93 = vmax.f32 %v77, 0.0
  %v94 = vmax.f32 %v78, 0.0
  %v95 = vmax.f32 %v79, 0.0
  %v96 = vmax.f32 %v80, 0.0
  %v97 = vmax.f32 %v81, 0.0
  %v98 = vmax.f32 %v82, 0.0
  %v99 = vmax.f32 %v83, 0.0
  %v100 = vmax.f32 %v84, 0.0
  %v101 = vmax.f32 %v85, 0.0
  %v102 = vpack.c.bf16 %v87, %v86
  %v103 = vpack.c.bf16 %v89, %v88
  %v104 = vpack.c.bf16 %v91, %v90
  %v105 = vpack.c.bf16 %v93, %v92
  %v106 = vpack.c.bf16 %v95, %v94
  %v107 = vpack.c.bf16 %v97, %v96
  %v108 = vpack.c.bf16 %v99, %v98
  %v109 = vpack.c.bf16 %v101, %v100
  %v110 = vld [vmem:[%s3] sm:$0xf]
  %v111 = vld [vmem:[%s3 + $0x4] sm:$0xf]
  %v112 = vld [vmem:[%s3 + $0x8] sm:$0xf]
  %v116 = vunpack.c.l.b16 %v110
  %v117 = vunpack.c.l.b16 %v111
  %v118 = vunpack.c.l.b16 %v112
  %v119 = vpack.c.b16 %v117, %v116
  %v120 = vpack.c.b16 %v118, %v118
  %vm122 = vcmask 195584
  %v124 = vsel %vm122, %v102, 0
  %v127 = vsel %vm122, %v103, 0
  %v130 = vsel %vm122, %v104, 0
  %v133 = vsel %vm122, %v105, 0
  %v136 = vsel %vm122, %v106, 0
  %v139 = vsel %vm122, %v107, 0
  %v142 = vsel %vm122, %v108, 0
  %v145 = vsel %vm122, %v109, 0
  %vm147 = vcmask 1043456
  %v149 = vsel %vm147, %v120, 0
  %151 = vmatprep.subr.bf16.mxu0 0
  %152 = vmatpush1.bf16.msra.mxu0 %v119
  %153 = vmatprep.subr.bf16.mxu0 0
  %154 = vmatpush1.bf16.msra.mxu0 %v149
  %155 = vmatprep.subr.bf16.mxu0 0
  %156 = vmatpush1.bf16.msra.mxu0 0
  %157 = vmatprep.subr.bf16.mxu0 0
  %158 = vmatpush1.bf16.msra.mxu0 0
  %159 = vmatprep.subr.bf16.mxu0 0
  %160 = vmatpush1.bf16.msra.mxu0 0
  %161 = vmatprep.subr.bf16.mxu0 0
  %162 = vmatpush1.bf16.msra.mxu0 0
  %163 = vmatprep.subr.bf16.mxu0 0
  %164 = vmatpush1.bf16.msra.mxu0 0
  %165 = vmatprep.subr.bf16.mxu0 0
  %166 = vmatpush1.bf16.msra.mxu0 0
  %167 = vmatprep.subr.bf16.mxu0 0
  %168 = vmatpush1.bf16.msra.mxu0 0
  %169 = vmatprep.subr.bf16.mxu0 0
  %170 = vmatpush1.bf16.msra.mxu0 0
  %171 = vmatprep.subr.bf16.mxu0 0
  %172 = vmatpush1.bf16.msra.mxu0 0
  %173 = vmatprep.subr.bf16.mxu0 0
  %174 = vmatpush1.bf16.msra.mxu0 0
  %175 = vmatprep.subr.bf16.mxu0 0
  %176 = vmatpush1.bf16.msra.mxu0 0
  %177 = vmatprep.subr.bf16.mxu0 0
  %178 = vmatpush1.bf16.msra.mxu0 0
  %179 = vmatprep.subr.bf16.mxu0 0
  %180 = vmatpush1.bf16.msra.mxu0 0
  %181 = vmatprep.subr.bf16.mxu0 0
  %182 = vmatpush1.bf16.msra.mxu0 0
  %183 = vmatprep.mubr.bf16.mxu0 0
  %184 = vmatmul.mubr.bf16.gmra.mrb[0].mxu0 %v124
  %v185 = vpop.f32.mrb[0].mxu0
  %v186 = vadd.f32 0.0, %v185
  %v187 = vpop.f32.mrb[0].mxu0
  %v188 = vpop.f32.mrb[0].mxu0
  %v189 = vadd.f32 0.0, %v188
  %v190 = vpop.f32.mrb[0].mxu0
  %191 = vmatprep.mubr.bf16.mxu0 0
  %192 = vmatmul.mubr.bf16.gmra.mrb[0].mxu0 %v127
  %v193 = vpop.f32.mrb[0].mxu0
  %v194 = vadd.f32 0.0, %v193
  %v195 = vpop.f32.mrb[0].mxu0
  %v196 = vpop.f32.mrb[0].mxu0
  %v197 = vadd.f32 0.0, %v196
  %v198 = vpop.f32.mrb[0].mxu0
  %199 = vmatprep.mubr.bf16.mxu0 0
  %200 = vmatmul.mubr.bf16.gmra.mrb[0].mxu0 %v130
  %v201 = vpop.f32.mrb[0].mxu0
  %v202 = vadd.f32 0.0, %v201
  %v203 = vpop.f32.mrb[0].mxu0
  %v204 = vpop.f32.mrb[0].mxu0
  %v205 = vadd.f32 0.0, %v204
  %v206 = vpop.f32.mrb[0].mxu0
  %207 = vmatprep.mubr.bf16.mxu0 0
  %208 = vmatmul.mubr.bf16.gmra.mrb[0].mxu0 %v133
  %v209 = vpop.f32.mrb[0].mxu0
  %v210 = vadd.f32 0.0, %v209
  %v211 = vpop.f32.mrb[0].mxu0
  %v212 = vpop.f32.mrb[0].mxu0
  %v213 = vadd.f32 0.0, %v212
  %v214 = vpop.f32.mrb[0].mxu0
  %215 = vmatprep.mubr.bf16.mxu0 0
  %216 = vmatmul.mubr.bf16.gmra.mrb[0].mxu0 %v136
  %v217 = vpop.f32.mrb[0].mxu0
  %v218 = vadd.f32 0.0, %v217
  %v219 = vpop.f32.mrb[0].mxu0
  %v220 = vpop.f32.mrb[0].mxu0
  %v221 = vadd.f32 0.0, %v220
  %v222 = vpop.f32.mrb[0].mxu0
  %223 = vmatprep.mubr.bf16.mxu0 0
  %224 = vmatmul.mubr.bf16.gmra.mrb[0].mxu0 %v139
  %v225 = vpop.f32.mrb[0].mxu0
  %v226 = vadd.f32 0.0, %v225
  %v227 = vpop.f32.mrb[0].mxu0
  %v228 = vpop.f32.mrb[0].mxu0
  %v229 = vadd.f32 0.0, %v228
  %v230 = vpop.f32.mrb[0].mxu0
  %231 = vmatprep.mubr.bf16.mxu0 0
  %232 = vmatmul.mubr.bf16.gmra.mrb[0].mxu0 %v142
  %v233 = vpop.f32.mrb[0].mxu0
  %v234 = vadd.f32 0.0, %v233
  %v235 = vpop.f32.mrb[0].mxu0
  %v236 = vpop.f32.mrb[0].mxu0
  %v237 = vadd.f32 0.0, %v236
  %v238 = vpop.f32.mrb[0].mxu0
  %239 = vmatprep.mubr.bf16.mxu0 0
  %240 = vmatmul.mubr.bf16.gmra.mrb[0].mxu0 %v145
  %v241 = vpop.f32.mrb[0].mxu0
  %v242 = vadd.f32 0.0, %v241
  %v243 = vpop.f32.mrb[0].mxu0
  %v244 = vpop.f32.mrb[0].mxu0
  %v245 = vadd.f32 0.0, %v244
  %v246 = vpop.f32.mrb[0].mxu0
  %247 = vdwg.mxu0
  %v248 = vld [vmem:[%s4] sm:$0x1]
  %v250 = vlaneseq
  %v251 = vshrl.u32 %v250, 7
  %v252 = vsub.s32 0, %v251
  %v253 = vrot.slane %v248, %v252
  %v255 = vmul.f32 %v186, %v253
  %v256 = vmul.f32 %v189, %v253
  %v257 = vmul.f32 %v194, %v253
  %v258 = vmul.f32 %v197, %v253
  %v259 = vmul.f32 %v202, %v253
  %v260 = vmul.f32 %v205, %v253
  %v261 = vmul.f32 %v210, %v253
  %v262 = vmul.f32 %v213, %v253
  %v263 = vmul.f32 %v218, %v253
  %v264 = vmul.f32 %v221, %v253
  %v265 = vmul.f32 %v226, %v253
  %v266 = vmul.f32 %v229, %v253
  %v267 = vmul.f32 %v234, %v253
  %v268 = vmul.f32 %v237, %v253
  %v269 = vmul.f32 %v242, %v253
  %v270 = vmul.f32 %v245, %v253
  %v271 = vld [vmem:[%s5] sm:$0x1]
  %v273 = vlaneseq
  %v274 = vshrl.u32 %v273, 7
  %v275 = vsub.s32 0, %v274
  %v276 = vrot.slane %v271, %v275
  %v278 = vadd.f32 %v255, %v276
  %v279 = vadd.f32 %v256, %v276
  %v280 = vadd.f32 %v257, %v276
  %v281 = vadd.f32 %v258, %v276
  %v282 = vadd.f32 %v259, %v276
  %v283 = vadd.f32 %v260, %v276
  %v284 = vadd.f32 %v261, %v276
  %v285 = vadd.f32 %v262, %v276
  %v286 = vadd.f32 %v263, %v276
  %v287 = vadd.f32 %v264, %v276
  %v288 = vadd.f32 %v265, %v276
  %v289 = vadd.f32 %v266, %v276
  %v290 = vadd.f32 %v267, %v276
  %v291 = vadd.f32 %v268, %v276
  %v292 = vadd.f32 %v269, %v276
  %v293 = vadd.f32 %v270, %v276
  %v294 = vmax.f32 %v278, 0.0
  %v295 = vmax.f32 %v279, 0.0
  %v296 = vmax.f32 %v280, 0.0
  %v297 = vmax.f32 %v281, 0.0
  %v298 = vmax.f32 %v282, 0.0
  %v299 = vmax.f32 %v283, 0.0
  %v300 = vmax.f32 %v284, 0.0
  %v301 = vmax.f32 %v285, 0.0
  %v302 = vmax.f32 %v286, 0.0
  %v303 = vmax.f32 %v287, 0.0
  %v304 = vmax.f32 %v288, 0.0
  %v305 = vmax.f32 %v289, 0.0
  %v306 = vmax.f32 %v290, 0.0
  %v307 = vmax.f32 %v291, 0.0
  %v308 = vmax.f32 %v292, 0.0
  %v309 = vmax.f32 %v293, 0.0
  %v310 = vpack.c.bf16 %v295, %v294
  %v311 = vpack.c.bf16 %v297, %v296
  %v312 = vpack.c.bf16 %v299, %v298
  %v313 = vpack.c.bf16 %v301, %v300
  %v314 = vpack.c.bf16 %v303, %v302
  %v315 = vpack.c.bf16 %v305, %v304
  %v316 = vpack.c.bf16 %v307, %v306
  %v317 = vpack.c.bf16 %v309, %v308
  %v326 = vunpack.c.l.b16 %v310
  %v327 = vunpack.c.h.b16 %v310
  %v328 = vunpack.c.l.b16 %v311
  %v329 = vunpack.c.h.b16 %v311
  %v330 = vunpack.c.l.b16 %v312
  %v331 = vunpack.c.h.b16 %v312
  %v332 = vunpack.c.l.b16 %v313
  %v333 = vunpack.c.h.b16 %v313
  %v334 = vunpack.c.l.b16 %v314
  %v335 = vunpack.c.h.b16 %v314
  %v336 = vunpack.c.l.b16 %v315
  %v337 = vunpack.c.h.b16 %v315
  %v338 = vunpack.c.l.b16 %v316
  %v339 = vunpack.c.h.b16 %v316
  %v340 = vunpack.c.l.b16 %v317
  %v341 = vunpack.c.h.b16 %v317
  %v342 = vpack.c.b16 %v326, %v326
  %v343 = vpack.c.b16 %v327, %v327
  %v344 = vpack.c.b16 %v328, %v328
  %v345 = vpack.c.b16 %v329, %v329
  %v346 = vpack.c.b16 %v330, %v330
  %v347 = vpack.c.b16 %v331, %v331
  %v348 = vpack.c.b16 %v332, %v332
  %v349 = vpack.c.b16 %v333, %v333
  %v350 = vpack.c.b16 %v334, %v334
  %v351 = vpack.c.b16 %v335, %v335
  %v352 = vpack.c.b16 %v336, %v336
  %v353 = vpack.c.b16 %v337, %v337
  %v354 = vpack.c.b16 %v338, %v338
  %v355 = vpack.c.b16 %v339, %v339
  %v356 = vpack.c.b16 %v340, %v340
  %v357 = vpack.c.b16 %v341, %v341
  %vm374 = vcmask 125952
  %375 = vst.msk [vmem:[%s6] sm:$0xf] %vm374, %v342
  %376 = vst.msk [vmem:[%s6 + $0x4] sm:$0xf] %vm374, %v343
  %377 = vst.msk [vmem:[%s6 + $0x8] sm:$0xf] %vm374, %v344
  %378 = vst.msk [vmem:[%s6 + $0xc] sm:$0xf] %vm374, %v345
  %379 = vst.msk [vmem:[%s6 + $0x10] sm:$0xf] %vm374, %v346
  %380 = vst.msk [vmem:[%s6 + $0x14] sm:$0xf] %vm374, %v347
  %381 = vst.msk [vmem:[%s6 + $0x18] sm:$0xf] %vm374, %v348
  %382 = vst.msk [vmem:[%s6 + $0x1c] sm:$0xf] %vm374, %v349
  %383 = vst.msk [vmem:[%s6 + $0x20] sm:$0xf] %vm374, %v350
  %384 = vst.msk [vmem:[%s6 + $0x24] sm:$0xf] %vm374, %v351
  %385 = vst.msk [vmem:[%s6 + $0x28] sm:$0xf] %vm374, %v352
  %386 = vst.msk [vmem:[%s6 + $0x2c] sm:$0xf] %vm374, %v353
  %387 = vst.msk [vmem:[%s6 + $0x30] sm:$0xf] %vm374, %v354
  %388 = vst.msk [vmem:[%s6 + $0x34] sm:$0xf] %vm374, %v355
  %389 = vst.msk [vmem:[%s6 + $0x38] sm:$0xf] %vm374, %v356
  %390 = vst.msk [vmem:[%s6 + $0x3c] sm:$0xf] %vm374, %v357
  // Predicated region
  $region26: #{densenet_forward.17} parent=0 // pred_check
    _
  $region27: #{densenet_forward.17} parent=0 // pred_check_branch
    %392 = sbr.rel (0) target = $region29
  $region28: #{densenet_forward.17} parent=0 // pred_region
    _
  $region29: #{densenet_forward.17} parent=0 // pred_fallthru
    _
  // Predicated region
  $region30: #{densenet_forward.17} parent=0 // pred_check
    _
  $region31: #{densenet_forward.17} parent=0 // pred_check_branch
    %394 = sbr.rel (0) target = $region33
  $region32: #{densenet_forward.17} parent=0 // pred_region
    _
  $region33: #{densenet_forward.17} parent=0 // pred_fallthru
    _

// kernel: densenet_forward.20
$region0: #{densenet_forward.20}
  #allocation0 [shape = 'u32[]', space=smem, size = 0x4, offset = 0x4, fixed_abs, tag = 'smem constant byte address 0x4 - core index']
  #allocation1 [shape = 'u32[144,128]{1,0:T(1,128)}', space=vmem, size = 0x12000, scoped, tag = 'internal scratch']
  %s0 = inlined_call_operand.vmem [shape: bf16[32,32], index: 0, kind: input, shape index: {}]
  %s1 = inlined_call_operand.vmem [shape: bf16[32,16], index: 1, kind: input, shape index: {}]
  %s2 = inlined_call_operand.vmem [shape: f32[32,16], index: 2, kind: output, shape index: {}]
  %s3 = sld [smem:[#allocation0]]
  $region18: #{densenet_forward.20} parent=0
    _
  %s5 = ssub.s32 1, %s3
  %s6 = scalar_select 0, %s5, %s3
  // Predicated region
  $region2: #{densenet_forward.20} parent=0 // pred_check
    _
  $region3: #{densenet_forward.20} parent=0 // pred_check_branch
    %8 = sbr.rel (0) target = $region5
  $region4: #{densenet_forward.20} parent=0 // pred_region
    _
  $region5: #{densenet_forward.20} parent=0 // pred_fallthru
    _
  // Predicated region
  $region6: #{densenet_forward.20} parent=0 // pred_check
    _
  $region7: #{densenet_forward.20} parent=0 // pred_check_branch
    %10 = sbr.rel (0) target = $region9
  $region8: #{densenet_forward.20} parent=0 // pred_region
    _
  $region9: #{densenet_forward.20} parent=0 // pred_fallthru
    _
  %v12 = vld [vmem:[%s0] sm:$0xf]
  %v13 = vld [vmem:[%s0 + $0x4] sm:$0xf]
  %v14 = vld [vmem:[%s0 + $0x8] sm:$0xf]
  %v15 = vld [vmem:[%s0 + $0xc] sm:$0xf]
  %v16 = vld [vmem:[%s1] sm:$0xf]
  %v17 = vld [vmem:[%s1 + $0x4] sm:$0xf]
  %v18 = vld [vmem:[%s1 + $0x8] sm:$0xf]
  %v19 = vld [vmem:[%s1 + $0xc] sm:$0xf]
  %v24 = vunpack.c.l.b16 %v12
  %v25 = vunpack.c.l.b16 %v13
  %v26 = vunpack.c.l.b16 %v14
  %v27 = vunpack.c.l.b16 %v15
  %v28 = vpack.c.b16 %v25, %v24
  %v29 = vpack.c.b16 %v27, %v26
  %v34 = vunpack.c.l.b16 %v16
  %v35 = vunpack.c.l.b16 %v17
  %v36 = vunpack.c.l.b16 %v18
  %v37 = vunpack.c.l.b16 %v19
  %v38 = vpack.c.b16 %v35, %v34
  %v39 = vpack.c.b16 %v37, %v36
  %vm42 = vcmask 261120
  %v44 = vsel %vm42, %v28, 0
  %v47 = vsel %vm42, %v29, 0
  %49 = vmatprep.subr.bf16.mxu0 0
  %50 = vmatpush1.bf16.msra.mxu0 %v38
  %51 = vmatprep.subr.bf16.mxu0 0
  %52 = vmatpush1.bf16.msra.mxu0 %v39
  %53 = vmatprep.subr.bf16.mxu0 0
  %54 = vmatpush1.bf16.msra.mxu0 0
  %55 = vmatprep.subr.bf16.mxu0 0
  %56 = vmatpush1.bf16.msra.mxu0 0
  %57 = vmatprep.subr.bf16.mxu0 0
  %58 = vmatpush1.bf16.msra.mxu0 0
  %59 = vmatprep.subr.bf16.mxu0 0
  %60 = vmatpush1.bf16.msra.mxu0 0
  %61 = vmatprep.subr.bf16.mxu0 0
  %62 = vmatpush1.bf16.msra.mxu0 0
  %63 = vmatprep.subr.bf16.mxu0 0
  %64 = vmatpush1.bf16.msra.mxu0 0
  %65 = vmatprep.subr.bf16.mxu0 0
  %66 = vmatpush1.bf16.msra.mxu0 0
  %67 = vmatprep.subr.bf16.mxu0 0
  %68 = vmatpush1.bf16.msra.mxu0 0
  %69 = vmatprep.subr.bf16.mxu0 0
  %70 = vmatpush1.bf16.msra.mxu0 0
  %71 = vmatprep.subr.bf16.mxu0 0
  %72 = vmatpush1.bf16.msra.mxu0 0
  %73 = vmatprep.subr.bf16.mxu0 0
  %74 = vmatpush1.bf16.msra.mxu0 0
  %75 = vmatprep.subr.bf16.mxu0 0
  %76 = vmatpush1.bf16.msra.mxu0 0
  %77 = vmatprep.subr.bf16.mxu0 0
  %78 = vmatpush1.bf16.msra.mxu0 0
  %79 = vmatprep.subr.bf16.mxu0 0
  %80 = vmatpush1.bf16.msra.mxu0 0
  %81 = vmatprep.mubr.bf16.mxu0 0
  %82 = vmatmul.mubr.bf16.gmra.mrb[0].mxu0 %v44
  %v83 = vpop.f32.mrb[0].mxu0
  %v84 = vadd.f32 0.0, %v83
  %v85 = vpop.f32.mrb[0].mxu0
  %v86 = vpop.f32.mrb[0].mxu0
  %v87 = vadd.f32 0.0, %v86
  %v88 = vpop.f32.mrb[0].mxu0
  %89 = vmatprep.mubr.bf16.mxu0 0
  %90 = vmatmul.mubr.bf16.gmra.mrb[0].mxu0 %v47
  %v91 = vpop.f32.mrb[0].mxu0
  %v92 = vadd.f32 0.0, %v91
  %v93 = vpop.f32.mrb[0].mxu0
  %v94 = vpop.f32.mrb[0].mxu0
  %v95 = vadd.f32 0.0, %v94
  %v96 = vpop.f32.mrb[0].mxu0
  %97 = vdwg.mxu0
  %vm98 = vcmask 130048
  %99 = vst.msk [vmem:[%s2] sm:$0xff] %vm98, %v84
  %100 = vst.msk [vmem:[%s2 + $0x8] sm:$0xff] %vm98, %v87
  %101 = vst.msk [vmem:[%s2 + $0x10] sm:$0xff] %vm98, %v92
  %102 = vst.msk [vmem:[%s2 + $0x18] sm:$0xff] %vm98, %v95
  // Predicated region
  $region10: #{densenet_forward.20} parent=0 // pred_check
    _
  $region11: #{densenet_forward.20} parent=0 // pred_check_branch
    %104 = sbr.rel (0) target = $region13
  $region12: #{densenet_forward.20} parent=0 // pred_region
    _
  $region13: #{densenet_forward.20} parent=0 // pred_fallthru
    _
  // Predicated region
  $region14: #{densenet_forward.20} parent=0 // pred_check
    _
  $region15: #{densenet_forward.20} parent=0 // pred_check_branch
    %106 = sbr.rel (0) target = $region17
  $region16: #{densenet_forward.20} parent=0 // pred_region
    _
  $region17: #{densenet_forward.20} parent=0 // pred_fallthru
    _

// kernel: densenet_forward.21
$region0: #{densenet_forward.21}
  #allocation0 [shape = 'u32[]', space=smem, size = 0x4, offset = 0x4, fixed_abs, tag = 'smem constant byte address 0x4 - core index']
  #allocation1 [shape = 'u32[144,128]{1,0:T(1,128)}', space=vmem, size = 0x12000, scoped, tag = 'internal scratch']
  %s0 = inlined_call_operand.vmem [shape: f32[32,16], index: 0, kind: input, shape index: {}]
  %s1 = inlined_call_operand.vmem [shape: f32[1,16], index: 1, kind: input, shape index: {}]
  %s2 = inlined_call_operand.vmem [shape: f32[1,16], index: 2, kind: input, shape index: {}]
  %s3 = inlined_call_operand.vmem [shape: bf16[16,16], index: 3, kind: input, shape index: {}]
  %s4 = inlined_call_operand.vmem [shape: f32[1,16], index: 4, kind: input, shape index: {}]
  %s5 = inlined_call_operand.vmem [shape: f32[1,16], index: 5, kind: input, shape index: {}]
  %s6 = inlined_call_operand.vmem [shape: bf16[32,16], index: 6, kind: output, shape index: {}]
  %s7 = sld [smem:[#allocation0]]
  $region34: #{densenet_forward.21} parent=0
    _
  %s9 = ssub.s32 1, %s7
  %s10 = scalar_select 0, %s9, %s7
  // Predicated region
  $region2: #{densenet_forward.21} parent=0 // pred_check
    _
  $region3: #{densenet_forward.21} parent=0 // pred_check_branch
    %12 = sbr.rel (0) target = $region5
  $region4: #{densenet_forward.21} parent=0 // pred_region
    _
  $region5: #{densenet_forward.21} parent=0 // pred_fallthru
    _
  // Predicated region
  $region6: #{densenet_forward.21} parent=0 // pred_check
    _
  $region7: #{densenet_forward.21} parent=0 // pred_check_branch
    %14 = sbr.rel (0) target = $region9
  $region8: #{densenet_forward.21} parent=0 // pred_region
    _
  $region9: #{densenet_forward.21} parent=0 // pred_fallthru
    _
  // Predicated region
  $region10: #{densenet_forward.21} parent=0 // pred_check
    _
  $region11: #{densenet_forward.21} parent=0 // pred_check_branch
    %16 = sbr.rel (0) target = $region13
  $region12: #{densenet_forward.21} parent=0 // pred_region
    _
  $region13: #{densenet_forward.21} parent=0 // pred_fallthru
    _
  // Predicated region
  $region14: #{densenet_forward.21} parent=0 // pred_check
    _
  $region15: #{densenet_forward.21} parent=0 // pred_check_branch
    %18 = sbr.rel (0) target = $region17
  $region16: #{densenet_forward.21} parent=0 // pred_region
    _
  $region17: #{densenet_forward.21} parent=0 // pred_fallthru
    _
  // Predicated region
  $region18: #{densenet_forward.21} parent=0 // pred_check
    _
  $region19: #{densenet_forward.21} parent=0 // pred_check_branch
    %20 = sbr.rel (0) target = $region21
  $region20: #{densenet_forward.21} parent=0 // pred_region
    _
  $region21: #{densenet_forward.21} parent=0 // pred_fallthru
    _
  // Predicated region
  $region22: #{densenet_forward.21} parent=0 // pred_check
    _
  $region23: #{densenet_forward.21} parent=0 // pred_check_branch
    %22 = sbr.rel (0) target = $region25
  $region24: #{densenet_forward.21} parent=0 // pred_region
    _
  $region25: #{densenet_forward.21} parent=0 // pred_fallthru
    _
  %v24 = vld [vmem:[%s0] sm:$0xff]
  %v25 = vld [vmem:[%s0 + $0x8] sm:$0xff]
  %v26 = vld [vmem:[%s0 + $0x10] sm:$0xff]
  %v27 = vld [vmem:[%s0 + $0x18] sm:$0xff]
  %v28 = vld [vmem:[%s1] sm:$0x1]
  %v30 = vlaneseq
  %v31 = vshrl.u32 %v30, 7
  %v32 = vsub.s32 0, %v31
  %v33 = vrot.slane %v28, %v32
  %v35 = vmul.f32 %v24, %v33
  %v36 = vmul.f32 %v25, %v33
  %v37 = vmul.f32 %v26, %v33
  %v38 = vmul.f32 %v27, %v33
  %v39 = vld [vmem:[%s2] sm:$0x1]
  %v41 = vlaneseq
  %v42 = vshrl.u32 %v41, 7
  %v43 = vsub.s32 0, %v42
  %v44 = vrot.slane %v39, %v43
  %v46 = vadd.f32 %v35, %v44
  %v47 = vadd.f32 %v36, %v44
  %v48 = vadd.f32 %v37, %v44
  %v49 = vadd.f32 %v38, %v44
  %v50 = vmax.f32 %v46, 0.0
  %v51 = vmax.f32 %v47, 0.0
  %v52 = vmax.f32 %v48, 0.0
  %v53 = vmax.f32 %v49, 0.0
  %v54 = vpack.c.bf16 %v51, %v50
  %v55 = vpack.c.bf16 %v53, %v52
  %v56 = vld [vmem:[%s3] sm:$0xf]
  %v57 = vld [vmem:[%s3 + $0x4] sm:$0xf]
  %v60 = vunpack.c.l.b16 %v56
  %v61 = vunpack.c.l.b16 %v57
  %v62 = vpack.c.b16 %v61, %v60
  %vm64 = vcmask 130048
  %v66 = vsel %vm64, %v54, 0
  %v69 = vsel %vm64, %v55, 0
  %71 = vmatprep.subr.bf16.mxu0 0
  %72 = vmatpush1.bf16.msra.mxu0 %v62
  %73 = vmatprep.subr.bf16.mxu0 0
  %74 = vmatpush1.bf16.msra.mxu0 0
  %75 = vmatprep.subr.bf16.mxu0 0
  %76 = vmatpush1.bf16.msra.mxu0 0
  %77 = vmatprep.subr.bf16.mxu0 0
  %78 = vmatpush1.bf16.msra.mxu0 0
  %79 = vmatprep.subr.bf16.mxu0 0
  %80 = vmatpush1.bf16.msra.mxu0 0
  %81 = vmatprep.subr.bf16.mxu0 0
  %82 = vmatpush1.bf16.msra.mxu0 0
  %83 = vmatprep.subr.bf16.mxu0 0
  %84 = vmatpush1.bf16.msra.mxu0 0
  %85 = vmatprep.subr.bf16.mxu0 0
  %86 = vmatpush1.bf16.msra.mxu0 0
  %87 = vmatprep.subr.bf16.mxu0 0
  %88 = vmatpush1.bf16.msra.mxu0 0
  %89 = vmatprep.subr.bf16.mxu0 0
  %90 = vmatpush1.bf16.msra.mxu0 0
  %91 = vmatprep.subr.bf16.mxu0 0
  %92 = vmatpush1.bf16.msra.mxu0 0
  %93 = vmatprep.subr.bf16.mxu0 0
  %94 = vmatpush1.bf16.msra.mxu0 0
  %95 = vmatprep.subr.bf16.mxu0 0
  %96 = vmatpush1.bf16.msra.mxu0 0
  %97 = vmatprep.subr.bf16.mxu0 0
  %98 = vmatpush1.bf16.msra.mxu0 0
  %99 = vmatprep.subr.bf16.mxu0 0
  %100 = vmatpush1.bf16.msra.mxu0 0
  %101 = vmatprep.subr.bf16.mxu0 0
  %102 = vmatpush1.bf16.msra.mxu0 0
  %103 = vmatprep.mubr.bf16.mxu0 0
  %104 = vmatmul.mubr.bf16.gmra.mrb[0].mxu0 %v66
  %v105 = vpop.f32.mrb[0].mxu0
  %v106 = vadd.f32 0.0, %v105
  %v107 = vpop.f32.mrb[0].mxu0
  %v108 = vpop.f32.mrb[0].mxu0
  %v109 = vadd.f32 0.0, %v108
  %v110 = vpop.f32.mrb[0].mxu0
  %111 = vmatprep.mubr.bf16.mxu0 0
  %112 = vmatmul.mubr.bf16.gmra.mrb[0].mxu0 %v69
  %v113 = vpop.f32.mrb[0].mxu0
  %v114 = vadd.f32 0.0, %v113
  %v115 = vpop.f32.mrb[0].mxu0
  %v116 = vpop.f32.mrb[0].mxu0
  %v117 = vadd.f32 0.0, %v116
  %v118 = vpop.f32.mrb[0].mxu0
  %119 = vdwg.mxu0
  %v120 = vld [vmem:[%s4] sm:$0x1]
  %v122 = vlaneseq
  %v123 = vshrl.u32 %v122, 7
  %v124 = vsub.s32 0, %v123
  %v125 = vrot.slane %v120, %v124
  %v127 = vmul.f32 %v106, %v125
  %v128 = vmul.f32 %v109, %v125
  %v129 = vmul.f32 %v114, %v125
  %v130 = vmul.f32 %v117, %v125
  %v131 = vld [vmem:[%s5] sm:$0x1]
  %v133 = vlaneseq
  %v134 = vshrl.u32 %v133, 7
  %v135 = vsub.s32 0, %v134
  %v136 = vrot.slane %v131, %v135
  %v138 = vadd.f32 %v127, %v136
  %v139 = vadd.f32 %v128, %v136
  %v140 = vadd.f32 %v129, %v136
  %v141 = vadd.f32 %v130, %v136
  %v142 = vmax.f32 %v138, 0.0
  %v143 = vmax.f32 %v139, 0.0
  %v144 = vmax.f32 %v140, 0.0
  %v145 = vmax.f32 %v141, 0.0
  %v146 = vpack.c.bf16 %v143, %v142
  %v147 = vpack.c.bf16 %v145, %v144
  %v150 = vunpack.c.l.b16 %v146
  %v151 = vunpack.c.h.b16 %v146
  %v152 = vunpack.c.l.b16 %v147
  %v153 = vunpack.c.h.b16 %v147
  %v154 = vpack.c.b16 %v150, %v150
  %v155 = vpack.c.b16 %v151, %v151
  %v156 = vpack.c.b16 %v152, %v152
  %v157 = vpack.c.b16 %v153, %v153
  %vm162 = vcmask 125952
  %163 = vst.msk [vmem:[%s6] sm:$0xf] %vm162, %v154
  %164 = vst.msk [vmem:[%s6 + $0x4] sm:$0xf] %vm162, %v155
  %165 = vst.msk [vmem:[%s6 + $0x8] sm:$0xf] %vm162, %v156
  %166 = vst.msk [vmem:[%s6 + $0xc] sm:$0xf] %vm162, %v157
  // Predicated region
  $region26: #{densenet_forward.21} parent=0 // pred_check
    _
  $region27: #{densenet_forward.21} parent=0 // pred_check_branch
    %168 = sbr.rel (0) target = $region29
  $region28: #{densenet_forward.21} parent=0 // pred_region
    _
  $region29: #{densenet_forward.21} parent=0 // pred_fallthru
    _
  // Predicated region
  $region30: #{densenet_forward.21} parent=0 // pred_check
    _
  $region31: #{densenet_forward.21} parent=0 // pred_check_branch
    %170 = sbr.rel (0) target = $region33
  $region32: #{densenet_forward.21} parent=0 // pred_region
    _
  $region33: #{densenet_forward.21} parent=0 // pred_fallthru
    _

// kernel: densenet_forward.22
$region0: #{densenet_forward.22}
  #allocation0 [shape = 'u32[]', space=smem, size = 0x4, offset = 0x4, fixed_abs, tag = 'smem constant byte address 0x4 - core index']
  #allocation1 [shape = 'u32[144,128]{1,0:T(1,128)}', space=vmem, size = 0x12000, scoped, tag = 'internal scratch']
  %s0 = inlined_call_operand.vmem [shape: bf16[32,144], index: 0, kind: input, shape index: {}]
  %s1 = inlined_call_operand.vmem [shape: bf16[144,8], index: 1, kind: input, shape index: {}]
  %s2 = inlined_call_operand.vmem [shape: f32[32,8], index: 2, kind: output, shape index: {}]
  %s3 = sld [smem:[#allocation0]]
  $region18: #{densenet_forward.22} parent=0
    _
  %s5 = ssub.s32 1, %s3
  %s6 = scalar_select 0, %s5, %s3
  // Predicated region
  $region2: #{densenet_forward.22} parent=0 // pred_check
    _
  $region3: #{densenet_forward.22} parent=0 // pred_check_branch
    %8 = sbr.rel (0) target = $region5
  $region4: #{densenet_forward.22} parent=0 // pred_region
    _
  $region5: #{densenet_forward.22} parent=0 // pred_fallthru
    _
  // Predicated region
  $region6: #{densenet_forward.22} parent=0 // pred_check
    _
  $region7: #{densenet_forward.22} parent=0 // pred_check_branch
    %10 = sbr.rel (0) target = $region9
  $region8: #{densenet_forward.22} parent=0 // pred_region
    _
  $region9: #{densenet_forward.22} parent=0 // pred_fallthru
    _
  %v12 = vld [vmem:[%s0] sm:$0xff]
  %v13 = vld [vmem:[%s0 + $0x8] sm:$0xff]
  %v14 = vld [vmem:[%s0 + $0x10] sm:$0xff]
  %v15 = vld [vmem:[%s0 + $0x18] sm:$0xff]
  %v16 = vld [vmem:[%s1] sm:$0xf]
  %v17 = vld [vmem:[%s1 + $0x4] sm:$0xf]
  %v18 = vld [vmem:[%s1 + $0x8] sm:$0xf]
  %v19 = vld [vmem:[%s1 + $0xc] sm:$0xf]
  %v20 = vld [vmem:[%s1 + $0x10] sm:$0xf]
  %v21 = vld [vmem:[%s1 + $0x14] sm:$0xf]
  %v22 = vld [vmem:[%s1 + $0x18] sm:$0xf]
  %v23 = vld [vmem:[%s1 + $0x1c] sm:$0xf]
  %v24 = vld [vmem:[%s1 + $0x20] sm:$0xf]
  %v25 = vld [vmem:[%s1 + $0x24] sm:$0xf]
  %v26 = vld [vmem:[%s1 + $0x28] sm:$0xf]
  %v27 = vld [vmem:[%s1 + $0x2c] sm:$0xf]
  %v28 = vld [vmem:[%s1 + $0x30] sm:$0xf]
  %v29 = vld [vmem:[%s1 + $0x34] sm:$0xf]
  %v30 = vld [vmem:[%s1 + $0x38] sm:$0xf]
  %v31 = vld [vmem:[%s1 + $0x3c] sm:$0xf]
  %v32 = vld [vmem:[%s1 + $0x40] sm:$0xf]
  %v33 = vld [vmem:[%s1 + $0x44] sm:$0xf]
  %v38 = vunpack.c.l.b16 %v12
  %v39 = vunpack.c.h.b16 %v12
  %v40 = vunpack.c.l.b16 %v13
  %v41 = vunpack.c.h.b16 %v13
  %v42 = vunpack.c.l.b16 %v14
  %v43 = vunpack.c.h.b16 %v14
  %v44 = vunpack.c.l.b16 %v15
  %v45 = vunpack.c.h.b16 %v15
  %v46 = vpack.c.b16 %v40, %v38
  %v47 = vpack.c.b16 %v41, %v39
  %v48 = vpack.c.b16 %v44, %v42
  %v49 = vpack.c.b16 %v45, %v43
  %v70 = vunpack.c.l.b16 %v16
  %v71 = vunpack.c.l.b16 %v17
  %v72 = vunpack.c.l.b16 %v18
  %v73 = vunpack.c.l.b16 %v19
  %v74 = vunpack.c.l.b16 %v20
  %v75 = vunpack.c.l.b16 %v21
  %v76 = vunpack.c.l.b16 %v22
  %v77 = vunpack.c.l.b16 %v23
  %v78 = vunpack.c.l.b16 %v24
  %v79 = vunpack.c.l.b16 %v25
  %v80 = vunpack.c.l.b16 %v26
  %v81 = vunpack.c.l.b16 %v27
  %v82 = vunpack.c.l.b16 %v28
  %v83 = vunpack.c.l.b16 %v29
  %v84 = vunpack.c.l.b16 %v30
  %v85 = vunpack.c.l.b16 %v31
  %v86 = vunpack.c.l.b16 %v32
  %v87 = vunpack.c.l.b16 %v33
  %v88 = vpack.c.b16 %v71, %v70
  %v89 = vpack.c.b16 %v73, %v72
  %v90 = vpack.c.b16 %v75, %v74
  %v91 = vpack.c.b16 %v77, %v76
  %v92 = vpack.c.b16 %v79, %v78
  %v93 = vpack.c.b16 %v81, %v80
  %v94 = vpack.c.b16 %v83, %v82
  %v95 = vpack.c.b16 %v85, %v84
  %v96 = vpack.c.b16 %v87, %v86
  %vm106 = vcmask 130048
  %v108 = vsel %vm106, %v47, 0
  %v111 = vsel %vm106, %v49, 0
  %113 = vmatprep.subr.bf16.mxu0 0
  %114 = vmatpush1.bf16.msra.mxu0 %v88
  %115 = vmatprep.subr.bf16.mxu0 0
  %116 = vmatpush1.bf16.msra.mxu0 %v89
  %117 = vmatprep.subr.bf16.mxu0 0
  %118 = vmatpush1.bf16.msra.mxu0 %v90
  %119 = vmatprep.subr.bf16.mxu0 0
  %120 = vmatpush1.bf16.msra.mxu0 %v91
  %121 = vmatprep.subr.bf16.mxu0 0
  %122 = vmatpush1.bf16.msra.mxu0 %v92
  %123 = vmatprep.subr.bf16.mxu0 0
  %124 = vmatpush1.bf16.msra.mxu0 %v93
  %125 = vmatprep.subr.bf16.mxu0 0
  %126 = vmatpush1.bf16.msra.mxu0 %v94
  %127 = vmatprep.subr.bf16.mxu0 0
  %128 = vmatpush1.bf16.msra.mxu0 %v95
  %129 = vmatprep.subr.bf16.mxu0 0
  %130 = vmatpush1.bf16.msra.mxu0 %v96
  %131 = vmatprep.subr.bf16.mxu0 0
  %132 = vmatpush1.bf16.msra.mxu0 0
  %133 = vmatprep.subr.bf16.mxu0 0
  %134 = vmatpush1.bf16.msra.mxu0 0
  %135 = vmatprep.subr.bf16.mxu0 0
  %136 = vmatpush1.bf16.msra.mxu0 0
  %137 = vmatprep.subr.bf16.mxu0 0
  %138 = vmatpush1.bf16.msra.mxu0 0
  %139 = vmatprep.subr.bf16.mxu0 0
  %140 = vmatpush1.bf16.msra.mxu0 0
  %141 = vmatprep.subr.bf16.mxu0 0
  %142 = vmatpush1.bf16.msra.mxu0 0
  %143 = vmatprep.subr.bf16.mxu0 0
  %144 = vmatpush1.bf16.msra.mxu0 0
  %145 = vmatprep.mubr.bf16.mxu0 %v108
  %146 = vmatmul.mubr.bf16.gmra.mrb[0].mxu0 %v46
  %v147 = vpop.f32.mrb[0].mxu0
  %v148 = vadd.f32 0.0, %v147
  %v149 = vpop.f32.mrb[0].mxu0
  %v150 = vpop.f32.mrb[0].mxu0
  %v151 = vadd.f32 0.0, %v150
  %v152 = vpop.f32.mrb[0].mxu0
  %153 = vmatprep.mubr.bf16.mxu0 %v111
  %154 = vmatmul.mubr.bf16.gmra.mrb[0].mxu0 %v48
  %v155 = vpop.f32.mrb[0].mxu0
  %v156 = vadd.f32 0.0, %v155
  %v157 = vpop.f32.mrb[0].mxu0
  %v158 = vpop.f32.mrb[0].mxu0
  %v159 = vadd.f32 0.0, %v158
  %v160 = vpop.f32.mrb[0].mxu0
  %161 = vdwg.mxu0
  %vm162 = vcmask 64512
  %163 = vst.msk [vmem:[%s2] sm:$0xff] %vm162, %v148
  %164 = vst.msk [vmem:[%s2 + $0x8] sm:$0xff] %vm162, %v151
  %165 = vst.msk [vmem:[%s2 + $0x10] sm:$0xff] %vm162, %v156
  %166 = vst.msk [vmem:[%s2 + $0x18] sm:$0xff] %vm162, %v159
  // Predicated region
  $region10: #{densenet_forward.22} parent=0 // pred_check
    _
  $region11: #{densenet_forward.22} parent=0 // pred_check_branch
    %168 = sbr.rel (0) target = $region13
  $region12: #{densenet_forward.22} parent=0 // pred_region
    _
  $region13: #{densenet_forward.22} parent=0 // pred_fallthru
    _
  // Predicated region
  $region14: #{densenet_forward.22} parent=0 // pred_check
    _
  $region15: #{densenet_forward.22} parent=0 // pred_check_branch
    %170 = sbr.rel (0) target = $region17
  $region16: #{densenet_forward.22} parent=0 // pred_region
    _
  $region17: #{densenet_forward.22} parent=0 // pred_fallthru
    _

// kernel: densenet_forward.23
$region0: #{densenet_forward.23}
  #allocation0 [shape = 'u32[]', space=smem, size = 0x4, offset = 0x4, fixed_abs, tag = 'smem constant byte address 0x4 - core index']
  #allocation1 [shape = 'u32[144,128]{1,0:T(1,128)}', space=vmem, size = 0x12000, scoped, tag = 'internal scratch']
  %s0 = inlined_call_operand.vmem [shape: f32[32,24], index: 0, kind: input, shape index: {}]
  %s1 = inlined_call_operand.vmem [shape: f32[1,24], index: 1, kind: input, shape index: {}]
  %s2 = inlined_call_operand.vmem [shape: f32[1,24], index: 2, kind: input, shape index: {}]
  %s3 = inlined_call_operand.vmem [shape: bf16[24,16], index: 3, kind: input, shape index: {}]
  %s4 = inlined_call_operand.vmem [shape: f32[1,16], index: 4, kind: input, shape index: {}]
  %s5 = inlined_call_operand.vmem [shape: f32[1,16], index: 5, kind: input, shape index: {}]
  %s6 = inlined_call_operand.vmem [shape: bf16[32,16], index: 6, kind: output, shape index: {}]
  %s7 = sld [smem:[#allocation0]]
  $region34: #{densenet_forward.23} parent=0
    _
  %s9 = ssub.s32 1, %s7
  %s10 = scalar_select 0, %s9, %s7
  // Predicated region
  $region2: #{densenet_forward.23} parent=0 // pred_check
    _
  $region3: #{densenet_forward.23} parent=0 // pred_check_branch
    %12 = sbr.rel (0) target = $region5
  $region4: #{densenet_forward.23} parent=0 // pred_region
    _
  $region5: #{densenet_forward.23} parent=0 // pred_fallthru
    _
  // Predicated region
  $region6: #{densenet_forward.23} parent=0 // pred_check
    _
  $region7: #{densenet_forward.23} parent=0 // pred_check_branch
    %14 = sbr.rel (0) target = $region9
  $region8: #{densenet_forward.23} parent=0 // pred_region
    _
  $region9: #{densenet_forward.23} parent=0 // pred_fallthru
    _
  // Predicated region
  $region10: #{densenet_forward.23} parent=0 // pred_check
    _
  $region11: #{densenet_forward.23} parent=0 // pred_check_branch
    %16 = sbr.rel (0) target = $region13
  $region12: #{densenet_forward.23} parent=0 // pred_region
    _
  $region13: #{densenet_forward.23} parent=0 // pred_fallthru
    _
  // Predicated region
  $region14: #{densenet_forward.23} parent=0 // pred_check
    _
  $region15: #{densenet_forward.23} parent=0 // pred_check_branch
    %18 = sbr.rel (0) target = $region17
  $region16: #{densenet_forward.23} parent=0 // pred_region
    _
  $region17: #{densenet_forward.23} parent=0 // pred_fallthru
    _
  // Predicated region
  $region18: #{densenet_forward.23} parent=0 // pred_check
    _
  $region19: #{densenet_forward.23} parent=0 // pred_check_branch
    %20 = sbr.rel (0) target = $region21
  $region20: #{densenet_forward.23} parent=0 // pred_region
    _
  $region21: #{densenet_forward.23} parent=0 // pred_fallthru
    _
  // Predicated region
  $region22: #{densenet_forward.23} parent=0 // pred_check
    _
  $region23: #{densenet_forward.23} parent=0 // pred_check_branch
    %22 = sbr.rel (0) target = $region25
  $region24: #{densenet_forward.23} parent=0 // pred_region
    _
  $region25: #{densenet_forward.23} parent=0 // pred_fallthru
    _
  %v24 = vld [vmem:[%s0] sm:$0xff]
  %v25 = vld [vmem:[%s0 + $0x8] sm:$0xff]
  %v26 = vld [vmem:[%s0 + $0x10] sm:$0xff]
  %v27 = vld [vmem:[%s0 + $0x18] sm:$0xff]
  %v28 = vld [vmem:[%s1] sm:$0x1]
  %v30 = vlaneseq
  %v31 = vshrl.u32 %v30, 7
  %v32 = vsub.s32 0, %v31
  %v33 = vrot.slane %v28, %v32
  %v35 = vmul.f32 %v24, %v33
  %v36 = vmul.f32 %v25, %v33
  %v37 = vmul.f32 %v26, %v33
  %v38 = vmul.f32 %v27, %v33
  %v39 = vld [vmem:[%s2] sm:$0x1]
  %v41 = vlaneseq
  %v42 = vshrl.u32 %v41, 7
  %v43 = vsub.s32 0, %v42
  %v44 = vrot.slane %v39, %v43
  %v46 = vadd.f32 %v35, %v44
  %v47 = vadd.f32 %v36, %v44
  %v48 = vadd.f32 %v37, %v44
  %v49 = vadd.f32 %v38, %v44
  %v50 = vmax.f32 %v46, 0.0
  %v51 = vmax.f32 %v47, 0.0
  %v52 = vmax.f32 %v48, 0.0
  %v53 = vmax.f32 %v49, 0.0
  %v54 = vpack.c.bf16 %v51, %v50
  %v55 = vpack.c.bf16 %v53, %v52
  %v56 = vld [vmem:[%s3] sm:$0xf]
  %v57 = vld [vmem:[%s3 + $0x4] sm:$0xf]
  %v58 = vld [vmem:[%s3 + $0x8] sm:$0xf]
  %v62 = vunpack.c.l.b16 %v56
  %v63 = vunpack.c.l.b16 %v57
  %v64 = vunpack.c.l.b16 %v58
  %v65 = vpack.c.b16 %v63, %v62
  %v66 = vpack.c.b16 %v64, %v64
  %vm68 = vcmask 195584
  %v70 = vsel %vm68, %v54, 0
  %v73 = vsel %vm68, %v55, 0
  %vm75 = vcmask 1043456
  %v77 = vsel %vm75, %v66, 0
  %79 = vmatprep.subr.bf16.mxu0 0
  %80 = vmatpush1.bf16.msra.mxu0 %v65
  %81 = vmatprep.subr.bf16.mxu0 0
  %82 = vmatpush1.bf16.msra.mxu0 %v77
  %83 = vmatprep.subr.bf16.mxu0 0
  %84 = vmatpush1.bf16.msra.mxu0 0
  %85 = vmatprep.subr.bf16.mxu0 0
  %86 = vmatpush1.bf16.msra.mxu0 0
  %87 = vmatprep.subr.bf16.mxu0 0
  %88 = vmatpush1.bf16.msra.mxu0 0
  %89 = vmatprep.subr.bf16.mxu0 0
  %90 = vmatpush1.bf16.msra.mxu0 0
  %91 = vmatprep.subr.bf16.mxu0 0
  %92 = vmatpush1.bf16.msra.mxu0 0
  %93 = vmatprep.subr.bf16.mxu0 0
  %94 = vmatpush1.bf16.msra.mxu0 0
  %95 = vmatprep.subr.bf16.mxu0 0
  %96 = vmatpush1.bf16.msra.mxu0 0
  %97 = vmatprep.subr.bf16.mxu0 0
  %98 = vmatpush1.bf16.msra.mxu0 0
  %99 = vmatprep.subr.bf16.mxu0 0
  %100 = vmatpush1.bf16.msra.mxu0 0
  %101 = vmatprep.subr.bf16.mxu0 0
  %102 = vmatpush1.bf16.msra.mxu0 0
  %103 = vmatprep.subr.bf16.mxu0 0
  %104 = vmatpush1.bf16.msra.mxu0 0
  %105 = vmatprep.subr.bf16.mxu0 0
  %106 = vmatpush1.bf16.msra.mxu0 0
  %107 = vmatprep.subr.bf16.mxu0 0
  %108 = vmatpush1.bf16.msra.mxu0 0
  %109 = vmatprep.subr.bf16.mxu0 0
  %110 = vmatpush1.bf16.msra.mxu0 0
  %111 = vmatprep.mubr.bf16.mxu0 0
  %112 = vmatmul.mubr.bf16.gmra.mrb[0].mxu0 %v70
  %v113 = vpop.f32.mrb[0].mxu0
  %v114 = vadd.f32 0.0, %v113
  %v115 = vpop.f32.mrb[0].mxu0
  %v116 = vpop.f32.mrb[0].mxu0
  %v117 = vadd.f32 0.0, %v116
  %v118 = vpop.f32.mrb[0].mxu0
  %119 = vmatprep.mubr.bf16.mxu0 0
  %120 = vmatmul.mubr.bf16.gmra.mrb[0].mxu0 %v73
  %v121 = vpop.f32.mrb[0].mxu0
  %v122 = vadd.f32 0.0, %v121
  %v123 = vpop.f32.mrb[0].mxu0
  %v124 = vpop.f32.mrb[0].mxu0
  %v125 = vadd.f32 0.0, %v124
  %v126 = vpop.f32.mrb[0].mxu0
  %127 = vdwg.mxu0
  %v128 = vld [vmem:[%s4] sm:$0x1]
  %v130 = vlaneseq
  %v131 = vshrl.u32 %v130, 7
  %v132 = vsub.s32 0, %v131
  %v133 = vrot.slane %v128, %v132
  %v135 = vmul.f32 %v114, %v133
  %v136 = vmul.f32 %v117, %v133
  %v137 = vmul.f32 %v122, %v133
  %v138 = vmul.f32 %v125, %v133
  %v139 = vld [vmem:[%s5] sm:$0x1]
  %v141 = vlaneseq
  %v142 = vshrl.u32 %v141, 7
  %v143 = vsub.s32 0, %v142
  %v144 = vrot.slane %v139, %v143
  %v146 = vadd.f32 %v135, %v144
  %v147 = vadd.f32 %v136, %v144
  %v148 = vadd.f32 %v137, %v144
  %v149 = vadd.f32 %v138, %v144
  %v150 = vmax.f32 %v146, 0.0
  %v151 = vmax.f32 %v147, 0.0
  %v152 = vmax.f32 %v148, 0.0
  %v153 = vmax.f32 %v149, 0.0
  %v154 = vpack.c.bf16 %v151, %v150
  %v155 = vpack.c.bf16 %v153, %v152
  %v158 = vunpack.c.l.b16 %v154
  %v159 = vunpack.c.h.b16 %v154
  %v160 = vunpack.c.l.b16 %v155
  %v161 = vunpack.c.h.b16 %v155
  %v162 = vpack.c.b16 %v158, %v158
  %v163 = vpack.c.b16 %v159, %v159
  %v164 = vpack.c.b16 %v160, %v160
  %v165 = vpack.c.b16 %v161, %v161
  %vm170 = vcmask 125952
  %171 = vst.msk [vmem:[%s6] sm:$0xf] %vm170, %v162
  %172 = vst.msk [vmem:[%s6 + $0x4] sm:$0xf] %vm170, %v163
  %173 = vst.msk [vmem:[%s6 + $0x8] sm:$0xf] %vm170, %v164
  %174 = vst.msk [vmem:[%s6 + $0xc] sm:$0xf] %vm170, %v165
  // Predicated region
  $region26: #{densenet_forward.23} parent=0 // pred_check
    _
  $region27: #{densenet_forward.23} parent=0 // pred_check_branch
    %176 = sbr.rel (0) target = $region29
  $region28: #{densenet_forward.23} parent=0 // pred_region
    _
  $region29: #{densenet_forward.23} parent=0 // pred_fallthru
    _
  // Predicated region
  $region30: #{densenet_forward.23} parent=0 // pred_check
    _
  $region31: #{densenet_forward.23} parent=0 // pred_check_branch
    %178 = sbr.rel (0) target = $region33
  $region32: #{densenet_forward.23} parent=0 // pred_region
    _
  $region33: #{densenet_forward.23} parent=0 // pred_fallthru
    _

// kernel: densenet_forward.25
$region0: #{densenet_forward.25}
  #allocation0 [shape = 'u32[]', space=smem, size = 0x4, offset = 0x4, fixed_abs, tag = 'smem constant byte address 0x4 - core index']
  #allocation1 [shape = 'u32[144,128]{1,0:T(1,128)}', space=vmem, size = 0x12000, scoped, tag = 'internal scratch']
  %s0 = inlined_call_operand.vmem [shape: f32[2,16,32], index: 0, kind: input, shape index: {}]
  %s1 = inlined_call_operand.vmem [shape: f32[1,1,32], index: 1, kind: input, shape index: {}]
  %s2 = inlined_call_operand.vmem [shape: f32[1,1,32], index: 2, kind: input, shape index: {}]
  %s3 = inlined_call_operand.vmem [shape: f32[32,10], index: 3, kind: input, shape index: {}]
  %s4 = inlined_call_operand.vmem [shape: f32[1,10], index: 4, kind: input, shape index: {}]
  %s5 = inlined_call_operand.hbm [shape: f32[2,10], index: 5, kind: output, shape index: {}]
  %s6 = sld [smem:[#allocation0]]
  $region30: #{densenet_forward.25} parent=0
    _
  %s8 = ssub.s32 1, %s6
  %s9 = scalar_select 0, %s8, %s6
  $region1: #{densenet_forward.25} parent=0
    #allocation2 [shape = 'u8[1024]{0}', space=vmem, size = 0x400, scoped, tag = 'output window, operand 0, single buffered']
    #allocation3 [shape = 's32[1]{0}', space=sflag, size = 0x4, scoped, tag = 'scoped memory for densenet_forward.25']
    %10 = vsyncpa [#allocation3], 0
    // Predicated region
    $region2: #{densenet_forward.25} parent=1 // pred_check
      _
    $region3: #{densenet_forward.25} parent=1 // pred_check_branch
      %12 = sbr.rel (0) target = $region5
    $region4: #{densenet_forward.25} parent=1 // pred_region
      _
    $region5: #{densenet_forward.25} parent=1 // pred_fallthru
      _
    // Predicated region
    $region6: #{densenet_forward.25} parent=1 // pred_check
      _
    $region7: #{densenet_forward.25} parent=1 // pred_check_branch
      %14 = sbr.rel (0) target = $region9
    $region8: #{densenet_forward.25} parent=1 // pred_region
      _
    $region9: #{densenet_forward.25} parent=1 // pred_fallthru
      _
    // Predicated region
    $region10: #{densenet_forward.25} parent=1 // pred_check
      _
    $region11: #{densenet_forward.25} parent=1 // pred_check_branch
      %16 = sbr.rel (0) target = $region13
    $region12: #{densenet_forward.25} parent=1 // pred_region
      _
    $region13: #{densenet_forward.25} parent=1 // pred_fallthru
      _
    // Predicated region
    $region14: #{densenet_forward.25} parent=1 // pred_check
      _
    $region15: #{densenet_forward.25} parent=1 // pred_check_branch
      %18 = sbr.rel (0) target = $region17
    $region16: #{densenet_forward.25} parent=1 // pred_region
      _
    $region17: #{densenet_forward.25} parent=1 // pred_fallthru
      _
    // Predicated region
    $region18: #{densenet_forward.25} parent=1 // pred_check
      _
    $region19: #{densenet_forward.25} parent=1 // pred_check_branch
      %20 = sbr.rel (0) target = $region21
    $region20: #{densenet_forward.25} parent=1 // pred_region
      _
    $region21: #{densenet_forward.25} parent=1 // pred_fallthru
      _
    %v21 = vld [vmem:[%s0] sm:$0xff]
    %v22 = vld [vmem:[%s0 + $0x8] sm:$0xff]
    %v23 = vld [vmem:[%s0 + $0x10] sm:$0xff]
    %v24 = vld [vmem:[%s0 + $0x18] sm:$0xff]
    %v25 = vld [vmem:[%s1] sm:$0x1]
    %v27 = vlaneseq
    %v28 = vshrl.u32 %v27, 7
    %v29 = vsub.s32 0, %v28
    %v30 = vrot.slane %v25, %v29
    %v32 = vmul.f32 %v21, %v30
    %v33 = vmul.f32 %v22, %v30
    %v34 = vmul.f32 %v23, %v30
    %v35 = vmul.f32 %v24, %v30
    %v36 = vld [vmem:[%s2] sm:$0x1]
    %v38 = vlaneseq
    %v39 = vshrl.u32 %v38, 7
    %v40 = vsub.s32 0, %v39
    %v41 = vrot.slane %v36, %v40
    %v43 = vadd.f32 %v32, %v41
    %v44 = vadd.f32 %v33, %v41
    %v45 = vadd.f32 %v34, %v41
    %v46 = vadd.f32 %v35, %v41
    %v47 = vmax.f32 %v43, 0.0
    %v48 = vmax.f32 %v44, 0.0
    %v49 = vmax.f32 %v45, 0.0
    %v50 = vmax.f32 %v46, 0.0
    %vm51 = vcmask 261120
    %v52 = vsel %vm51, %v47, 0.0
    %v53 = vsel %vm51, %v48, 0.0
    %v54 = vadd.f32 %v52, %v53
    %v55 = vrot.slane %v54, 4
    %v56 = vadd.f32 %v54, %v55
    %v57 = vrot.slane %v56, 2
    %v58 = vadd.f32 %v56, %v57
    %v59 = vrot.slane %v58, 1
    %v60 = vadd.f32 %v58, %v59
    %v61 = vsel %vm51, %v49, 0.0
    %v62 = vsel %vm51, %v50, 0.0
    %v63 = vadd.f32 %v61, %v62
    %v64 = vrot.slane %v63, 4
    %v65 = vadd.f32 %v63, %v64
    %v66 = vrot.slane %v65, 2
    %v67 = vadd.f32 %v65, %v66
    %v68 = vrot.slane %v67, 1
    %v69 = vadd.f32 %v67, %v68
    %v70 = vrcp.pop 16.0
    %v71 = vmul.f32 %v60, %v70
    %v72 = vmul.f32 %v69, %v70
    %v73 = vld [vmem:[%s3] sm:$0xff]
    %v74 = vld [vmem:[%s3 + $0x8] sm:$0xff]
    %v75 = vld [vmem:[%s3 + $0x10] sm:$0xff]
    %v76 = vld [vmem:[%s3 + $0x18] sm:$0xff]
    %v77 = vld [vmem:[%s4] sm:$0x1]
    %v79 = vlaneseq
    %v80 = vshrl.u32 %v79, 7
    %v81 = vsub.s32 0, %v80
    %v82 = vrot.slane %v77, %v81
    %vm86 = vcmask 1041409
    %v87 = vsel %vm86, %v72, %v71
    %v88 = vsel %vm51, %v87, 0
    %90 = vmatprep.subr.mxu0 0.0
    %91 = vmatpush1.msra.mxu0 %v73
    %92 = vmatprep.subr.mxu0 0.0
    %93 = vmatpush1.msra.mxu0 %v74
    %94 = vmatprep.subr.mxu0 0.0
    %95 = vmatpush1.msra.mxu0 %v75
    %96 = vmatprep.subr.mxu0 0.0
    %97 = vmatpush1.msra.mxu0 %v76
    %98 = vmatprep.subr.mxu0 0.0
    %99 = vmatpush1.msra.mxu0 0.0
    %100 = vmatprep.subr.mxu0 0.0
    %101 = vmatpush1.msra.mxu0 0.0
    %102 = vmatprep.subr.mxu0 0.0
    %103 = vmatpush1.msra.mxu0 0.0
    %104 = vmatprep.subr.mxu0 0.0
    %105 = vmatpush1.msra.mxu0 0.0
    %106 = vmatprep.subr.mxu0 0.0
    %107 = vmatpush1.msra.mxu0 0.0
    %108 = vmatprep.subr.mxu0 0.0
    %109 = vmatpush1.msra.mxu0 0.0
    %110 = vmatprep.subr.mxu0 0.0
    %111 = vmatpush1.msra.mxu0 0.0
    %112 = vmatprep.subr.mxu0 0.0
    %113 = vmatpush1.msra.mxu0 0.0
    %114 = vmatprep.subr.mxu0 0.0
    %115 = vmatpush1.msra.mxu0 0.0
    %116 = vmatprep.subr.mxu0 0.0
    %117 = vmatpush1.msra.mxu0 0.0
    %118 = vmatprep.subr.mxu0 0.0
    %119 = vmatpush1.msra.mxu0 0.0
    %120 = vmatprep.subr.mxu0 0.0
    %121 = vmatpush1.msra.mxu0 0.0
    %122 = vmatprep.subr.mxu0 0.0
    %123 = vmatpush1.msra.mxu0 0.0
    %124 = vmatprep.subr.mxu0 0.0
    %125 = vmatpush1.msra.mxu0 0.0
    %126 = vmatprep.subr.mxu0 0.0
    %127 = vmatpush1.msra.mxu0 0.0
    %128 = vmatprep.subr.mxu0 0.0
    %129 = vmatpush1.msra.mxu0 0.0
    %130 = vmatprep.subr.mxu0 0.0
    %131 = vmatpush1.msra.mxu0 0.0
    %132 = vmatprep.subr.mxu0 0.0
    %133 = vmatpush1.msra.mxu0 0.0
    %134 = vmatprep.subr.mxu0 0.0
    %135 = vmatpush1.msra.mxu0 0.0
    %136 = vmatprep.subr.mxu0 0.0
    %137 = vmatpush1.msra.mxu0 0.0
    %138 = vmatprep.subr.mxu0 0.0
    %139 = vmatpush1.msra.mxu0 0.0
    %140 = vmatprep.subr.mxu0 0.0
    %141 = vmatpush1.msra.mxu0 0.0
    %142 = vmatprep.subr.mxu0 0.0
    %143 = vmatpush1.msra.mxu0 0.0
    %144 = vmatprep.subr.mxu0 0.0
    %145 = vmatpush1.msra.mxu0 0.0
    %146 = vmatprep.subr.mxu0 0.0
    %147 = vmatpush1.msra.mxu0 0.0
    %148 = vmatprep.subr.mxu0 0.0
    %149 = vmatpush1.msra.mxu0 0.0
    %150 = vmatprep.subr.mxu0 0.0
    %151 = vmatpush1.msra.mxu0 0.0
    %152 = vmatprep.subr.mxu0 0.0
    %153 = vmatpush1.msra.mxu0 0.0
    %154 = vmatprep.mubr.f32.mxu0 0.0
    %155 = vmatmul.mubr.f32.gmra.mrb[0].mxu0 %v88
    %v156 = vpop.f32.mrb[0].mxu0
    %v157 = vadd.f32 %v82, %v156
    %v158 = vpop.f32.mrb[0].mxu0
    %159 = vdwg.mxu0
    %vm160 = vcmask 74752
    %161 = vst.msk [vmem:[#allocation2] sm:$0x3] %vm160, %v157
    // Predicated region
    $region22: #{densenet_forward.25} parent=1 // pred_check
      _
    $region23: #{densenet_forward.25} parent=1 // pred_check_branch
      %163 = sbr.rel (0) target = $region25
    $region24: #{densenet_forward.25} parent=1 // pred_region
      %s165 = ssub.s32 32, 32
      %166 = vsyncadd [#allocation3], %s165
      %s168 = sshll.u32 [#allocation2], 4
      %s169 = int_to_ptr.vmem [resolvable:$true] %s168
      %171 = dma.vmem_to_hbm [thread:$0]  %s169, 32, %s5, [#allocation3]
    $region25: #{densenet_forward.25} parent=1 // pred_fallthru
      _
    // Predicated region
    $region26: #{densenet_forward.25} parent=1 // pred_check
      _
    $region27: #{densenet_forward.25} parent=1 // pred_check_branch
      %173 = sbr.rel (0) target = $region29
    $region28: #{densenet_forward.25} parent=1 // pred_region
      %174 = dma.done [#allocation3], 32
    $region29: #{densenet_forward.25} parent=1 // pred_fallthru
      _
    %175 = vsyncpa [#allocation3], 1

</llo_original>
